<compile_context>
chip_gen: v5e
topology: v5e:2x2
jax: 0.10.0
libtpu: 0.0.40
codegen_flags: <defaults>
</compile_context>

<pallas_src>
import functools

import jax
import jax.numpy as jnp
from jax import lax
from jax.experimental import pallas as pl
from jax.experimental.pallas import tpu as pltpu


def _make_kernel(F):
    """ConvLSTM-cell kernel closed over the static feature count F."""
    eps = 1e-5

    def kernel(xc_ref, w_ref, gamma4_ref, beta4_ref, c_ref,
               h_out_ref, c_out_ref):
        # --- conv as a single MXU matmul: (4F, Kpad) @ (Kpad, NHW) ---------
        # Bias is already folded in through an extra ones row of xc.
        acc = jnp.dot(w_ref[...], xc_ref[...],
                      preferred_element_type=jnp.float32)        # (4F, NHW)

        # --- one-pass BatchNorm over the full 4F-row block -----------------
        # Per-row statistics over the NHW lane axis == PyTorch per-(gate,
        # channel) batch statistics with biased variance.
        mean = jnp.mean(acc, axis=1, keepdims=True)              # (4F, 1)
        var = jnp.mean(jnp.square(acc - mean), axis=1, keepdims=True)
        norm = ((acc - mean) * lax.rsqrt(var + eps)
                * gamma4_ref[...] + beta4_ref[...])              # (4F, NHW)

        # --- gates: static sublane slices (F = 32, multiple of 8) ----------
        i_g = jax.nn.sigmoid(norm[0 * F:1 * F, :])
        f_g = jax.nn.sigmoid(norm[1 * F:2 * F, :])
        o_g = jax.nn.sigmoid(norm[2 * F:3 * F, :])
        g_g = jnp.tanh(norm[3 * F:4 * F, :])

        next_c = f_g * c_ref[...] + i_g * g_g                    # (F, NHW)
        h_out_ref[...] = o_g * jnp.tanh(next_c)                  # 512-lane stores
        c_out_ref[...] = next_c

    return kernel


def prepare_clstm_params(conv_w_oihw, conv_b, bn_gamma, bn_beta):
    """Once-per-sequence parameter packing (hoist out of any time loop)."""
    O, C, k, _ = conv_w_oihw.shape                     # O = 4F
    F = O // 4
    kkc = k * k * C
    kpad = -(-(kkc + 1) // 128) * 128                  # +1 bias row, round to 128

    # PyTorch (4F, C, k, k) -> (4F, k, k, C) -> (4F, k*k*C); append bias col;
    # zero-pad the contraction dim to kpad.
    w_mat = jnp.transpose(conv_w_oihw, (0, 2, 3, 1)).reshape(O, kkc)
    w_aug = jnp.concatenate([w_mat, conv_b.reshape(O, 1)], axis=1)
    w_pad = jnp.pad(w_aug, ((0, 0), (0, kpad - kkc - 1))).astype(jnp.float32)

    # Shared BN affine tiled across the four gates, as (4F, 1) columns.
    gamma4 = jnp.tile(bn_gamma.reshape(1, F), (4, 1)).reshape(O, 1)
    beta4 = jnp.tile(bn_beta.reshape(1, F), (4, 1)).reshape(O, 1)
    return w_pad, gamma4.astype(jnp.float32), beta4.astype(jnp.float32), kpad


def clstm_cell_forward(x_nchw, h_nchw, c_nchw, conv_w_oihw, conv_b,
                       bn_gamma, bn_beta, *, filter_size):
    """Pallas-backed CLSTM_cell.forward.  Inputs/outputs are NCHW (PyTorch)."""
    N, Cin, H, W = x_nchw.shape
    F = h_nchw.shape[1]
    C = Cin + F
    k = filter_size
    p = (k - 1) // 2
    NHW = N * H * W

    w_pad, gamma4, beta4, kpad = prepare_clstm_params(
        conv_w_oihw, conv_b, bn_gamma, bn_beta)

    # ---- host glue: layout plumbing + im2col ------------------------------
    # For a scan over T steps, keep h/c in the lane-dense (F, NHW) layout
    # between steps and reuse w_pad/gamma4/beta4; only x needs im2col per step.
    x_nhwc = jnp.transpose(x_nchw, (0, 2, 3, 1))
    h_nhwc = jnp.transpose(h_nchw, (0, 2, 3, 1))
    combined = jnp.concatenate([x_nhwc, h_nhwc], axis=-1).astype(jnp.float32)
    xpad = jnp.pad(combined, ((0, 0), (p, p), (p, p), (0, 0)))   # (N,H+2p,W+2p,C)

    patches = [xpad[:, kh:kh + H, kw:kw + W, :]
               for kh in range(k) for kw in range(k)]            # each (N,H,W,C)
    col = jnp.concatenate(patches, axis=-1).reshape(NHW, k * k * C)
    col = jnp.concatenate([col, jnp.ones((NHW, 1), jnp.float32)], axis=-1)
    col = jnp.pad(col, ((0, 0), (0, kpad - k * k * C - 1)))
    xc = jnp.transpose(col, (1, 0))                              # (Kpad, NHW)

    c_lane = jnp.transpose(c_nchw, (1, 0, 2, 3)).reshape(F, NHW).astype(jnp.float32)

    vmem = pl.BlockSpec(memory_space=pltpu.MemorySpace.VMEM)
    bytes_accessed = 4 * (kpad * NHW + 4 * F * kpad + 2 * 4 * F + 3 * F * NHW)
    cost = pl.CostEstimate(flops=2 * 4 * F * kpad * NHW,
                           transcendentals=5 * F * NHW,
                           bytes_accessed=bytes_accessed)

    h_lane, c_next_lane = pl.pallas_call(
        _make_kernel(F),
        out_shape=(jax.ShapeDtypeStruct((F, NHW), jnp.float32),
                   jax.ShapeDtypeStruct((F, NHW), jnp.float32)),
        in_specs=[vmem, vmem, vmem, vmem, vmem],
        out_specs=(vmem, vmem),
        compiler_params=pltpu.CompilerParams(
            vmem_limit_bytes=32 * 1024 * 1024),
        cost_estimate=cost,
    )(xc, w_pad, gamma4, beta4, c_lane)

    next_h = jnp.transpose(h_lane.reshape(F, N, H, W), (1, 0, 2, 3))
    next_c = jnp.transpose(c_next_lane.reshape(F, N, H, W), (1, 0, 2, 3))
    return next_h, next_c


def _reference_forward(x, h, c, w, b, gamma, beta, *, filter_size):
    """Pure-JAX NCHW reference matching PyTorch semantics (BN training mode)."""
    p = (filter_size - 1) // 2
    combined = jnp.concatenate([x, h], axis=1)
    A = lax.conv_general_dilated(
        combined, w, window_strides=(1, 1), padding=[(p, p), (p, p)],
        dimension_numbers=('NCHW', 'OIHW', 'NCHW')) + b[None, :, None, None]
    F = h.shape[1]
    ai, af, ao, ag = jnp.split(A, 4, axis=1)

    def bn(a):
        mean = jnp.mean(a, axis=(0, 2, 3), keepdims=True)
        var = jnp.mean(jnp.square(a - mean), axis=(0, 2, 3), keepdims=True)
        return ((a - mean) * lax.rsqrt(var + 1e-5)
                * gamma[None, :, None, None] + beta[None, :, None, None])

    i = jax.nn.sigmoid(bn(ai))
    f = jax.nn.sigmoid(bn(af))
    o = jax.nn.sigmoid(bn(ao))
    g = jnp.tanh(bn(ag))
    next_c = f * c + i * g
    next_h = o * jnp.tanh(next_c)
    return next_h, next_c


if __name__ == "__main__":
    # Module config: shape=(16,16), input_chans=4, filter_size=3, num_features=32
    N, Cin, H, W = 2, 4, 16, 16
    F, k = 32, 3

    key = jax.random.PRNGKey(0)
    kx, kh, kc, kw, kb = jax.random.split(key, 5)

    x = jax.random.normal(kx, (N, Cin, H, W), jnp.float32)
    h = jax.random.normal(kh, (N, F, H, W), jnp.float32)
    c = jax.random.normal(kc, (N, F, H, W), jnp.float32)

    # Deterministic parameter init (PyTorch-style uniform bound for the conv,
    # BN gamma=1 / beta=0 like a freshly constructed nn.BatchNorm2d).
    fan_in = (Cin + F) * k * k
    bound = 1.0 / jnp.sqrt(fan_in)
    conv_w = jax.random.uniform(kw, (4 * F, Cin + F, k, k), jnp.float32,
                                -bound, bound)
    conv_b = jax.random.uniform(kb, (4 * F,), jnp.float32, -bound, bound)
    bn_gamma = jnp.ones((F,), jnp.float32)
    bn_beta = jnp.zeros((F,), jnp.float32)

    fwd = jax.jit(functools.partial(clstm_cell_forward, filter_size=k))
    next_h, next_c = fwd(x, h, c, conv_w, conv_b, bn_gamma, bn_beta)
    jax.block_until_ready((next_h, next_c))

    ref_h, ref_c = _reference_forward(x, h, c, conv_w, conv_b, bn_gamma,
                                      bn_beta, filter_size=k)
    assert next_h.shape == (N, F, H, W) and next_c.shape == (N, F, H, W)
    assert jnp.allclose(next_h, ref_h, atol=2e-4, rtol=2e-4)
    assert jnp.allclose(next_c, ref_c, atol=2e-4, rtol=2e-4)

    print("KERNEL_OK")
</pallas_src>

<mosaic_0001>
module attributes {stable_mosaic.version = 11 : i64} {
  func.func @kernel(%arg0: memref<384x512xf32, #tpu.memory_space<vmem>>, %arg1: memref<128x384xf32, #tpu.memory_space<vmem>>, %arg2: memref<128x1xf32, #tpu.memory_space<vmem>>, %arg3: memref<128x1xf32, #tpu.memory_space<vmem>>, %arg4: memref<32x512xf32, #tpu.memory_space<vmem>>, %arg5: memref<32x512xf32, #tpu.memory_space<vmem>>, %arg6: memref<32x512xf32, #tpu.memory_space<vmem>>) attributes {dimension_semantics = [], scalar_prefetch = 0 : i64, scratch_operands = 0 : i64, tpu.core_type = #tpu.core_type<tc>} {
    %c0 = arith.constant 0 : index
    %c0_0 = arith.constant 0 : index
    %0 = vector.load %arg1[%c0, %c0_0] : memref<128x384xf32, #tpu.memory_space<vmem>>, vector<128x384xf32>
    %c0_1 = arith.constant 0 : index
    %c0_2 = arith.constant 0 : index
    %1 = vector.load %arg0[%c0_1, %c0_2] : memref<384x512xf32, #tpu.memory_space<vmem>>, vector<384x512xf32>
    %cst = arith.constant dense<0.000000e+00> : vector<128x512xf32>
    %2 = tpu.matmul %0, %1, %cst {dimension_numbers = #tpu.dot_dimension_numbers<[1], [0], [0], [1], [0, 0, 1, 1], [], []>} : vector<128x384xf32>, vector<384x512xf32>, vector<128x512xf32> -> vector<128x512xf32>
    %cst_3 = arith.constant dense<0.000000e+00> : vector<128xf32>
    %3 = vector.multi_reduction <add>, %2, %cst_3 [1] : vector<128x512xf32> to vector<128xf32>
    %4 = vector.shape_cast %3 : vector<128xf32> to vector<128x1xf32>
    %cst_4 = arith.constant 5.120000e+02 : f32
    %5 = vector.broadcast %cst_4 : f32 to vector<128x1xf32>
    %6 = arith.divf %4, %5 : vector<128x1xf32>
    %7 = vector.broadcast %6 : vector<128x1xf32> to vector<128x512xf32>
    %8 = arith.subf %2, %7 : vector<128x512xf32>
    %9 = arith.mulf %8, %8 : vector<128x512xf32>
    %cst_5 = arith.constant dense<0.000000e+00> : vector<128xf32>
    %10 = vector.multi_reduction <add>, %9, %cst_5 [1] : vector<128x512xf32> to vector<128xf32>
    %11 = vector.shape_cast %10 : vector<128xf32> to vector<128x1xf32>
    %cst_6 = arith.constant 5.120000e+02 : f32
    %12 = vector.broadcast %cst_6 : f32 to vector<128x1xf32>
    %13 = arith.divf %11, %12 : vector<128x1xf32>
    %14 = vector.broadcast %6 : vector<128x1xf32> to vector<128x512xf32>
    %15 = arith.subf %2, %14 : vector<128x512xf32>
    %cst_7 = arith.constant 9.99999974E-6 : f32
    %16 = vector.broadcast %cst_7 : f32 to vector<128x1xf32>
    %17 = arith.addf %13, %16 : vector<128x1xf32>
    %18 = math.rsqrt %17 : vector<128x1xf32>
    %19 = vector.broadcast %18 : vector<128x1xf32> to vector<128x512xf32>
    %20 = arith.mulf %15, %19 : vector<128x512xf32>
    %c0_8 = arith.constant 0 : index
    %c0_9 = arith.constant 0 : index
    %21 = vector.load %arg2[%c0_8, %c0_9] : memref<128x1xf32, #tpu.memory_space<vmem>>, vector<128x1xf32>
    %22 = vector.broadcast %21 : vector<128x1xf32> to vector<128x512xf32>
    %23 = arith.mulf %20, %22 : vector<128x512xf32>
    %c0_10 = arith.constant 0 : index
    %c0_11 = arith.constant 0 : index
    %24 = vector.load %arg3[%c0_10, %c0_11] : memref<128x1xf32, #tpu.memory_space<vmem>>, vector<128x1xf32>
    %25 = vector.broadcast %24 : vector<128x1xf32> to vector<128x512xf32>
    %26 = arith.addf %23, %25 : vector<128x512xf32>
    %27 = vector.extract_strided_slice %26 {offsets = [0, 0], sizes = [32, 512], strides = [1, 1]} : vector<128x512xf32> to vector<32x512xf32>
    %28 = arith.negf %27 : vector<32x512xf32>
    %29 = math.exp %28 : vector<32x512xf32>
    %cst_12 = arith.constant 1.000000e+00 : f32
    %30 = vector.broadcast %cst_12 : f32 to vector<32x512xf32>
    %31 = arith.addf %30, %29 : vector<32x512xf32>
    %32 = arith.divf %30, %31 : vector<32x512xf32>
    %33 = vector.extract_strided_slice %26 {offsets = [32, 0], sizes = [32, 512], strides = [1, 1]} : vector<128x512xf32> to vector<32x512xf32>
    %34 = arith.negf %33 : vector<32x512xf32>
    %35 = math.exp %34 : vector<32x512xf32>
    %cst_13 = arith.constant 1.000000e+00 : f32
    %36 = vector.broadcast %cst_13 : f32 to vector<32x512xf32>
    %37 = arith.addf %36, %35 : vector<32x512xf32>
    %38 = arith.divf %36, %37 : vector<32x512xf32>
    %39 = vector.extract_strided_slice %26 {offsets = [64, 0], sizes = [32, 512], strides = [1, 1]} : vector<128x512xf32> to vector<32x512xf32>
    %40 = arith.negf %39 : vector<32x512xf32>
    %41 = math.exp %40 : vector<32x512xf32>
    %cst_14 = arith.constant 1.000000e+00 : f32
    %42 = vector.broadcast %cst_14 : f32 to vector<32x512xf32>
    %43 = arith.addf %42, %41 : vector<32x512xf32>
    %44 = arith.divf %42, %43 : vector<32x512xf32>
    %45 = vector.extract_strided_slice %26 {offsets = [96, 0], sizes = [32, 512], strides = [1, 1]} : vector<128x512xf32> to vector<32x512xf32>
    %46 = math.tanh %45 : vector<32x512xf32>
    %c0_15 = arith.constant 0 : index
    %c0_16 = arith.constant 0 : index
    %47 = vector.load %arg4[%c0_15, %c0_16] : memref<32x512xf32, #tpu.memory_space<vmem>>, vector<32x512xf32>
    %48 = arith.mulf %38, %47 : vector<32x512xf32>
    %49 = arith.mulf %32, %46 : vector<32x512xf32>
    %50 = arith.addf %48, %49 : vector<32x512xf32>
    %51 = math.tanh %50 : vector<32x512xf32>
    %52 = arith.mulf %44, %51 : vector<32x512xf32>
    %c0_17 = arith.constant 0 : index
    %c0_18 = arith.constant 0 : index
    %53 = vector.load %arg5[%c0_17, %c0_18] : memref<32x512xf32, #tpu.memory_space<vmem>>, vector<32x512xf32>
    tpu.vector_store %arg5[%c0_17, %c0_18], %52 {strides = array<i32>} : memref<32x512xf32, #tpu.memory_space<vmem>>, vector<32x512xf32>,
    %c0_19 = arith.constant 0 : index
    %c0_20 = arith.constant 0 : index
    %54 = vector.load %arg6[%c0_19, %c0_20] : memref<32x512xf32, #tpu.memory_space<vmem>>, vector<32x512xf32>
    tpu.vector_store %arg6[%c0_19, %c0_20], %50 {strides = array<i32>} : memref<32x512xf32, #tpu.memory_space<vmem>>, vector<32x512xf32>,
    return
  }
}

</mosaic_0001>

<llo_original>
// kernel: tile.10
$region0: #{tile.10}
  #allocation0 [shape = 's32[1]{0}', space=sflag, size = 0x4, scoped, tag = 'scoped memory for tile.10']
  %s0 = inlined_call_operand.vmem [shape: f32[32], index: 0, kind: input, shape index: {}]
  %s1 = inlined_call_operand.vmem [shape: f32[4,1,1,32], index: 1, kind: output, shape index: {}]
  // Predicated region
  $region2: #{tile.10} parent=0 // pred_check
    _
  $region3: #{tile.10} parent=0 // pred_check_branch
    %3 = sbr.rel (0) target = $region5
  $region4: #{tile.10} parent=0 // pred_region
    _
  $region5: #{tile.10} parent=0 // pred_fallthru
    _
  %v4 = vld [vmem:[%s0] ss:$0 sm:$0xff]
  %5 = vst [vmem:[%s1] sm:$0xf] %v4

// kernel: tile.0
$region0: #{tile.0}
  %s0 = inlined_call_operand.vmem [shape: f32[4,1,1,32], index: 0, kind: input, shape index: {}]
  %s1 = inlined_call_operand.vmem [shape: f32[128,1], index: 1, kind: output, shape index: {}]
  $region1: #{tile.0} parent=0
    #allocation0 [shape = 'u8[4096]{0}', space=vmem, size = 0x1000, scoped, tag = 'scoped mem for input reshape']
    %s3 = ssub.s32 16, 1
    %v4 = vld [vmem:[%s0] sm:%s3]
    %5 = vst [vmem:[#allocation0] sm:%s3] %v4
    %v6 = vld [vmem:[#allocation0] sm:$0xf]
    %vm7 = vcmask 7168
    %8 = vst.msk [vmem:[%s1] sm:$0x1] %vm7, %v6
    %s9 = scalar_lea.vmem %s1, 31
    %10 = vst.msk [vmem:[%s9] sm:$0x2] %vm7, %v6
    %s11 = scalar_lea.vmem %s1, 62
    %12 = vst.msk [vmem:[%s11] sm:$0x4] %vm7, %v6
    %s13 = scalar_lea.vmem %s1, 93
    %14 = vst.msk [vmem:[%s13] sm:$0x8] %vm7, %v6
    %v15 = vld [vmem:[#allocation0] sm:$0xf]
    %16 = vrot.lane.b32.xlu0 %v15, 127
    %v17 = vpop.permute.xlu0 %16
    %vm18 = vcmask 7168
    %s19 = scalar_lea.vmem %s1, 1
    %20 = vst.msk [vmem:[%s19] sm:$0x1] %vm18, %v17
    %s21 = scalar_lea.vmem %s1, 32
    %22 = vst.msk [vmem:[%s21] sm:$0x2] %vm18, %v17
    %s23 = scalar_lea.vmem %s1, 63
    %24 = vst.msk [vmem:[%s23] sm:$0x4] %vm18, %v17
    %s25 = scalar_lea.vmem %s1, 94
    %26 = vst.msk [vmem:[%s25] sm:$0x8] %vm18, %v17
    %v27 = vld [vmem:[#allocation0] sm:$0xf]
    %28 = vrot.lane.b32.xlu0 %v27, 126
    %v29 = vpop.permute.xlu0 %28
    %vm30 = vcmask 7168
    %s31 = scalar_lea.vmem %s1, 2
    %32 = vst.msk [vmem:[%s31] sm:$0x1] %vm30, %v29
    %s33 = scalar_lea.vmem %s1, 33
    %34 = vst.msk [vmem:[%s33] sm:$0x2] %vm30, %v29
    %s35 = scalar_lea.vmem %s1, 64
    %36 = vst.msk [vmem:[%s35] sm:$0x4] %vm30, %v29
    %s37 = scalar_lea.vmem %s1, 95
    %38 = vst.msk [vmem:[%s37] sm:$0x8] %vm30, %v29
    %v39 = vld [vmem:[#allocation0] sm:$0xf]
    %40 = vrot.lane.b32.xlu0 %v39, 125
    %v41 = vpop.permute.xlu0 %40
    %vm42 = vcmask 7168
    %s43 = scalar_lea.vmem %s1, 3
    %44 = vst.msk [vmem:[%s43] sm:$0x1] %vm42, %v41
    %s45 = scalar_lea.vmem %s1, 34
    %46 = vst.msk [vmem:[%s45] sm:$0x2] %vm42, %v41
    %s47 = scalar_lea.vmem %s1, 65
    %48 = vst.msk [vmem:[%s47] sm:$0x4] %vm42, %v41
    %s49 = scalar_lea.vmem %s1, 96
    %50 = vst.msk [vmem:[%s49] sm:$0x8] %vm42, %v41
    %v51 = vld [vmem:[#allocation0] sm:$0xf]
    %52 = vrot.lane.b32.xlu0 %v51, 124
    %v53 = vpop.permute.xlu0 %52
    %vm54 = vcmask 7168
    %s55 = scalar_lea.vmem %s1, 4
    %56 = vst.msk [vmem:[%s55] sm:$0x1] %vm54, %v53
    %s57 = scalar_lea.vmem %s1, 35
    %58 = vst.msk [vmem:[%s57] sm:$0x2] %vm54, %v53
    %s59 = scalar_lea.vmem %s1, 66
    %60 = vst.msk [vmem:[%s59] sm:$0x4] %vm54, %v53
    %s61 = scalar_lea.vmem %s1, 97
    %62 = vst.msk [vmem:[%s61] sm:$0x8] %vm54, %v53
    %v63 = vld [vmem:[#allocation0] sm:$0xf]
    %64 = vrot.lane.b32.xlu0 %v63, 123
    %v65 = vpop.permute.xlu0 %64
    %vm66 = vcmask 7168
    %s67 = scalar_lea.vmem %s1, 5
    %68 = vst.msk [vmem:[%s67] sm:$0x1] %vm66, %v65
    %s69 = scalar_lea.vmem %s1, 36
    %70 = vst.msk [vmem:[%s69] sm:$0x2] %vm66, %v65
    %s71 = scalar_lea.vmem %s1, 67
    %72 = vst.msk [vmem:[%s71] sm:$0x4] %vm66, %v65
    %s73 = scalar_lea.vmem %s1, 98
    %74 = vst.msk [vmem:[%s73] sm:$0x8] %vm66, %v65
    %v75 = vld [vmem:[#allocation0] sm:$0xf]
    %76 = vrot.lane.b32.xlu0 %v75, 122
    %v77 = vpop.permute.xlu0 %76
    %vm78 = vcmask 7168
    %s79 = scalar_lea.vmem %s1, 6
    %80 = vst.msk [vmem:[%s79] sm:$0x1] %vm78, %v77
    %s81 = scalar_lea.vmem %s1, 37
    %82 = vst.msk [vmem:[%s81] sm:$0x2] %vm78, %v77
    %s83 = scalar_lea.vmem %s1, 68
    %84 = vst.msk [vmem:[%s83] sm:$0x4] %vm78, %v77
    %s85 = scalar_lea.vmem %s1, 99
    %86 = vst.msk [vmem:[%s85] sm:$0x8] %vm78, %v77
    %v87 = vld [vmem:[#allocation0] sm:$0xf]
    %88 = vrot.lane.b32.xlu0 %v87, 121
    %v89 = vpop.permute.xlu0 %88
    %vm90 = vcmask 7168
    %s91 = scalar_lea.vmem %s1, 7
    %92 = vst.msk [vmem:[%s91] sm:$0x1] %vm90, %v89
    %s93 = scalar_lea.vmem %s1, 38
    %94 = vst.msk [vmem:[%s93] sm:$0x2] %vm90, %v89
    %s95 = scalar_lea.vmem %s1, 69
    %96 = vst.msk [vmem:[%s95] sm:$0x4] %vm90, %v89
    %s97 = scalar_lea.vmem %s1, 100
    %98 = vst.msk [vmem:[%s97] sm:$0x8] %vm90, %v89
    %v99 = vld [vmem:[#allocation0] sm:$0xf]
    %100 = vrot.lane.b32.xlu0 %v99, 120
    %v101 = vpop.permute.xlu0 %100
    %vm102 = vcmask 7168
    %s103 = scalar_lea.vmem %s1, 8
    %104 = vst.msk [vmem:[%s103] sm:$0x1] %vm102, %v101
    %s105 = scalar_lea.vmem %s1, 39
    %106 = vst.msk [vmem:[%s105] sm:$0x2] %vm102, %v101
    %s107 = scalar_lea.vmem %s1, 70
    %108 = vst.msk [vmem:[%s107] sm:$0x4] %vm102, %v101
    %s109 = scalar_lea.vmem %s1, 101
    %110 = vst.msk [vmem:[%s109] sm:$0x8] %vm102, %v101
    %v111 = vld [vmem:[#allocation0] sm:$0xf]
    %112 = vrot.lane.b32.xlu0 %v111, 119
    %v113 = vpop.permute.xlu0 %112
    %vm114 = vcmask 7168
    %s115 = scalar_lea.vmem %s1, 9
    %116 = vst.msk [vmem:[%s115] sm:$0x1] %vm114, %v113
    %s117 = scalar_lea.vmem %s1, 40
    %118 = vst.msk [vmem:[%s117] sm:$0x2] %vm114, %v113
    %s119 = scalar_lea.vmem %s1, 71
    %120 = vst.msk [vmem:[%s119] sm:$0x4] %vm114, %v113
    %s121 = scalar_lea.vmem %s1, 102
    %122 = vst.msk [vmem:[%s121] sm:$0x8] %vm114, %v113
    %v123 = vld [vmem:[#allocation0] sm:$0xf]
    %124 = vrot.lane.b32.xlu0 %v123, 118
    %v125 = vpop.permute.xlu0 %124
    %vm126 = vcmask 7168
    %s127 = scalar_lea.vmem %s1, 10
    %128 = vst.msk [vmem:[%s127] sm:$0x1] %vm126, %v125
    %s129 = scalar_lea.vmem %s1, 41
    %130 = vst.msk [vmem:[%s129] sm:$0x2] %vm126, %v125
    %s131 = scalar_lea.vmem %s1, 72
    %132 = vst.msk [vmem:[%s131] sm:$0x4] %vm126, %v125
    %s133 = scalar_lea.vmem %s1, 103
    %134 = vst.msk [vmem:[%s133] sm:$0x8] %vm126, %v125
    %v135 = vld [vmem:[#allocation0] sm:$0xf]
    %136 = vrot.lane.b32.xlu0 %v135, 117
    %v137 = vpop.permute.xlu0 %136
    %vm138 = vcmask 7168
    %s139 = scalar_lea.vmem %s1, 11
    %140 = vst.msk [vmem:[%s139] sm:$0x1] %vm138, %v137
    %s141 = scalar_lea.vmem %s1, 42
    %142 = vst.msk [vmem:[%s141] sm:$0x2] %vm138, %v137
    %s143 = scalar_lea.vmem %s1, 73
    %144 = vst.msk [vmem:[%s143] sm:$0x4] %vm138, %v137
    %s145 = scalar_lea.vmem %s1, 104
    %146 = vst.msk [vmem:[%s145] sm:$0x8] %vm138, %v137
    %v147 = vld [vmem:[#allocation0] sm:$0xf]
    %148 = vrot.lane.b32.xlu0 %v147, 116
    %v149 = vpop.permute.xlu0 %148
    %vm150 = vcmask 7168
    %s151 = scalar_lea.vmem %s1, 12
    %152 = vst.msk [vmem:[%s151] sm:$0x1] %vm150, %v149
    %s153 = scalar_lea.vmem %s1, 43
    %154 = vst.msk [vmem:[%s153] sm:$0x2] %vm150, %v149
    %s155 = scalar_lea.vmem %s1, 74
    %156 = vst.msk [vmem:[%s155] sm:$0x4] %vm150, %v149
    %s157 = scalar_lea.vmem %s1, 105
    %158 = vst.msk [vmem:[%s157] sm:$0x8] %vm150, %v149
    %v159 = vld [vmem:[#allocation0] sm:$0xf]
    %160 = vrot.lane.b32.xlu0 %v159, 115
    %v161 = vpop.permute.xlu0 %160
    %vm162 = vcmask 7168
    %s163 = scalar_lea.vmem %s1, 13
    %164 = vst.msk [vmem:[%s163] sm:$0x1] %vm162, %v161
    %s165 = scalar_lea.vmem %s1, 44
    %166 = vst.msk [vmem:[%s165] sm:$0x2] %vm162, %v161
    %s167 = scalar_lea.vmem %s1, 75
    %168 = vst.msk [vmem:[%s167] sm:$0x4] %vm162, %v161
    %s169 = scalar_lea.vmem %s1, 106
    %170 = vst.msk [vmem:[%s169] sm:$0x8] %vm162, %v161
    %v171 = vld [vmem:[#allocation0] sm:$0xf]
    %172 = vrot.lane.b32.xlu0 %v171, 114
    %v173 = vpop.permute.xlu0 %172
    %vm174 = vcmask 7168
    %s175 = scalar_lea.vmem %s1, 14
    %176 = vst.msk [vmem:[%s175] sm:$0x1] %vm174, %v173
    %s177 = scalar_lea.vmem %s1, 45
    %178 = vst.msk [vmem:[%s177] sm:$0x2] %vm174, %v173
    %s179 = scalar_lea.vmem %s1, 76
    %180 = vst.msk [vmem:[%s179] sm:$0x4] %vm174, %v173
    %s181 = scalar_lea.vmem %s1, 107
    %182 = vst.msk [vmem:[%s181] sm:$0x8] %vm174, %v173
    %v183 = vld [vmem:[#allocation0] sm:$0xf]
    %184 = vrot.lane.b32.xlu0 %v183, 113
    %v185 = vpop.permute.xlu0 %184
    %vm186 = vcmask 7168
    %s187 = scalar_lea.vmem %s1, 15
    %188 = vst.msk [vmem:[%s187] sm:$0x1] %vm186, %v185
    %s189 = scalar_lea.vmem %s1, 46
    %190 = vst.msk [vmem:[%s189] sm:$0x2] %vm186, %v185
    %s191 = scalar_lea.vmem %s1, 77
    %192 = vst.msk [vmem:[%s191] sm:$0x4] %vm186, %v185
    %s193 = scalar_lea.vmem %s1, 108
    %194 = vst.msk [vmem:[%s193] sm:$0x8] %vm186, %v185
    %v195 = vld [vmem:[#allocation0] sm:$0xf]
    %196 = vrot.lane.b32.xlu0 %v195, 112
    %v197 = vpop.permute.xlu0 %196
    %vm198 = vcmask 7168
    %s199 = scalar_lea.vmem %s1, 16
    %200 = vst.msk [vmem:[%s199] sm:$0x1] %vm198, %v197
    %s201 = scalar_lea.vmem %s1, 47
    %202 = vst.msk [vmem:[%s201] sm:$0x2] %vm198, %v197
    %s203 = scalar_lea.vmem %s1, 78
    %204 = vst.msk [vmem:[%s203] sm:$0x4] %vm198, %v197
    %s205 = scalar_lea.vmem %s1, 109
    %206 = vst.msk [vmem:[%s205] sm:$0x8] %vm198, %v197
    %v207 = vld [vmem:[#allocation0] sm:$0xf]
    %208 = vrot.lane.b32.xlu0 %v207, 111
    %v209 = vpop.permute.xlu0 %208
    %vm210 = vcmask 7168
    %s211 = scalar_lea.vmem %s1, 17
    %212 = vst.msk [vmem:[%s211] sm:$0x1] %vm210, %v209
    %s213 = scalar_lea.vmem %s1, 48
    %214 = vst.msk [vmem:[%s213] sm:$0x2] %vm210, %v209
    %s215 = scalar_lea.vmem %s1, 79
    %216 = vst.msk [vmem:[%s215] sm:$0x4] %vm210, %v209
    %s217 = scalar_lea.vmem %s1, 110
    %218 = vst.msk [vmem:[%s217] sm:$0x8] %vm210, %v209
    %v219 = vld [vmem:[#allocation0] sm:$0xf]
    %220 = vrot.lane.b32.xlu0 %v219, 110
    %v221 = vpop.permute.xlu0 %220
    %vm222 = vcmask 7168
    %s223 = scalar_lea.vmem %s1, 18
    %224 = vst.msk [vmem:[%s223] sm:$0x1] %vm222, %v221
    %s225 = scalar_lea.vmem %s1, 49
    %226 = vst.msk [vmem:[%s225] sm:$0x2] %vm222, %v221
    %s227 = scalar_lea.vmem %s1, 80
    %228 = vst.msk [vmem:[%s227] sm:$0x4] %vm222, %v221
    %s229 = scalar_lea.vmem %s1, 111
    %230 = vst.msk [vmem:[%s229] sm:$0x8] %vm222, %v221
    %v231 = vld [vmem:[#allocation0] sm:$0xf]
    %232 = vrot.lane.b32.xlu0 %v231, 109
    %v233 = vpop.permute.xlu0 %232
    %vm234 = vcmask 7168
    %s235 = scalar_lea.vmem %s1, 19
    %236 = vst.msk [vmem:[%s235] sm:$0x1] %vm234, %v233
    %s237 = scalar_lea.vmem %s1, 50
    %238 = vst.msk [vmem:[%s237] sm:$0x2] %vm234, %v233
    %s239 = scalar_lea.vmem %s1, 81
    %240 = vst.msk [vmem:[%s239] sm:$0x4] %vm234, %v233
    %s241 = scalar_lea.vmem %s1, 112
    %242 = vst.msk [vmem:[%s241] sm:$0x8] %vm234, %v233
    %v243 = vld [vmem:[#allocation0] sm:$0xf]
    %244 = vrot.lane.b32.xlu0 %v243, 108
    %v245 = vpop.permute.xlu0 %244
    %vm246 = vcmask 7168
    %s247 = scalar_lea.vmem %s1, 20
    %248 = vst.msk [vmem:[%s247] sm:$0x1] %vm246, %v245
    %s249 = scalar_lea.vmem %s1, 51
    %250 = vst.msk [vmem:[%s249] sm:$0x2] %vm246, %v245
    %s251 = scalar_lea.vmem %s1, 82
    %252 = vst.msk [vmem:[%s251] sm:$0x4] %vm246, %v245
    %s253 = scalar_lea.vmem %s1, 113
    %254 = vst.msk [vmem:[%s253] sm:$0x8] %vm246, %v245
    %v255 = vld [vmem:[#allocation0] sm:$0xf]
    %256 = vrot.lane.b32.xlu0 %v255, 107
    %v257 = vpop.permute.xlu0 %256
    %vm258 = vcmask 7168
    %s259 = scalar_lea.vmem %s1, 21
    %260 = vst.msk [vmem:[%s259] sm:$0x1] %vm258, %v257
    %s261 = scalar_lea.vmem %s1, 52
    %262 = vst.msk [vmem:[%s261] sm:$0x2] %vm258, %v257
    %s263 = scalar_lea.vmem %s1, 83
    %264 = vst.msk [vmem:[%s263] sm:$0x4] %vm258, %v257
    %s265 = scalar_lea.vmem %s1, 114
    %266 = vst.msk [vmem:[%s265] sm:$0x8] %vm258, %v257
    %v267 = vld [vmem:[#allocation0] sm:$0xf]
    %268 = vrot.lane.b32.xlu0 %v267, 106
    %v269 = vpop.permute.xlu0 %268
    %vm270 = vcmask 7168
    %s271 = scalar_lea.vmem %s1, 22
    %272 = vst.msk [vmem:[%s271] sm:$0x1] %vm270, %v269
    %s273 = scalar_lea.vmem %s1, 53
    %274 = vst.msk [vmem:[%s273] sm:$0x2] %vm270, %v269
    %s275 = scalar_lea.vmem %s1, 84
    %276 = vst.msk [vmem:[%s275] sm:$0x4] %vm270, %v269
    %s277 = scalar_lea.vmem %s1, 115
    %278 = vst.msk [vmem:[%s277] sm:$0x8] %vm270, %v269
    %v279 = vld [vmem:[#allocation0] sm:$0xf]
    %280 = vrot.lane.b32.xlu0 %v279, 105
    %v281 = vpop.permute.xlu0 %280
    %vm282 = vcmask 7168
    %s283 = scalar_lea.vmem %s1, 23
    %284 = vst.msk [vmem:[%s283] sm:$0x1] %vm282, %v281
    %s285 = scalar_lea.vmem %s1, 54
    %286 = vst.msk [vmem:[%s285] sm:$0x2] %vm282, %v281
    %s287 = scalar_lea.vmem %s1, 85
    %288 = vst.msk [vmem:[%s287] sm:$0x4] %vm282, %v281
    %s289 = scalar_lea.vmem %s1, 116
    %290 = vst.msk [vmem:[%s289] sm:$0x8] %vm282, %v281
    %v291 = vld [vmem:[#allocation0] sm:$0xf]
    %292 = vrot.lane.b32.xlu0 %v291, 104
    %v293 = vpop.permute.xlu0 %292
    %vm294 = vcmask 7168
    %s295 = scalar_lea.vmem %s1, 24
    %296 = vst.msk [vmem:[%s295] sm:$0x1] %vm294, %v293
    %s297 = scalar_lea.vmem %s1, 55
    %298 = vst.msk [vmem:[%s297] sm:$0x2] %vm294, %v293
    %s299 = scalar_lea.vmem %s1, 86
    %300 = vst.msk [vmem:[%s299] sm:$0x4] %vm294, %v293
    %s301 = scalar_lea.vmem %s1, 117
    %302 = vst.msk [vmem:[%s301] sm:$0x8] %vm294, %v293
    %v303 = vld [vmem:[#allocation0] sm:$0xf]
    %304 = vrot.lane.b32.xlu0 %v303, 103
    %v305 = vpop.permute.xlu0 %304
    %vm306 = vcmask 7168
    %s307 = scalar_lea.vmem %s1, 25
    %308 = vst.msk [vmem:[%s307] sm:$0x1] %vm306, %v305
    %s309 = scalar_lea.vmem %s1, 56
    %310 = vst.msk [vmem:[%s309] sm:$0x2] %vm306, %v305
    %s311 = scalar_lea.vmem %s1, 87
    %312 = vst.msk [vmem:[%s311] sm:$0x4] %vm306, %v305
    %s313 = scalar_lea.vmem %s1, 118
    %314 = vst.msk [vmem:[%s313] sm:$0x8] %vm306, %v305
    %v315 = vld [vmem:[#allocation0] sm:$0xf]
    %316 = vrot.lane.b32.xlu0 %v315, 102
    %v317 = vpop.permute.xlu0 %316
    %vm318 = vcmask 7168
    %s319 = scalar_lea.vmem %s1, 26
    %320 = vst.msk [vmem:[%s319] sm:$0x1] %vm318, %v317
    %s321 = scalar_lea.vmem %s1, 57
    %322 = vst.msk [vmem:[%s321] sm:$0x2] %vm318, %v317
    %s323 = scalar_lea.vmem %s1, 88
    %324 = vst.msk [vmem:[%s323] sm:$0x4] %vm318, %v317
    %s325 = scalar_lea.vmem %s1, 119
    %326 = vst.msk [vmem:[%s325] sm:$0x8] %vm318, %v317
    %v327 = vld [vmem:[#allocation0] sm:$0xf]
    %328 = vrot.lane.b32.xlu0 %v327, 101
    %v329 = vpop.permute.xlu0 %328
    %vm330 = vcmask 7168
    %s331 = scalar_lea.vmem %s1, 27
    %332 = vst.msk [vmem:[%s331] sm:$0x1] %vm330, %v329
    %s333 = scalar_lea.vmem %s1, 58
    %334 = vst.msk [vmem:[%s333] sm:$0x2] %vm330, %v329
    %s335 = scalar_lea.vmem %s1, 89
    %336 = vst.msk [vmem:[%s335] sm:$0x4] %vm330, %v329
    %s337 = scalar_lea.vmem %s1, 120
    %338 = vst.msk [vmem:[%s337] sm:$0x8] %vm330, %v329
    %v339 = vld [vmem:[#allocation0] sm:$0xf]
    %340 = vrot.lane.b32.xlu0 %v339, 100
    %v341 = vpop.permute.xlu0 %340
    %vm342 = vcmask 7168
    %s343 = scalar_lea.vmem %s1, 28
    %344 = vst.msk [vmem:[%s343] sm:$0x1] %vm342, %v341
    %s345 = scalar_lea.vmem %s1, 59
    %346 = vst.msk [vmem:[%s345] sm:$0x2] %vm342, %v341
    %s347 = scalar_lea.vmem %s1, 90
    %348 = vst.msk [vmem:[%s347] sm:$0x4] %vm342, %v341
    %s349 = scalar_lea.vmem %s1, 121
    %350 = vst.msk [vmem:[%s349] sm:$0x8] %vm342, %v341
    %v351 = vld [vmem:[#allocation0] sm:$0xf]
    %352 = vrot.lane.b32.xlu0 %v351, 99
    %v353 = vpop.permute.xlu0 %352
    %vm354 = vcmask 7168
    %s355 = scalar_lea.vmem %s1, 29
    %356 = vst.msk [vmem:[%s355] sm:$0x1] %vm354, %v353
    %s357 = scalar_lea.vmem %s1, 60
    %358 = vst.msk [vmem:[%s357] sm:$0x2] %vm354, %v353
    %s359 = scalar_lea.vmem %s1, 91
    %360 = vst.msk [vmem:[%s359] sm:$0x4] %vm354, %v353
    %s361 = scalar_lea.vmem %s1, 122
    %362 = vst.msk [vmem:[%s361] sm:$0x8] %vm354, %v353
    %v363 = vld [vmem:[#allocation0] sm:$0xf]
    %364 = vrot.lane.b32.xlu0 %v363, 98
    %v365 = vpop.permute.xlu0 %364
    %vm366 = vcmask 7168
    %s367 = scalar_lea.vmem %s1, 30
    %368 = vst.msk [vmem:[%s367] sm:$0x1] %vm366, %v365
    %s369 = scalar_lea.vmem %s1, 61
    %370 = vst.msk [vmem:[%s369] sm:$0x2] %vm366, %v365
    %s371 = scalar_lea.vmem %s1, 92
    %372 = vst.msk [vmem:[%s371] sm:$0x4] %vm366, %v365
    %s373 = scalar_lea.vmem %s1, 123
    %374 = vst.msk [vmem:[%s373] sm:$0x8] %vm366, %v365
    %v375 = vld [vmem:[#allocation0] sm:$0xf]
    %376 = vrot.lane.b32.xlu0 %v375, 97
    %v377 = vpop.permute.xlu0 %376
    %vm378 = vcmask 7168
    %s379 = scalar_lea.vmem %s1, 31
    %380 = vst.msk [vmem:[%s379] sm:$0x1] %vm378, %v377
    %s381 = scalar_lea.vmem %s1, 62
    %382 = vst.msk [vmem:[%s381] sm:$0x2] %vm378, %v377
    %s383 = scalar_lea.vmem %s1, 93
    %384 = vst.msk [vmem:[%s383] sm:$0x4] %vm378, %v377
    %s385 = scalar_lea.vmem %s1, 124
    %386 = vst.msk [vmem:[%s385] sm:$0x8] %vm378, %v377

// kernel: clstm_cell_forward.1
$region0: #{clstm_cell_forward.1}
  #allocation0 [shape = 'u32[]', space=smem, size = 0x4, offset = 0x4, fixed_abs, tag = 'smem constant byte address 0x4 - core index']
  #allocation1 [shape = 'u32[72,128]{1,0:T(1,128)}', space=vmem, size = 0x9000, scoped, tag = 'internal scratch']
  %s0 = inlined_call_operand.vmem [shape: f32[384,512], index: 0, kind: input, shape index: {}]
  %s1 = inlined_call_operand.vmem [shape: f32[128,384], index: 1, kind: input, shape index: {}]
  %s2 = inlined_call_operand.vmem [shape: f32[128,1], index: 2, kind: input, shape index: {}]
  %s3 = inlined_call_operand.vmem [shape: f32[128,1], index: 3, kind: input, shape index: {}]
  %s4 = inlined_call_operand.vmem [shape: f32[32,512], index: 4, kind: input, shape index: {}]
  %s5 = inlined_call_operand.vmem [shape: f32[32,512], index: 5, kind: output, shape index: {0}]
  %s6 = inlined_call_operand.vmem [shape: f32[32,512], index: 6, kind: output, shape index: {1}]
  %7 = xla_tuple %s5, %s6
  %s8 = sld [smem:[#allocation0]]
  $region38: #{clstm_cell_forward.1} parent=0
    _
  %s10 = ssub.s32 1, %s8
  %s11 = scalar_select 0, %s10, %s8
  // Predicated region
  $region2: #{clstm_cell_forward.1} parent=0 // pred_check
    _
  $region3: #{clstm_cell_forward.1} parent=0 // pred_check_branch
    %13 = sbr.rel (0) target = $region5
  $region4: #{clstm_cell_forward.1} parent=0 // pred_region
    _
  $region5: #{clstm_cell_forward.1} parent=0 // pred_fallthru
    _
  // Predicated region
  $region6: #{clstm_cell_forward.1} parent=0 // pred_check
    _
  $region7: #{clstm_cell_forward.1} parent=0 // pred_check_branch
    %15 = sbr.rel (0) target = $region9
  $region8: #{clstm_cell_forward.1} parent=0 // pred_region
    _
  $region9: #{clstm_cell_forward.1} parent=0 // pred_fallthru
    _
  // Predicated region
  $region10: #{clstm_cell_forward.1} parent=0 // pred_check
    _
  $region11: #{clstm_cell_forward.1} parent=0 // pred_check_branch
    %17 = sbr.rel (0) target = $region13
  $region12: #{clstm_cell_forward.1} parent=0 // pred_region
    _
  $region13: #{clstm_cell_forward.1} parent=0 // pred_fallthru
    _
  // Predicated region
  $region14: #{clstm_cell_forward.1} parent=0 // pred_check
    _
  $region15: #{clstm_cell_forward.1} parent=0 // pred_check_branch
    %19 = sbr.rel (0) target = $region17
  $region16: #{clstm_cell_forward.1} parent=0 // pred_region
    _
  $region17: #{clstm_cell_forward.1} parent=0 // pred_fallthru
    _
  // Predicated region
  $region18: #{clstm_cell_forward.1} parent=0 // pred_check
    _
  $region19: #{clstm_cell_forward.1} parent=0 // pred_check_branch
    %21 = sbr.rel (0) target = $region21
  $region20: #{clstm_cell_forward.1} parent=0 // pred_region
    _
  $region21: #{clstm_cell_forward.1} parent=0 // pred_fallthru
    _
  %v22 = vld [vmem:[%s1] sm:$0xff]
  %v23 = vld [vmem:[%s1 + $0x8] sm:$0xff]
  %v24 = vld [vmem:[%s1 + $0x10] sm:$0xff]
  %v25 = vld [vmem:[%s1 + $0x18] sm:$0xff]
  %v26 = vld [vmem:[%s1 + $0x20] sm:$0xff]
  %v27 = vld [vmem:[%s1 + $0x28] sm:$0xff]
  %v28 = vld [vmem:[%s1 + $0x30] sm:$0xff]
  %v29 = vld [vmem:[%s1 + $0x38] sm:$0xff]
  %v30 = vld [vmem:[%s1 + $0x40] sm:$0xff]
  %v31 = vld [vmem:[%s1 + $0x48] sm:$0xff]
  %v32 = vld [vmem:[%s1 + $0x50] sm:$0xff]
  %v33 = vld [vmem:[%s1 + $0x58] sm:$0xff]
  %v34 = vld [vmem:[%s1 + $0x60] sm:$0xff]
  %v35 = vld [vmem:[%s1 + $0x68] sm:$0xff]
  %v36 = vld [vmem:[%s1 + $0x70] sm:$0xff]
  %v37 = vld [vmem:[%s1 + $0x78] sm:$0xff]
  %v38 = vld [vmem:[%s1 + $0x80] sm:$0xff]
  %v39 = vld [vmem:[%s1 + $0x88] sm:$0xff]
  %v40 = vld [vmem:[%s1 + $0x90] sm:$0xff]
  %v41 = vld [vmem:[%s1 + $0x98] sm:$0xff]
  %v42 = vld [vmem:[%s1 + $0xa0] sm:$0xff]
  %v43 = vld [vmem:[%s1 + $0xa8] sm:$0xff]
  %v44 = vld [vmem:[%s1 + $0xb0] sm:$0xff]
  %v45 = vld [vmem:[%s1 + $0xb8] sm:$0xff]
  %v46 = vld [vmem:[%s1 + $0xc0] sm:$0xff]
  %v47 = vld [vmem:[%s1 + $0xc8] sm:$0xff]
  %v48 = vld [vmem:[%s1 + $0xd0] sm:$0xff]
  %v49 = vld [vmem:[%s1 + $0xd8] sm:$0xff]
  %v50 = vld [vmem:[%s1 + $0xe0] sm:$0xff]
  %v51 = vld [vmem:[%s1 + $0xe8] sm:$0xff]
  %v52 = vld [vmem:[%s1 + $0xf0] sm:$0xff]
  %v53 = vld [vmem:[%s1 + $0xf8] sm:$0xff]
  %v54 = vld [vmem:[%s1 + $0x100] sm:$0xff]
  %v55 = vld [vmem:[%s1 + $0x108] sm:$0xff]
  %v56 = vld [vmem:[%s1 + $0x110] sm:$0xff]
  %v57 = vld [vmem:[%s1 + $0x118] sm:$0xff]
  %v58 = vld [vmem:[%s1 + $0x120] sm:$0xff]
  %v59 = vld [vmem:[%s1 + $0x128] sm:$0xff]
  %v60 = vld [vmem:[%s1 + $0x130] sm:$0xff]
  %v61 = vld [vmem:[%s1 + $0x138] sm:$0xff]
  %v62 = vld [vmem:[%s1 + $0x140] sm:$0xff]
  %v63 = vld [vmem:[%s1 + $0x148] sm:$0xff]
  %v64 = vld [vmem:[%s1 + $0x150] sm:$0xff]
  %v65 = vld [vmem:[%s1 + $0x158] sm:$0xff]
  %v66 = vld [vmem:[%s1 + $0x160] sm:$0xff]
  %v67 = vld [vmem:[%s1 + $0x168] sm:$0xff]
  %v68 = vld [vmem:[%s1 + $0x170] sm:$0xff]
  %v69 = vld [vmem:[%s1 + $0x178] sm:$0xff]
  %v70 = vld [vmem:[%s0] sm:$0xff]
  %v71 = vld [vmem:[%s0 + $0x8] sm:$0xff]
  %v72 = vld [vmem:[%s0 + $0x10] sm:$0xff]
  %v73 = vld [vmem:[%s0 + $0x18] sm:$0xff]
  %v74 = vld [vmem:[%s0 + $0x20] sm:$0xff]
  %v75 = vld [vmem:[%s0 + $0x28] sm:$0xff]
  %v76 = vld [vmem:[%s0 + $0x30] sm:$0xff]
  %v77 = vld [vmem:[%s0 + $0x38] sm:$0xff]
  %v78 = vld [vmem:[%s0 + $0x40] sm:$0xff]
  %v79 = vld [vmem:[%s0 + $0x48] sm:$0xff]
  %v80 = vld [vmem:[%s0 + $0x50] sm:$0xff]
  %v81 = vld [vmem:[%s0 + $0x58] sm:$0xff]
  %v82 = vld [vmem:[%s0 + $0x60] sm:$0xff]
  %v83 = vld [vmem:[%s0 + $0x68] sm:$0xff]
  %v84 = vld [vmem:[%s0 + $0x70] sm:$0xff]
  %v85 = vld [vmem:[%s0 + $0x78] sm:$0xff]
  %v86 = vld [vmem:[%s0 + $0x80] sm:$0xff]
  %v87 = vld [vmem:[%s0 + $0x88] sm:$0xff]
  %v88 = vld [vmem:[%s0 + $0x90] sm:$0xff]
  %v89 = vld [vmem:[%s0 + $0x98] sm:$0xff]
  %v90 = vld [vmem:[%s0 + $0xa0] sm:$0xff]
  %v91 = vld [vmem:[%s0 + $0xa8] sm:$0xff]
  %v92 = vld [vmem:[%s0 + $0xb0] sm:$0xff]
  %v93 = vld [vmem:[%s0 + $0xb8] sm:$0xff]
  %v94 = vld [vmem:[%s0 + $0xc0] sm:$0xff]
  %v95 = vld [vmem:[%s0 + $0xc8] sm:$0xff]
  %v96 = vld [vmem:[%s0 + $0xd0] sm:$0xff]
  %v97 = vld [vmem:[%s0 + $0xd8] sm:$0xff]
  %v98 = vld [vmem:[%s0 + $0xe0] sm:$0xff]
  %v99 = vld [vmem:[%s0 + $0xe8] sm:$0xff]
  %v100 = vld [vmem:[%s0 + $0xf0] sm:$0xff]
  %v101 = vld [vmem:[%s0 + $0xf8] sm:$0xff]
  %v102 = vld [vmem:[%s0 + $0x100] sm:$0xff]
  %v103 = vld [vmem:[%s0 + $0x108] sm:$0xff]
  %v104 = vld [vmem:[%s0 + $0x110] sm:$0xff]
  %v105 = vld [vmem:[%s0 + $0x118] sm:$0xff]
  %v106 = vld [vmem:[%s0 + $0x120] sm:$0xff]
  %v107 = vld [vmem:[%s0 + $0x128] sm:$0xff]
  %v108 = vld [vmem:[%s0 + $0x130] sm:$0xff]
  %v109 = vld [vmem:[%s0 + $0x138] sm:$0xff]
  %v110 = vld [vmem:[%s0 + $0x140] sm:$0xff]
  %v111 = vld [vmem:[%s0 + $0x148] sm:$0xff]
  %v112 = vld [vmem:[%s0 + $0x150] sm:$0xff]
  %v113 = vld [vmem:[%s0 + $0x158] sm:$0xff]
  %v114 = vld [vmem:[%s0 + $0x160] sm:$0xff]
  %v115 = vld [vmem:[%s0 + $0x168] sm:$0xff]
  %v116 = vld [vmem:[%s0 + $0x170] sm:$0xff]
  %v117 = vld [vmem:[%s0 + $0x178] sm:$0xff]
  %v118 = vld [vmem:[%s0 + $0x180] sm:$0xff]
  %v119 = vld [vmem:[%s0 + $0x188] sm:$0xff]
  %v120 = vld [vmem:[%s0 + $0x190] sm:$0xff]
  %v121 = vld [vmem:[%s0 + $0x198] sm:$0xff]
  %v122 = vld [vmem:[%s0 + $0x1a0] sm:$0xff]
  %v123 = vld [vmem:[%s0 + $0x1a8] sm:$0xff]
  %v124 = vld [vmem:[%s0 + $0x1b0] sm:$0xff]
  %v125 = vld [vmem:[%s0 + $0x1b8] sm:$0xff]
  %v126 = vld [vmem:[%s0 + $0x1c0] sm:$0xff]
  %v127 = vld [vmem:[%s0 + $0x1c8] sm:$0xff]
  %v128 = vld [vmem:[%s0 + $0x1d0] sm:$0xff]
  %v129 = vld [vmem:[%s0 + $0x1d8] sm:$0xff]
  %v130 = vld [vmem:[%s0 + $0x1e0] sm:$0xff]
  %v131 = vld [vmem:[%s0 + $0x1e8] sm:$0xff]
  %v132 = vld [vmem:[%s0 + $0x1f0] sm:$0xff]
  %v133 = vld [vmem:[%s0 + $0x1f8] sm:$0xff]
  %v134 = vld [vmem:[%s0 + $0x200] sm:$0xff]
  %v135 = vld [vmem:[%s0 + $0x208] sm:$0xff]
  %v136 = vld [vmem:[%s0 + $0x210] sm:$0xff]
  %v137 = vld [vmem:[%s0 + $0x218] sm:$0xff]
  %v138 = vld [vmem:[%s0 + $0x220] sm:$0xff]
  %v139 = vld [vmem:[%s0 + $0x228] sm:$0xff]
  %v140 = vld [vmem:[%s0 + $0x230] sm:$0xff]
  %v141 = vld [vmem:[%s0 + $0x238] sm:$0xff]
  %v142 = vld [vmem:[%s0 + $0x240] sm:$0xff]
  %v143 = vld [vmem:[%s0 + $0x248] sm:$0xff]
  %v144 = vld [vmem:[%s0 + $0x250] sm:$0xff]
  %v145 = vld [vmem:[%s0 + $0x258] sm:$0xff]
  %v146 = vld [vmem:[%s0 + $0x260] sm:$0xff]
  %v147 = vld [vmem:[%s0 + $0x268] sm:$0xff]
  %v148 = vld [vmem:[%s0 + $0x270] sm:$0xff]
  %v149 = vld [vmem:[%s0 + $0x278] sm:$0xff]
  %v150 = vld [vmem:[%s0 + $0x280] sm:$0xff]
  %v151 = vld [vmem:[%s0 + $0x288] sm:$0xff]
  %v152 = vld [vmem:[%s0 + $0x290] sm:$0xff]
  %v153 = vld [vmem:[%s0 + $0x298] sm:$0xff]
  %v154 = vld [vmem:[%s0 + $0x2a0] sm:$0xff]
  %v155 = vld [vmem:[%s0 + $0x2a8] sm:$0xff]
  %v156 = vld [vmem:[%s0 + $0x2b0] sm:$0xff]
  %v157 = vld [vmem:[%s0 + $0x2b8] sm:$0xff]
  %v158 = vld [vmem:[%s0 + $0x2c0] sm:$0xff]
  %v159 = vld [vmem:[%s0 + $0x2c8] sm:$0xff]
  %v160 = vld [vmem:[%s0 + $0x2d0] sm:$0xff]
  %v161 = vld [vmem:[%s0 + $0x2d8] sm:$0xff]
  %v162 = vld [vmem:[%s0 + $0x2e0] sm:$0xff]
  %v163 = vld [vmem:[%s0 + $0x2e8] sm:$0xff]
  %v164 = vld [vmem:[%s0 + $0x2f0] sm:$0xff]
  %v165 = vld [vmem:[%s0 + $0x2f8] sm:$0xff]
  %v166 = vld [vmem:[%s0 + $0x300] sm:$0xff]
  %v167 = vld [vmem:[%s0 + $0x308] sm:$0xff]
  %v168 = vld [vmem:[%s0 + $0x310] sm:$0xff]
  %v169 = vld [vmem:[%s0 + $0x318] sm:$0xff]
  %v170 = vld [vmem:[%s0 + $0x320] sm:$0xff]
  %v171 = vld [vmem:[%s0 + $0x328] sm:$0xff]
  %v172 = vld [vmem:[%s0 + $0x330] sm:$0xff]
  %v173 = vld [vmem:[%s0 + $0x338] sm:$0xff]
  %v174 = vld [vmem:[%s0 + $0x340] sm:$0xff]
  %v175 = vld [vmem:[%s0 + $0x348] sm:$0xff]
  %v176 = vld [vmem:[%s0 + $0x350] sm:$0xff]
  %v177 = vld [vmem:[%s0 + $0x358] sm:$0xff]
  %v178 = vld [vmem:[%s0 + $0x360] sm:$0xff]
  %v179 = vld [vmem:[%s0 + $0x368] sm:$0xff]
  %v180 = vld [vmem:[%s0 + $0x370] sm:$0xff]
  %v181 = vld [vmem:[%s0 + $0x378] sm:$0xff]
  %v182 = vld [vmem:[%s0 + $0x380] sm:$0xff]
  %v183 = vld [vmem:[%s0 + $0x388] sm:$0xff]
  %v184 = vld [vmem:[%s0 + $0x390] sm:$0xff]
  %v185 = vld [vmem:[%s0 + $0x398] sm:$0xff]
  %v186 = vld [vmem:[%s0 + $0x3a0] sm:$0xff]
  %v187 = vld [vmem:[%s0 + $0x3a8] sm:$0xff]
  %v188 = vld [vmem:[%s0 + $0x3b0] sm:$0xff]
  %v189 = vld [vmem:[%s0 + $0x3b8] sm:$0xff]
  %v190 = vld [vmem:[%s0 + $0x3c0] sm:$0xff]
  %v191 = vld [vmem:[%s0 + $0x3c8] sm:$0xff]
  %v192 = vld [vmem:[%s0 + $0x3d0] sm:$0xff]
  %v193 = vld [vmem:[%s0 + $0x3d8] sm:$0xff]
  %v194 = vld [vmem:[%s0 + $0x3e0] sm:$0xff]
  %v195 = vld [vmem:[%s0 + $0x3e8] sm:$0xff]
  %v196 = vld [vmem:[%s0 + $0x3f0] sm:$0xff]
  %v197 = vld [vmem:[%s0 + $0x3f8] sm:$0xff]
  %v198 = vld [vmem:[%s0 + $0x400] sm:$0xff]
  %v199 = vld [vmem:[%s0 + $0x408] sm:$0xff]
  %v200 = vld [vmem:[%s0 + $0x410] sm:$0xff]
  %v201 = vld [vmem:[%s0 + $0x418] sm:$0xff]
  %v202 = vld [vmem:[%s0 + $0x420] sm:$0xff]
  %v203 = vld [vmem:[%s0 + $0x428] sm:$0xff]
  %v204 = vld [vmem:[%s0 + $0x430] sm:$0xff]
  %v205 = vld [vmem:[%s0 + $0x438] sm:$0xff]
  %v206 = vld [vmem:[%s0 + $0x440] sm:$0xff]
  %v207 = vld [vmem:[%s0 + $0x448] sm:$0xff]
  %v208 = vld [vmem:[%s0 + $0x450] sm:$0xff]
  %v209 = vld [vmem:[%s0 + $0x458] sm:$0xff]
  %v210 = vld [vmem:[%s0 + $0x460] sm:$0xff]
  %v211 = vld [vmem:[%s0 + $0x468] sm:$0xff]
  %v212 = vld [vmem:[%s0 + $0x470] sm:$0xff]
  %v213 = vld [vmem:[%s0 + $0x478] sm:$0xff]
  %v214 = vld [vmem:[%s0 + $0x480] sm:$0xff]
  %v215 = vld [vmem:[%s0 + $0x488] sm:$0xff]
  %v216 = vld [vmem:[%s0 + $0x490] sm:$0xff]
  %v217 = vld [vmem:[%s0 + $0x498] sm:$0xff]
  %v218 = vld [vmem:[%s0 + $0x4a0] sm:$0xff]
  %v219 = vld [vmem:[%s0 + $0x4a8] sm:$0xff]
  %v220 = vld [vmem:[%s0 + $0x4b0] sm:$0xff]
  %v221 = vld [vmem:[%s0 + $0x4b8] sm:$0xff]
  %v222 = vld [vmem:[%s0 + $0x4c0] sm:$0xff]
  %v223 = vld [vmem:[%s0 + $0x4c8] sm:$0xff]
  %v224 = vld [vmem:[%s0 + $0x4d0] sm:$0xff]
  %v225 = vld [vmem:[%s0 + $0x4d8] sm:$0xff]
  %v226 = vld [vmem:[%s0 + $0x4e0] sm:$0xff]
  %v227 = vld [vmem:[%s0 + $0x4e8] sm:$0xff]
  %v228 = vld [vmem:[%s0 + $0x4f0] sm:$0xff]
  %v229 = vld [vmem:[%s0 + $0x4f8] sm:$0xff]
  %v230 = vld [vmem:[%s0 + $0x500] sm:$0xff]
  %v231 = vld [vmem:[%s0 + $0x508] sm:$0xff]
  %v232 = vld [vmem:[%s0 + $0x510] sm:$0xff]
  %v233 = vld [vmem:[%s0 + $0x518] sm:$0xff]
  %v234 = vld [vmem:[%s0 + $0x520] sm:$0xff]
  %v235 = vld [vmem:[%s0 + $0x528] sm:$0xff]
  %v236 = vld [vmem:[%s0 + $0x530] sm:$0xff]
  %v237 = vld [vmem:[%s0 + $0x538] sm:$0xff]
  %v238 = vld [vmem:[%s0 + $0x540] sm:$0xff]
  %v239 = vld [vmem:[%s0 + $0x548] sm:$0xff]
  %v240 = vld [vmem:[%s0 + $0x550] sm:$0xff]
  %v241 = vld [vmem:[%s0 + $0x558] sm:$0xff]
  %v242 = vld [vmem:[%s0 + $0x560] sm:$0xff]
  %v243 = vld [vmem:[%s0 + $0x568] sm:$0xff]
  %v244 = vld [vmem:[%s0 + $0x570] sm:$0xff]
  %v245 = vld [vmem:[%s0 + $0x578] sm:$0xff]
  %v246 = vld [vmem:[%s0 + $0x580] sm:$0xff]
  %v247 = vld [vmem:[%s0 + $0x588] sm:$0xff]
  %v248 = vld [vmem:[%s0 + $0x590] sm:$0xff]
  %v249 = vld [vmem:[%s0 + $0x598] sm:$0xff]
  %v250 = vld [vmem:[%s0 + $0x5a0] sm:$0xff]
  %v251 = vld [vmem:[%s0 + $0x5a8] sm:$0xff]
  %v252 = vld [vmem:[%s0 + $0x5b0] sm:$0xff]
  %v253 = vld [vmem:[%s0 + $0x5b8] sm:$0xff]
  %v254 = vld [vmem:[%s0 + $0x5c0] sm:$0xff]
  %v255 = vld [vmem:[%s0 + $0x5c8] sm:$0xff]
  %v256 = vld [vmem:[%s0 + $0x5d0] sm:$0xff]
  %v257 = vld [vmem:[%s0 + $0x5d8] sm:$0xff]
  %v258 = vld [vmem:[%s0 + $0x5e0] sm:$0xff]
  %v259 = vld [vmem:[%s0 + $0x5e8] sm:$0xff]
  %v260 = vld [vmem:[%s0 + $0x5f0] sm:$0xff]
  %v261 = vld [vmem:[%s0 + $0x5f8] sm:$0xff]
  %262 = vmatpush.msra.mxu0 %v130
  %263 = vmatpush.msra.mxu0 %v126
  %264 = vmatpush.msra.mxu0 %v122
  %265 = vmatpush.msra.mxu0 %v118
  %266 = vmatpush.msra.mxu0 %v114
  %267 = vmatpush.msra.mxu0 %v110
  %268 = vmatpush.msra.mxu0 %v106
  %269 = vmatpush.msra.mxu0 %v102
  %270 = vmatpush.msra.mxu0 %v98
  %271 = vmatpush.msra.mxu0 %v94
  %272 = vmatpush.msra.mxu0 %v90
  %273 = vmatpush.msra.mxu0 %v86
  %274 = vmatpush.msra.mxu0 %v82
  %275 = vmatpush.msra.mxu0 %v78
  %276 = vmatpush.msra.mxu0 %v74
  %277 = vmatpush.msra.mxu0 %v70
  %278 = vmatmul.f32.gmra.mxu0 %v22
  %v279 = vpop.f32.mrf.mxu0
  %v280 = vadd.f32 0.0, %v279
  %281 = vmatmul.f32.gmra.mxu0 %v25
  %v282 = vpop.f32.mrf.mxu0
  %v283 = vadd.f32 0.0, %v282
  %284 = vmatmul.f32.gmra.mxu0 %v28
  %v285 = vpop.f32.mrf.mxu0
  %v286 = vadd.f32 0.0, %v285
  %287 = vmatmul.f32.gmra.mxu0 %v31
  %v288 = vpop.f32.mrf.mxu0
  %v289 = vadd.f32 0.0, %v288
  %290 = vmatmul.f32.gmra.mxu0 %v34
  %v291 = vpop.f32.mrf.mxu0
  %v292 = vadd.f32 0.0, %v291
  %293 = vmatmul.f32.gmra.mxu0 %v37
  %v294 = vpop.f32.mrf.mxu0
  %v295 = vadd.f32 0.0, %v294
  %296 = vmatmul.f32.gmra.mxu0 %v40
  %v297 = vpop.f32.mrf.mxu0
  %v298 = vadd.f32 0.0, %v297
  %299 = vmatmul.f32.gmra.mxu0 %v43
  %v300 = vpop.f32.mrf.mxu0
  %v301 = vadd.f32 0.0, %v300
  %302 = vmatmul.f32.gmra.mxu0 %v46
  %v303 = vpop.f32.mrf.mxu0
  %v304 = vadd.f32 0.0, %v303
  %305 = vmatmul.f32.gmra.mxu0 %v49
  %v306 = vpop.f32.mrf.mxu0
  %v307 = vadd.f32 0.0, %v306
  %308 = vmatmul.f32.gmra.mxu0 %v52
  %v309 = vpop.f32.mrf.mxu0
  %v310 = vadd.f32 0.0, %v309
  %311 = vmatmul.f32.gmra.mxu0 %v55
  %v312 = vpop.f32.mrf.mxu0
  %v313 = vadd.f32 0.0, %v312
  %314 = vmatmul.f32.gmra.mxu0 %v58
  %v315 = vpop.f32.mrf.mxu0
  %v316 = vadd.f32 0.0, %v315
  %317 = vmatmul.f32.gmra.mxu0 %v61
  %v318 = vpop.f32.mrf.mxu0
  %v319 = vadd.f32 0.0, %v318
  %320 = vmatmul.f32.gmra.mxu0 %v64
  %v321 = vpop.f32.mrf.mxu0
  %v322 = vadd.f32 0.0, %v321
  %323 = vmatmul.f32.gmra.mxu0 %v67
  %v324 = vpop.f32.mrf.mxu0
  %v325 = vadd.f32 0.0, %v324
  %326 = vdwg.mxu0
  %327 = vmatpush.msra.mxu0 %v194
  %328 = vmatpush.msra.mxu0 %v190
  %329 = vmatpush.msra.mxu0 %v186
  %330 = vmatpush.msra.mxu0 %v182
  %331 = vmatpush.msra.mxu0 %v178
  %332 = vmatpush.msra.mxu0 %v174
  %333 = vmatpush.msra.mxu0 %v170
  %334 = vmatpush.msra.mxu0 %v166
  %335 = vmatpush.msra.mxu0 %v162
  %336 = vmatpush.msra.mxu0 %v158
  %337 = vmatpush.msra.mxu0 %v154
  %338 = vmatpush.msra.mxu0 %v150
  %339 = vmatpush.msra.mxu0 %v146
  %340 = vmatpush.msra.mxu0 %v142
  %341 = vmatpush.msra.mxu0 %v138
  %342 = vmatpush.msra.mxu0 %v134
  %343 = vmatmul.f32.gmra.mxu0 %v23
  %v344 = vpop.f32.mrf.mxu0
  %v345 = vadd.f32 %v280, %v344
  %346 = vmatmul.f32.gmra.mxu0 %v26
  %v347 = vpop.f32.mrf.mxu0
  %v348 = vadd.f32 %v283, %v347
  %349 = vmatmul.f32.gmra.mxu0 %v29
  %v350 = vpop.f32.mrf.mxu0
  %v351 = vadd.f32 %v286, %v350
  %352 = vmatmul.f32.gmra.mxu0 %v32
  %v353 = vpop.f32.mrf.mxu0
  %v354 = vadd.f32 %v289, %v353
  %355 = vmatmul.f32.gmra.mxu0 %v35
  %v356 = vpop.f32.mrf.mxu0
  %v357 = vadd.f32 %v292, %v356
  %358 = vmatmul.f32.gmra.mxu0 %v38
  %v359 = vpop.f32.mrf.mxu0
  %v360 = vadd.f32 %v295, %v359
  %361 = vmatmul.f32.gmra.mxu0 %v41
  %v362 = vpop.f32.mrf.mxu0
  %v363 = vadd.f32 %v298, %v362
  %364 = vmatmul.f32.gmra.mxu0 %v44
  %v365 = vpop.f32.mrf.mxu0
  %v366 = vadd.f32 %v301, %v365
  %367 = vmatmul.f32.gmra.mxu0 %v47
  %v368 = vpop.f32.mrf.mxu0
  %v369 = vadd.f32 %v304, %v368
  %370 = vmatmul.f32.gmra.mxu0 %v50
  %v371 = vpop.f32.mrf.mxu0
  %v372 = vadd.f32 %v307, %v371
  %373 = vmatmul.f32.gmra.mxu0 %v53
  %v374 = vpop.f32.mrf.mxu0
  %v375 = vadd.f32 %v310, %v374
  %376 = vmatmul.f32.gmra.mxu0 %v56
  %v377 = vpop.f32.mrf.mxu0
  %v378 = vadd.f32 %v313, %v377
  %379 = vmatmul.f32.gmra.mxu0 %v59
  %v380 = vpop.f32.mrf.mxu0
  %v381 = vadd.f32 %v316, %v380
  %382 = vmatmul.f32.gmra.mxu0 %v62
  %v383 = vpop.f32.mrf.mxu0
  %v384 = vadd.f32 %v319, %v383
  %385 = vmatmul.f32.gmra.mxu0 %v65
  %v386 = vpop.f32.mrf.mxu0
  %v387 = vadd.f32 %v322, %v386
  %388 = vmatmul.f32.gmra.mxu0 %v68
  %v389 = vpop.f32.mrf.mxu0
  %v390 = vadd.f32 %v325, %v389
  %391 = vdwg.mxu0
  %392 = vmatpush.msra.mxu0 %v258
  %393 = vmatpush.msra.mxu0 %v254
  %394 = vmatpush.msra.mxu0 %v250
  %395 = vmatpush.msra.mxu0 %v246
  %396 = vmatpush.msra.mxu0 %v242
  %397 = vmatpush.msra.mxu0 %v238
  %398 = vmatpush.msra.mxu0 %v234
  %399 = vmatpush.msra.mxu0 %v230
  %400 = vmatpush.msra.mxu0 %v226
  %401 = vmatpush.msra.mxu0 %v222
  %402 = vmatpush.msra.mxu0 %v218
  %403 = vmatpush.msra.mxu0 %v214
  %404 = vmatpush.msra.mxu0 %v210
  %405 = vmatpush.msra.mxu0 %v206
  %406 = vmatpush.msra.mxu0 %v202
  %407 = vmatpush.msra.mxu0 %v198
  %408 = vmatmul.f32.gmra.mxu0 %v24
  %v409 = vpop.f32.mrf.mxu0
  %v410 = vadd.f32 %v345, %v409
  %411 = vmatmul.f32.gmra.mxu0 %v27
  %v412 = vpop.f32.mrf.mxu0
  %v413 = vadd.f32 %v348, %v412
  %414 = vmatmul.f32.gmra.mxu0 %v30
  %v415 = vpop.f32.mrf.mxu0
  %v416 = vadd.f32 %v351, %v415
  %417 = vmatmul.f32.gmra.mxu0 %v33
  %v418 = vpop.f32.mrf.mxu0
  %v419 = vadd.f32 %v354, %v418
  %420 = vmatmul.f32.gmra.mxu0 %v36
  %v421 = vpop.f32.mrf.mxu0
  %v422 = vadd.f32 %v357, %v421
  %423 = vmatmul.f32.gmra.mxu0 %v39
  %v424 = vpop.f32.mrf.mxu0
  %v425 = vadd.f32 %v360, %v424
  %426 = vmatmul.f32.gmra.mxu0 %v42
  %v427 = vpop.f32.mrf.mxu0
  %v428 = vadd.f32 %v363, %v427
  %429 = vmatmul.f32.gmra.mxu0 %v45
  %v430 = vpop.f32.mrf.mxu0
  %v431 = vadd.f32 %v366, %v430
  %432 = vmatmul.f32.gmra.mxu0 %v48
  %v433 = vpop.f32.mrf.mxu0
  %v434 = vadd.f32 %v369, %v433
  %435 = vmatmul.f32.gmra.mxu0 %v51
  %v436 = vpop.f32.mrf.mxu0
  %v437 = vadd.f32 %v372, %v436
  %438 = vmatmul.f32.gmra.mxu0 %v54
  %v439 = vpop.f32.mrf.mxu0
  %v440 = vadd.f32 %v375, %v439
  %441 = vmatmul.f32.gmra.mxu0 %v57
  %v442 = vpop.f32.mrf.mxu0
  %v443 = vadd.f32 %v378, %v442
  %444 = vmatmul.f32.gmra.mxu0 %v60
  %v445 = vpop.f32.mrf.mxu0
  %v446 = vadd.f32 %v381, %v445
  %447 = vmatmul.f32.gmra.mxu0 %v63
  %v448 = vpop.f32.mrf.mxu0
  %v449 = vadd.f32 %v384, %v448
  %450 = vmatmul.f32.gmra.mxu0 %v66
  %v451 = vpop.f32.mrf.mxu0
  %v452 = vadd.f32 %v387, %v451
  %453 = vmatmul.f32.gmra.mxu0 %v69
  %v454 = vpop.f32.mrf.mxu0
  %v455 = vadd.f32 %v390, %v454
  %456 = vdwg.mxu0
  %457 = vmatpush.msra.mxu0 %v131
  %458 = vmatpush.msra.mxu0 %v127
  %459 = vmatpush.msra.mxu0 %v123
  %460 = vmatpush.msra.mxu0 %v119
  %461 = vmatpush.msra.mxu0 %v115
  %462 = vmatpush.msra.mxu0 %v111
  %463 = vmatpush.msra.mxu0 %v107
  %464 = vmatpush.msra.mxu0 %v103
  %465 = vmatpush.msra.mxu0 %v99
  %466 = vmatpush.msra.mxu0 %v95
  %467 = vmatpush.msra.mxu0 %v91
  %468 = vmatpush.msra.mxu0 %v87
  %469 = vmatpush.msra.mxu0 %v83
  %470 = vmatpush.msra.mxu0 %v79
  %471 = vmatpush.msra.mxu0 %v75
  %472 = vmatpush.msra.mxu0 %v71
  %473 = vmatmul.f32.gmra.mxu0 %v22
  %v474 = vpop.f32.mrf.mxu0
  %v475 = vadd.f32 0.0, %v474
  %476 = vmatmul.f32.gmra.mxu0 %v25
  %v477 = vpop.f32.mrf.mxu0
  %v478 = vadd.f32 0.0, %v477
  %479 = vmatmul.f32.gmra.mxu0 %v28
  %v480 = vpop.f32.mrf.mxu0
  %v481 = vadd.f32 0.0, %v480
  %482 = vmatmul.f32.gmra.mxu0 %v31
  %v483 = vpop.f32.mrf.mxu0
  %v484 = vadd.f32 0.0, %v483
  %485 = vmatmul.f32.gmra.mxu0 %v34
  %v486 = vpop.f32.mrf.mxu0
  %v487 = vadd.f32 0.0, %v486
  %488 = vmatmul.f32.gmra.mxu0 %v37
  %v489 = vpop.f32.mrf.mxu0
  %v490 = vadd.f32 0.0, %v489
  %491 = vmatmul.f32.gmra.mxu0 %v40
  %v492 = vpop.f32.mrf.mxu0
  %v493 = vadd.f32 0.0, %v492
  %494 = vmatmul.f32.gmra.mxu0 %v43
  %v495 = vpop.f32.mrf.mxu0
  %v496 = vadd.f32 0.0, %v495
  %497 = vmatmul.f32.gmra.mxu0 %v46
  %v498 = vpop.f32.mrf.mxu0
  %v499 = vadd.f32 0.0, %v498
  %500 = vmatmul.f32.gmra.mxu0 %v49
  %v501 = vpop.f32.mrf.mxu0
  %v502 = vadd.f32 0.0, %v501
  %503 = vmatmul.f32.gmra.mxu0 %v52
  %v504 = vpop.f32.mrf.mxu0
  %v505 = vadd.f32 0.0, %v504
  %506 = vmatmul.f32.gmra.mxu0 %v55
  %v507 = vpop.f32.mrf.mxu0
  %v508 = vadd.f32 0.0, %v507
  %509 = vmatmul.f32.gmra.mxu0 %v58
  %v510 = vpop.f32.mrf.mxu0
  %v511 = vadd.f32 0.0, %v510
  %512 = vmatmul.f32.gmra.mxu0 %v61
  %v513 = vpop.f32.mrf.mxu0
  %v514 = vadd.f32 0.0, %v513
  %515 = vmatmul.f32.gmra.mxu0 %v64
  %v516 = vpop.f32.mrf.mxu0
  %v517 = vadd.f32 0.0, %v516
  %518 = vmatmul.f32.gmra.mxu0 %v67
  %v519 = vpop.f32.mrf.mxu0
  %v520 = vadd.f32 0.0, %v519
  %521 = vdwg.mxu0
  %522 = vmatpush.msra.mxu0 %v195
  %523 = vmatpush.msra.mxu0 %v191
  %524 = vmatpush.msra.mxu0 %v187
  %525 = vmatpush.msra.mxu0 %v183
  %526 = vmatpush.msra.mxu0 %v179
  %527 = vmatpush.msra.mxu0 %v175
  %528 = vmatpush.msra.mxu0 %v171
  %529 = vmatpush.msra.mxu0 %v167
  %530 = vmatpush.msra.mxu0 %v163
  %531 = vmatpush.msra.mxu0 %v159
  %532 = vmatpush.msra.mxu0 %v155
  %533 = vmatpush.msra.mxu0 %v151
  %534 = vmatpush.msra.mxu0 %v147
  %535 = vmatpush.msra.mxu0 %v143
  %536 = vmatpush.msra.mxu0 %v139
  %537 = vmatpush.msra.mxu0 %v135
  %538 = vmatmul.f32.gmra.mxu0 %v23
  %v539 = vpop.f32.mrf.mxu0
  %v540 = vadd.f32 %v475, %v539
  %541 = vmatmul.f32.gmra.mxu0 %v26
  %v542 = vpop.f32.mrf.mxu0
  %v543 = vadd.f32 %v478, %v542
  %544 = vmatmul.f32.gmra.mxu0 %v29
  %v545 = vpop.f32.mrf.mxu0
  %v546 = vadd.f32 %v481, %v545
  %547 = vmatmul.f32.gmra.mxu0 %v32
  %v548 = vpop.f32.mrf.mxu0
  %v549 = vadd.f32 %v484, %v548
  %550 = vmatmul.f32.gmra.mxu0 %v35
  %v551 = vpop.f32.mrf.mxu0
  %v552 = vadd.f32 %v487, %v551
  %553 = vmatmul.f32.gmra.mxu0 %v38
  %v554 = vpop.f32.mrf.mxu0
  %v555 = vadd.f32 %v490, %v554
  %556 = vmatmul.f32.gmra.mxu0 %v41
  %v557 = vpop.f32.mrf.mxu0
  %v558 = vadd.f32 %v493, %v557
  %559 = vmatmul.f32.gmra.mxu0 %v44
  %v560 = vpop.f32.mrf.mxu0
  %v561 = vadd.f32 %v496, %v560
  %562 = vmatmul.f32.gmra.mxu0 %v47
  %v563 = vpop.f32.mrf.mxu0
  %v564 = vadd.f32 %v499, %v563
  %565 = vmatmul.f32.gmra.mxu0 %v50
  %v566 = vpop.f32.mrf.mxu0
  %v567 = vadd.f32 %v502, %v566
  %568 = vmatmul.f32.gmra.mxu0 %v53
  %v569 = vpop.f32.mrf.mxu0
  %v570 = vadd.f32 %v505, %v569
  %571 = vmatmul.f32.gmra.mxu0 %v56
  %v572 = vpop.f32.mrf.mxu0
  %v573 = vadd.f32 %v508, %v572
  %574 = vmatmul.f32.gmra.mxu0 %v59
  %v575 = vpop.f32.mrf.mxu0
  %v576 = vadd.f32 %v511, %v575
  %577 = vmatmul.f32.gmra.mxu0 %v62
  %v578 = vpop.f32.mrf.mxu0
  %v579 = vadd.f32 %v514, %v578
  %580 = vmatmul.f32.gmra.mxu0 %v65
  %v581 = vpop.f32.mrf.mxu0
  %v582 = vadd.f32 %v517, %v581
  %583 = vmatmul.f32.gmra.mxu0 %v68
  %v584 = vpop.f32.mrf.mxu0
  %v585 = vadd.f32 %v520, %v584
  %586 = vdwg.mxu0
  %587 = vmatpush.msra.mxu0 %v259
  %588 = vmatpush.msra.mxu0 %v255
  %589 = vmatpush.msra.mxu0 %v251
  %590 = vmatpush.msra.mxu0 %v247
  %591 = vmatpush.msra.mxu0 %v243
  %592 = vmatpush.msra.mxu0 %v239
  %593 = vmatpush.msra.mxu0 %v235
  %594 = vmatpush.msra.mxu0 %v231
  %595 = vmatpush.msra.mxu0 %v227
  %596 = vmatpush.msra.mxu0 %v223
  %597 = vmatpush.msra.mxu0 %v219
  %598 = vmatpush.msra.mxu0 %v215
  %599 = vmatpush.msra.mxu0 %v211
  %600 = vmatpush.msra.mxu0 %v207
  %601 = vmatpush.msra.mxu0 %v203
  %602 = vmatpush.msra.mxu0 %v199
  %603 = vmatmul.f32.gmra.mxu0 %v24
  %v604 = vpop.f32.mrf.mxu0
  %v605 = vadd.f32 %v540, %v604
  %606 = vmatmul.f32.gmra.mxu0 %v27
  %v607 = vpop.f32.mrf.mxu0
  %v608 = vadd.f32 %v543, %v607
  %609 = vmatmul.f32.gmra.mxu0 %v30
  %v610 = vpop.f32.mrf.mxu0
  %v611 = vadd.f32 %v546, %v610
  %612 = vmatmul.f32.gmra.mxu0 %v33
  %v613 = vpop.f32.mrf.mxu0
  %v614 = vadd.f32 %v549, %v613
  %615 = vmatmul.f32.gmra.mxu0 %v36
  %v616 = vpop.f32.mrf.mxu0
  %v617 = vadd.f32 %v552, %v616
  %618 = vmatmul.f32.gmra.mxu0 %v39
  %v619 = vpop.f32.mrf.mxu0
  %v620 = vadd.f32 %v555, %v619
  %621 = vmatmul.f32.gmra.mxu0 %v42
  %v622 = vpop.f32.mrf.mxu0
  %v623 = vadd.f32 %v558, %v622
  %624 = vmatmul.f32.gmra.mxu0 %v45
  %v625 = vpop.f32.mrf.mxu0
  %v626 = vadd.f32 %v561, %v625
  %627 = vmatmul.f32.gmra.mxu0 %v48
  %v628 = vpop.f32.mrf.mxu0
  %v629 = vadd.f32 %v564, %v628
  %630 = vmatmul.f32.gmra.mxu0 %v51
  %v631 = vpop.f32.mrf.mxu0
  %v632 = vadd.f32 %v567, %v631
  %633 = vmatmul.f32.gmra.mxu0 %v54
  %v634 = vpop.f32.mrf.mxu0
  %v635 = vadd.f32 %v570, %v634
  %636 = vmatmul.f32.gmra.mxu0 %v57
  %v637 = vpop.f32.mrf.mxu0
  %v638 = vadd.f32 %v573, %v637
  %639 = vmatmul.f32.gmra.mxu0 %v60
  %v640 = vpop.f32.mrf.mxu0
  %v641 = vadd.f32 %v576, %v640
  %642 = vmatmul.f32.gmra.mxu0 %v63
  %v643 = vpop.f32.mrf.mxu0
  %v644 = vadd.f32 %v579, %v643
  %645 = vmatmul.f32.gmra.mxu0 %v66
  %v646 = vpop.f32.mrf.mxu0
  %v647 = vadd.f32 %v582, %v646
  %648 = vmatmul.f32.gmra.mxu0 %v69
  %v649 = vpop.f32.mrf.mxu0
  %v650 = vadd.f32 %v585, %v649
  %651 = vdwg.mxu0
  %652 = vmatpush.msra.mxu0 %v132
  %653 = vmatpush.msra.mxu0 %v128
  %654 = vmatpush.msra.mxu0 %v124
  %655 = vmatpush.msra.mxu0 %v120
  %656 = vmatpush.msra.mxu0 %v116
  %657 = vmatpush.msra.mxu0 %v112
  %658 = vmatpush.msra.mxu0 %v108
  %659 = vmatpush.msra.mxu0 %v104
  %660 = vmatpush.msra.mxu0 %v100
  %661 = vmatpush.msra.mxu0 %v96
  %662 = vmatpush.msra.mxu0 %v92
  %663 = vmatpush.msra.mxu0 %v88
  %664 = vmatpush.msra.mxu0 %v84
  %665 = vmatpush.msra.mxu0 %v80
  %666 = vmatpush.msra.mxu0 %v76
  %667 = vmatpush.msra.mxu0 %v72
  %668 = vmatmul.f32.gmra.mxu0 %v22
  %v669 = vpop.f32.mrf.mxu0
  %v670 = vadd.f32 0.0, %v669
  %671 = vmatmul.f32.gmra.mxu0 %v25
  %v672 = vpop.f32.mrf.mxu0
  %v673 = vadd.f32 0.0, %v672
  %674 = vmatmul.f32.gmra.mxu0 %v28
  %v675 = vpop.f32.mrf.mxu0
  %v676 = vadd.f32 0.0, %v675
  %677 = vmatmul.f32.gmra.mxu0 %v31
  %v678 = vpop.f32.mrf.mxu0
  %v679 = vadd.f32 0.0, %v678
  %680 = vmatmul.f32.gmra.mxu0 %v34
  %v681 = vpop.f32.mrf.mxu0
  %v682 = vadd.f32 0.0, %v681
  %683 = vmatmul.f32.gmra.mxu0 %v37
  %v684 = vpop.f32.mrf.mxu0
  %v685 = vadd.f32 0.0, %v684
  %686 = vmatmul.f32.gmra.mxu0 %v40
  %v687 = vpop.f32.mrf.mxu0
  %v688 = vadd.f32 0.0, %v687
  %689 = vmatmul.f32.gmra.mxu0 %v43
  %v690 = vpop.f32.mrf.mxu0
  %v691 = vadd.f32 0.0, %v690
  %692 = vmatmul.f32.gmra.mxu0 %v46
  %v693 = vpop.f32.mrf.mxu0
  %v694 = vadd.f32 0.0, %v693
  %695 = vmatmul.f32.gmra.mxu0 %v49
  %v696 = vpop.f32.mrf.mxu0
  %v697 = vadd.f32 0.0, %v696
  %698 = vmatmul.f32.gmra.mxu0 %v52
  %v699 = vpop.f32.mrf.mxu0
  %v700 = vadd.f32 0.0, %v699
  %701 = vmatmul.f32.gmra.mxu0 %v55
  %v702 = vpop.f32.mrf.mxu0
  %v703 = vadd.f32 0.0, %v702
  %704 = vmatmul.f32.gmra.mxu0 %v58
  %v705 = vpop.f32.mrf.mxu0
  %v706 = vadd.f32 0.0, %v705
  %707 = vmatmul.f32.gmra.mxu0 %v61
  %v708 = vpop.f32.mrf.mxu0
  %v709 = vadd.f32 0.0, %v708
  %710 = vmatmul.f32.gmra.mxu0 %v64
  %v711 = vpop.f32.mrf.mxu0
  %v712 = vadd.f32 0.0, %v711
  %713 = vmatmul.f32.gmra.mxu0 %v67
  %v714 = vpop.f32.mrf.mxu0
  %v715 = vadd.f32 0.0, %v714
  %716 = vdwg.mxu0
  %717 = vmatpush.msra.mxu0 %v196
  %718 = vmatpush.msra.mxu0 %v192
  %719 = vmatpush.msra.mxu0 %v188
  %720 = vmatpush.msra.mxu0 %v184
  %721 = vmatpush.msra.mxu0 %v180
  %722 = vmatpush.msra.mxu0 %v176
  %723 = vmatpush.msra.mxu0 %v172
  %724 = vmatpush.msra.mxu0 %v168
  %725 = vmatpush.msra.mxu0 %v164
  %726 = vmatpush.msra.mxu0 %v160
  %727 = vmatpush.msra.mxu0 %v156
  %728 = vmatpush.msra.mxu0 %v152
  %729 = vmatpush.msra.mxu0 %v148
  %730 = vmatpush.msra.mxu0 %v144
  %731 = vmatpush.msra.mxu0 %v140
  %732 = vmatpush.msra.mxu0 %v136
  %733 = vmatmul.f32.gmra.mxu0 %v23
  %v734 = vpop.f32.mrf.mxu0
  %v735 = vadd.f32 %v670, %v734
  %736 = vmatmul.f32.gmra.mxu0 %v26
  %v737 = vpop.f32.mrf.mxu0
  %v738 = vadd.f32 %v673, %v737
  %739 = vmatmul.f32.gmra.mxu0 %v29
  %v740 = vpop.f32.mrf.mxu0
  %v741 = vadd.f32 %v676, %v740
  %742 = vmatmul.f32.gmra.mxu0 %v32
  %v743 = vpop.f32.mrf.mxu0
  %v744 = vadd.f32 %v679, %v743
  %745 = vmatmul.f32.gmra.mxu0 %v35
  %v746 = vpop.f32.mrf.mxu0
  %v747 = vadd.f32 %v682, %v746
  %748 = vmatmul.f32.gmra.mxu0 %v38
  %v749 = vpop.f32.mrf.mxu0
  %v750 = vadd.f32 %v685, %v749
  %751 = vmatmul.f32.gmra.mxu0 %v41
  %v752 = vpop.f32.mrf.mxu0
  %v753 = vadd.f32 %v688, %v752
  %754 = vmatmul.f32.gmra.mxu0 %v44
  %v755 = vpop.f32.mrf.mxu0
  %v756 = vadd.f32 %v691, %v755
  %757 = vmatmul.f32.gmra.mxu0 %v47
  %v758 = vpop.f32.mrf.mxu0
  %v759 = vadd.f32 %v694, %v758
  %760 = vmatmul.f32.gmra.mxu0 %v50
  %v761 = vpop.f32.mrf.mxu0
  %v762 = vadd.f32 %v697, %v761
  %763 = vmatmul.f32.gmra.mxu0 %v53
  %v764 = vpop.f32.mrf.mxu0
  %v765 = vadd.f32 %v700, %v764
  %766 = vmatmul.f32.gmra.mxu0 %v56
  %v767 = vpop.f32.mrf.mxu0
  %v768 = vadd.f32 %v703, %v767
  %769 = vmatmul.f32.gmra.mxu0 %v59
  %v770 = vpop.f32.mrf.mxu0
  %v771 = vadd.f32 %v706, %v770
  %772 = vmatmul.f32.gmra.mxu0 %v62
  %v773 = vpop.f32.mrf.mxu0
  %v774 = vadd.f32 %v709, %v773
  %775 = vmatmul.f32.gmra.mxu0 %v65
  %v776 = vpop.f32.mrf.mxu0
  %v777 = vadd.f32 %v712, %v776
  %778 = vmatmul.f32.gmra.mxu0 %v68
  %v779 = vpop.f32.mrf.mxu0
  %v780 = vadd.f32 %v715, %v779
  %781 = vdwg.mxu0
  %782 = vmatpush.msra.mxu0 %v260
  %783 = vmatpush.msra.mxu0 %v256
  %784 = vmatpush.msra.mxu0 %v252
  %785 = vmatpush.msra.mxu0 %v248
  %786 = vmatpush.msra.mxu0 %v244
  %787 = vmatpush.msra.mxu0 %v240
  %788 = vmatpush.msra.mxu0 %v236
  %789 = vmatpush.msra.mxu0 %v232
  %790 = vmatpush.msra.mxu0 %v228
  %791 = vmatpush.msra.mxu0 %v224
  %792 = vmatpush.msra.mxu0 %v220
  %793 = vmatpush.msra.mxu0 %v216
  %794 = vmatpush.msra.mxu0 %v212
  %795 = vmatpush.msra.mxu0 %v208
  %796 = vmatpush.msra.mxu0 %v204
  %797 = vmatpush.msra.mxu0 %v200
  %798 = vmatmul.f32.gmra.mxu0 %v24
  %v799 = vpop.f32.mrf.mxu0
  %v800 = vadd.f32 %v735, %v799
  %801 = vmatmul.f32.gmra.mxu0 %v27
  %v802 = vpop.f32.mrf.mxu0
  %v803 = vadd.f32 %v738, %v802
  %804 = vmatmul.f32.gmra.mxu0 %v30
  %v805 = vpop.f32.mrf.mxu0
  %v806 = vadd.f32 %v741, %v805
  %807 = vmatmul.f32.gmra.mxu0 %v33
  %v808 = vpop.f32.mrf.mxu0
  %v809 = vadd.f32 %v744, %v808
  %810 = vmatmul.f32.gmra.mxu0 %v36
  %v811 = vpop.f32.mrf.mxu0
  %v812 = vadd.f32 %v747, %v811
  %813 = vmatmul.f32.gmra.mxu0 %v39
  %v814 = vpop.f32.mrf.mxu0
  %v815 = vadd.f32 %v750, %v814
  %816 = vmatmul.f32.gmra.mxu0 %v42
  %v817 = vpop.f32.mrf.mxu0
  %v818 = vadd.f32 %v753, %v817
  %819 = vmatmul.f32.gmra.mxu0 %v45
  %v820 = vpop.f32.mrf.mxu0
  %v821 = vadd.f32 %v756, %v820
  %822 = vmatmul.f32.gmra.mxu0 %v48
  %v823 = vpop.f32.mrf.mxu0
  %v824 = vadd.f32 %v759, %v823
  %825 = vmatmul.f32.gmra.mxu0 %v51
  %v826 = vpop.f32.mrf.mxu0
  %v827 = vadd.f32 %v762, %v826
  %828 = vmatmul.f32.gmra.mxu0 %v54
  %v829 = vpop.f32.mrf.mxu0
  %v830 = vadd.f32 %v765, %v829
  %831 = vmatmul.f32.gmra.mxu0 %v57
  %v832 = vpop.f32.mrf.mxu0
  %v833 = vadd.f32 %v768, %v832
  %834 = vmatmul.f32.gmra.mxu0 %v60
  %v835 = vpop.f32.mrf.mxu0
  %v836 = vadd.f32 %v771, %v835
  %837 = vmatmul.f32.gmra.mxu0 %v63
  %v838 = vpop.f32.mrf.mxu0
  %v839 = vadd.f32 %v774, %v838
  %840 = vmatmul.f32.gmra.mxu0 %v66
  %v841 = vpop.f32.mrf.mxu0
  %v842 = vadd.f32 %v777, %v841
  %843 = vmatmul.f32.gmra.mxu0 %v69
  %v844 = vpop.f32.mrf.mxu0
  %v845 = vadd.f32 %v780, %v844
  %846 = vdwg.mxu0
  %847 = vmatpush.msra.mxu0 %v133
  %848 = vmatpush.msra.mxu0 %v129
  %849 = vmatpush.msra.mxu0 %v125
  %850 = vmatpush.msra.mxu0 %v121
  %851 = vmatpush.msra.mxu0 %v117
  %852 = vmatpush.msra.mxu0 %v113
  %853 = vmatpush.msra.mxu0 %v109
  %854 = vmatpush.msra.mxu0 %v105
  %855 = vmatpush.msra.mxu0 %v101
  %856 = vmatpush.msra.mxu0 %v97
  %857 = vmatpush.msra.mxu0 %v93
  %858 = vmatpush.msra.mxu0 %v89
  %859 = vmatpush.msra.mxu0 %v85
  %860 = vmatpush.msra.mxu0 %v81
  %861 = vmatpush.msra.mxu0 %v77
  %862 = vmatpush.msra.mxu0 %v73
  %863 = vmatmul.f32.gmra.mxu0 %v22
  %v864 = vpop.f32.mrf.mxu0
  %v865 = vadd.f32 0.0, %v864
  %866 = vmatmul.f32.gmra.mxu0 %v25
  %v867 = vpop.f32.mrf.mxu0
  %v868 = vadd.f32 0.0, %v867
  %869 = vmatmul.f32.gmra.mxu0 %v28
  %v870 = vpop.f32.mrf.mxu0
  %v871 = vadd.f32 0.0, %v870
  %872 = vmatmul.f32.gmra.mxu0 %v31
  %v873 = vpop.f32.mrf.mxu0
  %v874 = vadd.f32 0.0, %v873
  %875 = vmatmul.f32.gmra.mxu0 %v34
  %v876 = vpop.f32.mrf.mxu0
  %v877 = vadd.f32 0.0, %v876
  %878 = vmatmul.f32.gmra.mxu0 %v37
  %v879 = vpop.f32.mrf.mxu0
  %v880 = vadd.f32 0.0, %v879
  %881 = vmatmul.f32.gmra.mxu0 %v40
  %v882 = vpop.f32.mrf.mxu0
  %v883 = vadd.f32 0.0, %v882
  %884 = vmatmul.f32.gmra.mxu0 %v43
  %v885 = vpop.f32.mrf.mxu0
  %v886 = vadd.f32 0.0, %v885
  %887 = vmatmul.f32.gmra.mxu0 %v46
  %v888 = vpop.f32.mrf.mxu0
  %v889 = vadd.f32 0.0, %v888
  %890 = vmatmul.f32.gmra.mxu0 %v49
  %v891 = vpop.f32.mrf.mxu0
  %v892 = vadd.f32 0.0, %v891
  %893 = vmatmul.f32.gmra.mxu0 %v52
  %v894 = vpop.f32.mrf.mxu0
  %v895 = vadd.f32 0.0, %v894
  %896 = vmatmul.f32.gmra.mxu0 %v55
  %v897 = vpop.f32.mrf.mxu0
  %v898 = vadd.f32 0.0, %v897
  %899 = vmatmul.f32.gmra.mxu0 %v58
  %v900 = vpop.f32.mrf.mxu0
  %v901 = vadd.f32 0.0, %v900
  %902 = vmatmul.f32.gmra.mxu0 %v61
  %v903 = vpop.f32.mrf.mxu0
  %v904 = vadd.f32 0.0, %v903
  %905 = vmatmul.f32.gmra.mxu0 %v64
  %v906 = vpop.f32.mrf.mxu0
  %v907 = vadd.f32 0.0, %v906
  %908 = vmatmul.f32.gmra.mxu0 %v67
  %v909 = vpop.f32.mrf.mxu0
  %v910 = vadd.f32 0.0, %v909
  %911 = vdwg.mxu0
  %912 = vmatpush.msra.mxu0 %v197
  %913 = vmatpush.msra.mxu0 %v193
  %914 = vmatpush.msra.mxu0 %v189
  %915 = vmatpush.msra.mxu0 %v185
  %916 = vmatpush.msra.mxu0 %v181
  %917 = vmatpush.msra.mxu0 %v177
  %918 = vmatpush.msra.mxu0 %v173
  %919 = vmatpush.msra.mxu0 %v169
  %920 = vmatpush.msra.mxu0 %v165
  %921 = vmatpush.msra.mxu0 %v161
  %922 = vmatpush.msra.mxu0 %v157
  %923 = vmatpush.msra.mxu0 %v153
  %924 = vmatpush.msra.mxu0 %v149
  %925 = vmatpush.msra.mxu0 %v145
  %926 = vmatpush.msra.mxu0 %v141
  %927 = vmatpush.msra.mxu0 %v137
  %928 = vmatmul.f32.gmra.mxu0 %v23
  %v929 = vpop.f32.mrf.mxu0
  %v930 = vadd.f32 %v865, %v929
  %931 = vmatmul.f32.gmra.mxu0 %v26
  %v932 = vpop.f32.mrf.mxu0
  %v933 = vadd.f32 %v868, %v932
  %934 = vmatmul.f32.gmra.mxu0 %v29
  %v935 = vpop.f32.mrf.mxu0
  %v936 = vadd.f32 %v871, %v935
  %937 = vmatmul.f32.gmra.mxu0 %v32
  %v938 = vpop.f32.mrf.mxu0
  %v939 = vadd.f32 %v874, %v938
  %940 = vmatmul.f32.gmra.mxu0 %v35
  %v941 = vpop.f32.mrf.mxu0
  %v942 = vadd.f32 %v877, %v941
  %943 = vmatmul.f32.gmra.mxu0 %v38
  %v944 = vpop.f32.mrf.mxu0
  %v945 = vadd.f32 %v880, %v944
  %946 = vmatmul.f32.gmra.mxu0 %v41
  %v947 = vpop.f32.mrf.mxu0
  %v948 = vadd.f32 %v883, %v947
  %949 = vmatmul.f32.gmra.mxu0 %v44
  %v950 = vpop.f32.mrf.mxu0
  %v951 = vadd.f32 %v886, %v950
  %952 = vmatmul.f32.gmra.mxu0 %v47
  %v953 = vpop.f32.mrf.mxu0
  %v954 = vadd.f32 %v889, %v953
  %955 = vmatmul.f32.gmra.mxu0 %v50
  %v956 = vpop.f32.mrf.mxu0
  %v957 = vadd.f32 %v892, %v956
  %958 = vmatmul.f32.gmra.mxu0 %v53
  %v959 = vpop.f32.mrf.mxu0
  %v960 = vadd.f32 %v895, %v959
  %961 = vmatmul.f32.gmra.mxu0 %v56
  %v962 = vpop.f32.mrf.mxu0
  %v963 = vadd.f32 %v898, %v962
  %964 = vmatmul.f32.gmra.mxu0 %v59
  %v965 = vpop.f32.mrf.mxu0
  %v966 = vadd.f32 %v901, %v965
  %967 = vmatmul.f32.gmra.mxu0 %v62
  %v968 = vpop.f32.mrf.mxu0
  %v969 = vadd.f32 %v904, %v968
  %970 = vmatmul.f32.gmra.mxu0 %v65
  %v971 = vpop.f32.mrf.mxu0
  %v972 = vadd.f32 %v907, %v971
  %973 = vmatmul.f32.gmra.mxu0 %v68
  %v974 = vpop.f32.mrf.mxu0
  %v975 = vadd.f32 %v910, %v974
  %976 = vdwg.mxu0
  %977 = vmatpush.msra.mxu0 %v261
  %978 = vmatpush.msra.mxu0 %v257
  %979 = vmatpush.msra.mxu0 %v253
  %980 = vmatpush.msra.mxu0 %v249
  %981 = vmatpush.msra.mxu0 %v245
  %982 = vmatpush.msra.mxu0 %v241
  %983 = vmatpush.msra.mxu0 %v237
  %984 = vmatpush.msra.mxu0 %v233
  %985 = vmatpush.msra.mxu0 %v229
  %986 = vmatpush.msra.mxu0 %v225
  %987 = vmatpush.msra.mxu0 %v221
  %988 = vmatpush.msra.mxu0 %v217
  %989 = vmatpush.msra.mxu0 %v213
  %990 = vmatpush.msra.mxu0 %v209
  %991 = vmatpush.msra.mxu0 %v205
  %992 = vmatpush.msra.mxu0 %v201
  %993 = vmatmul.f32.gmra.mxu0 %v24
  %v994 = vpop.f32.mrf.mxu0
  %v995 = vadd.f32 %v930, %v994
  %996 = vmatmul.f32.gmra.mxu0 %v27
  %v997 = vpop.f32.mrf.mxu0
  %v998 = vadd.f32 %v933, %v997
  %999 = vmatmul.f32.gmra.mxu0 %v30
  %v1000 = vpop.f32.mrf.mxu0
  %v1001 = vadd.f32 %v936, %v1000
  %1002 = vmatmul.f32.gmra.mxu0 %v33
  %v1003 = vpop.f32.mrf.mxu0
  %v1004 = vadd.f32 %v939, %v1003
  %1005 = vmatmul.f32.gmra.mxu0 %v36
  %v1006 = vpop.f32.mrf.mxu0
  %v1007 = vadd.f32 %v942, %v1006
  %1008 = vmatmul.f32.gmra.mxu0 %v39
  %v1009 = vpop.f32.mrf.mxu0
  %v1010 = vadd.f32 %v945, %v1009
  %1011 = vmatmul.f32.gmra.mxu0 %v42
  %v1012 = vpop.f32.mrf.mxu0
  %v1013 = vadd.f32 %v948, %v1012
  %1014 = vmatmul.f32.gmra.mxu0 %v45
  %v1015 = vpop.f32.mrf.mxu0
  %v1016 = vadd.f32 %v951, %v1015
  %1017 = vmatmul.f32.gmra.mxu0 %v48
  %v1018 = vpop.f32.mrf.mxu0
  %v1019 = vadd.f32 %v954, %v1018
  %1020 = vmatmul.f32.gmra.mxu0 %v51
  %v1021 = vpop.f32.mrf.mxu0
  %v1022 = vadd.f32 %v957, %v1021
  %1023 = vmatmul.f32.gmra.mxu0 %v54
  %v1024 = vpop.f32.mrf.mxu0
  %v1025 = vadd.f32 %v960, %v1024
  %1026 = vmatmul.f32.gmra.mxu0 %v57
  %v1027 = vpop.f32.mrf.mxu0
  %v1028 = vadd.f32 %v963, %v1027
  %1029 = vmatmul.f32.gmra.mxu0 %v60
  %v1030 = vpop.f32.mrf.mxu0
  %v1031 = vadd.f32 %v966, %v1030
  %1032 = vmatmul.f32.gmra.mxu0 %v63
  %v1033 = vpop.f32.mrf.mxu0
  %v1034 = vadd.f32 %v969, %v1033
  %1035 = vmatmul.f32.gmra.mxu0 %v66
  %v1036 = vpop.f32.mrf.mxu0
  %v1037 = vadd.f32 %v972, %v1036
  %1038 = vmatmul.f32.gmra.mxu0 %v69
  %v1039 = vpop.f32.mrf.mxu0
  %v1040 = vadd.f32 %v975, %v1039
  %1041 = vdwg.mxu0
  %v1042 = vadd.f32 %v410, %v605
  %v1043 = vadd.f32 %v1042, %v800
  %v1044 = vadd.f32 %v1043, %v995
  %1045 = vadd.xlane.f32.xlu0 %v1044
  %v1046 = vpop.xlane.xlu0 %1045
  %v1047 = vadd.f32 %v413, %v608
  %v1048 = vadd.f32 %v1047, %v803
  %v1049 = vadd.f32 %v1048, %v998
  %1050 = vadd.xlane.f32.xlu0 %v1049
  %v1051 = vpop.xlane.xlu0 %1050
  %v1052 = vadd.f32 %v416, %v611
  %v1053 = vadd.f32 %v1052, %v806
  %v1054 = vadd.f32 %v1053, %v1001
  %1055 = vadd.xlane.f32.xlu0 %v1054
  %v1056 = vpop.xlane.xlu0 %1055
  %v1057 = vadd.f32 %v419, %v614
  %v1058 = vadd.f32 %v1057, %v809
  %v1059 = vadd.f32 %v1058, %v1004
  %1060 = vadd.xlane.f32.xlu0 %v1059
  %v1061 = vpop.xlane.xlu0 %1060
  %v1062 = vadd.f32 %v422, %v617
  %v1063 = vadd.f32 %v1062, %v812
  %v1064 = vadd.f32 %v1063, %v1007
  %1065 = vadd.xlane.f32.xlu0 %v1064
  %v1066 = vpop.xlane.xlu0 %1065
  %v1067 = vadd.f32 %v425, %v620
  %v1068 = vadd.f32 %v1067, %v815
  %v1069 = vadd.f32 %v1068, %v1010
  %1070 = vadd.xlane.f32.xlu0 %v1069
  %v1071 = vpop.xlane.xlu0 %1070
  %v1072 = vadd.f32 %v428, %v623
  %v1073 = vadd.f32 %v1072, %v818
  %v1074 = vadd.f32 %v1073, %v1013
  %1075 = vadd.xlane.f32.xlu0 %v1074
  %v1076 = vpop.xlane.xlu0 %1075
  %v1077 = vadd.f32 %v431, %v626
  %v1078 = vadd.f32 %v1077, %v821
  %v1079 = vadd.f32 %v1078, %v1016
  %1080 = vadd.xlane.f32.xlu0 %v1079
  %v1081 = vpop.xlane.xlu0 %1080
  %v1082 = vadd.f32 %v434, %v629
  %v1083 = vadd.f32 %v1082, %v824
  %v1084 = vadd.f32 %v1083, %v1019
  %1085 = vadd.xlane.f32.xlu0 %v1084
  %v1086 = vpop.xlane.xlu0 %1085
  %v1087 = vadd.f32 %v437, %v632
  %v1088 = vadd.f32 %v1087, %v827
  %v1089 = vadd.f32 %v1088, %v1022
  %1090 = vadd.xlane.f32.xlu0 %v1089
  %v1091 = vpop.xlane.xlu0 %1090
  %v1092 = vadd.f32 %v440, %v635
  %v1093 = vadd.f32 %v1092, %v830
  %v1094 = vadd.f32 %v1093, %v1025
  %1095 = vadd.xlane.f32.xlu0 %v1094
  %v1096 = vpop.xlane.xlu0 %1095
  %v1097 = vadd.f32 %v443, %v638
  %v1098 = vadd.f32 %v1097, %v833
  %v1099 = vadd.f32 %v1098, %v1028
  %1100 = vadd.xlane.f32.xlu0 %v1099
  %v1101 = vpop.xlane.xlu0 %1100
  %v1102 = vadd.f32 %v446, %v641
  %v1103 = vadd.f32 %v1102, %v836
  %v1104 = vadd.f32 %v1103, %v1031
  %1105 = vadd.xlane.f32.xlu0 %v1104
  %v1106 = vpop.xlane.xlu0 %1105
  %v1107 = vadd.f32 %v449, %v644
  %v1108 = vadd.f32 %v1107, %v839
  %v1109 = vadd.f32 %v1108, %v1034
  %1110 = vadd.xlane.f32.xlu0 %v1109
  %v1111 = vpop.xlane.xlu0 %1110
  %v1112 = vadd.f32 %v452, %v647
  %v1113 = vadd.f32 %v1112, %v842
  %v1114 = vadd.f32 %v1113, %v1037
  %1115 = vadd.xlane.f32.xlu0 %v1114
  %v1116 = vpop.xlane.xlu0 %1115
  %v1117 = vadd.f32 %v455, %v650
  %v1118 = vadd.f32 %v1117, %v845
  %v1119 = vadd.f32 %v1118, %v1040
  %1120 = vadd.xlane.f32.xlu0 %v1119
  %v1121 = vpop.xlane.xlu0 %1120
  %v1122 = vrcp.pop 512.0
  %v1123 = vmul.f32 512.0, %v1122
  %v1124 = vsub.f32 1.0, %v1123
  %v1125 = vmul.f32 %v1122, %v1124
  %v1126 = vadd.f32 %v1122, %v1125
  %vm1127 = vweird.f32 %v1122
  %v1128 = vsel %vm1127, %v1122, %v1126
  %v1129 = vmul.f32 %v1046, %v1128
  %v1130 = vmul.f32 %v1051, %v1128
  %v1131 = vmul.f32 %v1056, %v1128
  %v1132 = vmul.f32 %v1061, %v1128
  %v1133 = vmul.f32 %v1066, %v1128
  %v1134 = vmul.f32 %v1071, %v1128
  %v1135 = vmul.f32 %v1076, %v1128
  %v1136 = vmul.f32 %v1081, %v1128
  %v1137 = vmul.f32 %v1086, %v1128
  %v1138 = vmul.f32 %v1091, %v1128
  %v1139 = vmul.f32 %v1096, %v1128
  %v1140 = vmul.f32 %v1101, %v1128
  %v1141 = vmul.f32 %v1106, %v1128
  %v1142 = vmul.f32 %v1111, %v1128
  %v1143 = vmul.f32 %v1116, %v1128
  %v1144 = vmul.f32 %v1121, %v1128
  %v1145 = vsub.f32 %v410, %v1129
  %v1146 = vsub.f32 %v605, %v1129
  %v1147 = vsub.f32 %v800, %v1129
  %v1148 = vsub.f32 %v995, %v1129
  %v1149 = vsub.f32 %v413, %v1130
  %v1150 = vsub.f32 %v608, %v1130
  %v1151 = vsub.f32 %v803, %v1130
  %v1152 = vsub.f32 %v998, %v1130
  %v1153 = vsub.f32 %v416, %v1131
  %v1154 = vsub.f32 %v611, %v1131
  %v1155 = vsub.f32 %v806, %v1131
  %v1156 = vsub.f32 %v1001, %v1131
  %v1157 = vsub.f32 %v419, %v1132
  %v1158 = vsub.f32 %v614, %v1132
  %v1159 = vsub.f32 %v809, %v1132
  %v1160 = vsub.f32 %v1004, %v1132
  %v1161 = vsub.f32 %v422, %v1133
  %v1162 = vsub.f32 %v617, %v1133
  %v1163 = vsub.f32 %v812, %v1133
  %v1164 = vsub.f32 %v1007, %v1133
  %v1165 = vsub.f32 %v425, %v1134
  %v1166 = vsub.f32 %v620, %v1134
  %v1167 = vsub.f32 %v815, %v1134
  %v1168 = vsub.f32 %v1010, %v1134
  %v1169 = vsub.f32 %v428, %v1135
  %v1170 = vsub.f32 %v623, %v1135
  %v1171 = vsub.f32 %v818, %v1135
  %v1172 = vsub.f32 %v1013, %v1135
  %v1173 = vsub.f32 %v431, %v1136
  %v1174 = vsub.f32 %v626, %v1136
  %v1175 = vsub.f32 %v821, %v1136
  %v1176 = vsub.f32 %v1016, %v1136
  %v1177 = vsub.f32 %v434, %v1137
  %v1178 = vsub.f32 %v629, %v1137
  %v1179 = vsub.f32 %v824, %v1137
  %v1180 = vsub.f32 %v1019, %v1137
  %v1181 = vsub.f32 %v437, %v1138
  %v1182 = vsub.f32 %v632, %v1138
  %v1183 = vsub.f32 %v827, %v1138
  %v1184 = vsub.f32 %v1022, %v1138
  %v1185 = vsub.f32 %v440, %v1139
  %v1186 = vsub.f32 %v635, %v1139
  %v1187 = vsub.f32 %v830, %v1139
  %v1188 = vsub.f32 %v1025, %v1139
  %v1189 = vsub.f32 %v443, %v1140
  %v1190 = vsub.f32 %v638, %v1140
  %v1191 = vsub.f32 %v833, %v1140
  %v1192 = vsub.f32 %v1028, %v1140
  %v1193 = vsub.f32 %v446, %v1141
  %v1194 = vsub.f32 %v641, %v1141
  %v1195 = vsub.f32 %v836, %v1141
  %v1196 = vsub.f32 %v1031, %v1141
  %v1197 = vsub.f32 %v449, %v1142
  %v1198 = vsub.f32 %v644, %v1142
  %v1199 = vsub.f32 %v839, %v1142
  %v1200 = vsub.f32 %v1034, %v1142
  %v1201 = vsub.f32 %v452, %v1143
  %v1202 = vsub.f32 %v647, %v1143
  %v1203 = vsub.f32 %v842, %v1143
  %v1204 = vsub.f32 %v1037, %v1143
  %v1205 = vsub.f32 %v455, %v1144
  %v1206 = vsub.f32 %v650, %v1144
  %v1207 = vsub.f32 %v845, %v1144
  %v1208 = vsub.f32 %v1040, %v1144
  %v1209 = vmul.f32 %v1145, %v1145
  %v1210 = vmul.f32 %v1146, %v1146
  %v1211 = vmul.f32 %v1147, %v1147
  %v1212 = vmul.f32 %v1148, %v1148
  %v1213 = vmul.f32 %v1149, %v1149
  %v1214 = vmul.f32 %v1150, %v1150
  %v1215 = vmul.f32 %v1151, %v1151
  %v1216 = vmul.f32 %v1152, %v1152
  %v1217 = vmul.f32 %v1153, %v1153
  %v1218 = vmul.f32 %v1154, %v1154
  %v1219 = vmul.f32 %v1155, %v1155
  %v1220 = vmul.f32 %v1156, %v1156
  %v1221 = vmul.f32 %v1157, %v1157
  %v1222 = vmul.f32 %v1158, %v1158
  %v1223 = vmul.f32 %v1159, %v1159
  %v1224 = vmul.f32 %v1160, %v1160
  %v1225 = vmul.f32 %v1161, %v1161
  %v1226 = vmul.f32 %v1162, %v1162
  %v1227 = vmul.f32 %v1163, %v1163
  %v1228 = vmul.f32 %v1164, %v1164
  %v1229 = vmul.f32 %v1165, %v1165
  %v1230 = vmul.f32 %v1166, %v1166
  %v1231 = vmul.f32 %v1167, %v1167
  %v1232 = vmul.f32 %v1168, %v1168
  %v1233 = vmul.f32 %v1169, %v1169
  %v1234 = vmul.f32 %v1170, %v1170
  %v1235 = vmul.f32 %v1171, %v1171
  %v1236 = vmul.f32 %v1172, %v1172
  %v1237 = vmul.f32 %v1173, %v1173
  %v1238 = vmul.f32 %v1174, %v1174
  %v1239 = vmul.f32 %v1175, %v1175
  %v1240 = vmul.f32 %v1176, %v1176
  %v1241 = vmul.f32 %v1177, %v1177
  %v1242 = vmul.f32 %v1178, %v1178
  %v1243 = vmul.f32 %v1179, %v1179
  %v1244 = vmul.f32 %v1180, %v1180
  %v1245 = vmul.f32 %v1181, %v1181
  %v1246 = vmul.f32 %v1182, %v1182
  %v1247 = vmul.f32 %v1183, %v1183
  %v1248 = vmul.f32 %v1184, %v1184
  %v1249 = vmul.f32 %v1185, %v1185
  %v1250 = vmul.f32 %v1186, %v1186
  %v1251 = vmul.f32 %v1187, %v1187
  %v1252 = vmul.f32 %v1188, %v1188
  %v1253 = vmul.f32 %v1189, %v1189
  %v1254 = vmul.f32 %v1190, %v1190
  %v1255 = vmul.f32 %v1191, %v1191
  %v1256 = vmul.f32 %v1192, %v1192
  %v1257 = vmul.f32 %v1193, %v1193
  %v1258 = vmul.f32 %v1194, %v1194
  %v1259 = vmul.f32 %v1195, %v1195
  %v1260 = vmul.f32 %v1196, %v1196
  %v1261 = vmul.f32 %v1197, %v1197
  %v1262 = vmul.f32 %v1198, %v1198
  %v1263 = vmul.f32 %v1199, %v1199
  %v1264 = vmul.f32 %v1200, %v1200
  %v1265 = vmul.f32 %v1201, %v1201
  %v1266 = vmul.f32 %v1202, %v1202
  %v1267 = vmul.f32 %v1203, %v1203
  %v1268 = vmul.f32 %v1204, %v1204
  %v1269 = vmul.f32 %v1205, %v1205
  %v1270 = vmul.f32 %v1206, %v1206
  %v1271 = vmul.f32 %v1207, %v1207
  %v1272 = vmul.f32 %v1208, %v1208
  %v1273 = vadd.f32 %v1209, %v1210
  %v1274 = vadd.f32 %v1273, %v1211
  %v1275 = vadd.f32 %v1274, %v1212
  %1276 = vadd.xlane.f32.xlu0 %v1275
  %v1277 = vpop.xlane.xlu0 %1276
  %v1278 = vadd.f32 %v1213, %v1214
  %v1279 = vadd.f32 %v1278, %v1215
  %v1280 = vadd.f32 %v1279, %v1216
  %1281 = vadd.xlane.f32.xlu0 %v1280
  %v1282 = vpop.xlane.xlu0 %1281
  %v1283 = vadd.f32 %v1217, %v1218
  %v1284 = vadd.f32 %v1283, %v1219
  %v1285 = vadd.f32 %v1284, %v1220
  %1286 = vadd.xlane.f32.xlu0 %v1285
  %v1287 = vpop.xlane.xlu0 %1286
  %v1288 = vadd.f32 %v1221, %v1222
  %v1289 = vadd.f32 %v1288, %v1223
  %v1290 = vadd.f32 %v1289, %v1224
  %1291 = vadd.xlane.f32.xlu0 %v1290
  %v1292 = vpop.xlane.xlu0 %1291
  %v1293 = vadd.f32 %v1225, %v1226
  %v1294 = vadd.f32 %v1293, %v1227
  %v1295 = vadd.f32 %v1294, %v1228
  %1296 = vadd.xlane.f32.xlu0 %v1295
  %v1297 = vpop.xlane.xlu0 %1296
  %v1298 = vadd.f32 %v1229, %v1230
  %v1299 = vadd.f32 %v1298, %v1231
  %v1300 = vadd.f32 %v1299, %v1232
  %1301 = vadd.xlane.f32.xlu0 %v1300
  %v1302 = vpop.xlane.xlu0 %1301
  %v1303 = vadd.f32 %v1233, %v1234
  %v1304 = vadd.f32 %v1303, %v1235
  %v1305 = vadd.f32 %v1304, %v1236
  %1306 = vadd.xlane.f32.xlu0 %v1305
  %v1307 = vpop.xlane.xlu0 %1306
  %v1308 = vadd.f32 %v1237, %v1238
  %v1309 = vadd.f32 %v1308, %v1239
  %v1310 = vadd.f32 %v1309, %v1240
  %1311 = vadd.xlane.f32.xlu0 %v1310
  %v1312 = vpop.xlane.xlu0 %1311
  %v1313 = vadd.f32 %v1241, %v1242
  %v1314 = vadd.f32 %v1313, %v1243
  %v1315 = vadd.f32 %v1314, %v1244
  %1316 = vadd.xlane.f32.xlu0 %v1315
  %v1317 = vpop.xlane.xlu0 %1316
  %v1318 = vadd.f32 %v1245, %v1246
  %v1319 = vadd.f32 %v1318, %v1247
  %v1320 = vadd.f32 %v1319, %v1248
  %1321 = vadd.xlane.f32.xlu0 %v1320
  %v1322 = vpop.xlane.xlu0 %1321
  %v1323 = vadd.f32 %v1249, %v1250
  %v1324 = vadd.f32 %v1323, %v1251
  %v1325 = vadd.f32 %v1324, %v1252
  %1326 = vadd.xlane.f32.xlu0 %v1325
  %v1327 = vpop.xlane.xlu0 %1326
  %v1328 = vadd.f32 %v1253, %v1254
  %v1329 = vadd.f32 %v1328, %v1255
  %v1330 = vadd.f32 %v1329, %v1256
  %1331 = vadd.xlane.f32.xlu0 %v1330
  %v1332 = vpop.xlane.xlu0 %1331
  %v1333 = vadd.f32 %v1257, %v1258
  %v1334 = vadd.f32 %v1333, %v1259
  %v1335 = vadd.f32 %v1334, %v1260
  %1336 = vadd.xlane.f32.xlu0 %v1335
  %v1337 = vpop.xlane.xlu0 %1336
  %v1338 = vadd.f32 %v1261, %v1262
  %v1339 = vadd.f32 %v1338, %v1263
  %v1340 = vadd.f32 %v1339, %v1264
  %1341 = vadd.xlane.f32.xlu0 %v1340
  %v1342 = vpop.xlane.xlu0 %1341
  %v1343 = vadd.f32 %v1265, %v1266
  %v1344 = vadd.f32 %v1343, %v1267
  %v1345 = vadd.f32 %v1344, %v1268
  %1346 = vadd.xlane.f32.xlu0 %v1345
  %v1347 = vpop.xlane.xlu0 %1346
  %v1348 = vadd.f32 %v1269, %v1270
  %v1349 = vadd.f32 %v1348, %v1271
  %v1350 = vadd.f32 %v1349, %v1272
  %1351 = vadd.xlane.f32.xlu0 %v1350
  %v1352 = vpop.xlane.xlu0 %1351
  %v1353 = vmul.f32 %v1277, %v1128
  %v1354 = vmul.f32 %v1282, %v1128
  %v1355 = vmul.f32 %v1287, %v1128
  %v1356 = vmul.f32 %v1292, %v1128
  %v1357 = vmul.f32 %v1297, %v1128
  %v1358 = vmul.f32 %v1302, %v1128
  %v1359 = vmul.f32 %v1307, %v1128
  %v1360 = vmul.f32 %v1312, %v1128
  %v1361 = vmul.f32 %v1317, %v1128
  %v1362 = vmul.f32 %v1322, %v1128
  %v1363 = vmul.f32 %v1327, %v1128
  %v1364 = vmul.f32 %v1332, %v1128
  %v1365 = vmul.f32 %v1337, %v1128
  %v1366 = vmul.f32 %v1342, %v1128
  %v1367 = vmul.f32 %v1347, %v1128
  %v1368 = vmul.f32 %v1352, %v1128
  %v1369 = vadd.f32 %v1353, 1e-05
  %v1370 = vadd.f32 %v1354, 1e-05
  %v1371 = vadd.f32 %v1355, 1e-05
  %v1372 = vadd.f32 %v1356, 1e-05
  %v1373 = vadd.f32 %v1357, 1e-05
  %v1374 = vadd.f32 %v1358, 1e-05
  %v1375 = vadd.f32 %v1359, 1e-05
  %v1376 = vadd.f32 %v1360, 1e-05
  %v1377 = vadd.f32 %v1361, 1e-05
  %v1378 = vadd.f32 %v1362, 1e-05
  %v1379 = vadd.f32 %v1363, 1e-05
  %v1380 = vadd.f32 %v1364, 1e-05
  %v1381 = vadd.f32 %v1365, 1e-05
  %v1382 = vadd.f32 %v1366, 1e-05
  %v1383 = vadd.f32 %v1367, 1e-05
  %v1384 = vadd.f32 %v1368, 1e-05
  %v1385 = vrsqrt.pop %v1369
  %v1386 = vmul.f32 %v1385, %v1369
  %v1387 = vmul.f32 %v1386, %v1385
  %v1388 = vmul.f32 0.5, %v1387
  %v1389 = vsub.f32 1.5, %v1388
  %v1390 = vmul.f32 %v1385, %v1389
  %vm1391 = vweird.f32 %v1369
  %vm1392 = vweird.f32 %v1385
  %vm1393 = vmor %vm1391, %vm1392
  %v1394 = vsel %vm1393, %v1385, %v1390
  %v1395 = vrsqrt.pop %v1370
  %v1396 = vmul.f32 %v1395, %v1370
  %v1397 = vmul.f32 %v1396, %v1395
  %v1398 = vmul.f32 0.5, %v1397
  %v1399 = vsub.f32 1.5, %v1398
  %v1400 = vmul.f32 %v1395, %v1399
  %vm1401 = vweird.f32 %v1370
  %vm1402 = vweird.f32 %v1395
  %vm1403 = vmor %vm1401, %vm1402
  %v1404 = vsel %vm1403, %v1395, %v1400
  %v1405 = vrsqrt.pop %v1371
  %v1406 = vmul.f32 %v1405, %v1371
  %v1407 = vmul.f32 %v1406, %v1405
  %v1408 = vmul.f32 0.5, %v1407
  %v1409 = vsub.f32 1.5, %v1408
  %v1410 = vmul.f32 %v1405, %v1409
  %vm1411 = vweird.f32 %v1371
  %vm1412 = vweird.f32 %v1405
  %vm1413 = vmor %vm1411, %vm1412
  %v1414 = vsel %vm1413, %v1405, %v1410
  %v1415 = vrsqrt.pop %v1372
  %v1416 = vmul.f32 %v1415, %v1372
  %v1417 = vmul.f32 %v1416, %v1415
  %v1418 = vmul.f32 0.5, %v1417
  %v1419 = vsub.f32 1.5, %v1418
  %v1420 = vmul.f32 %v1415, %v1419
  %vm1421 = vweird.f32 %v1372
  %vm1422 = vweird.f32 %v1415
  %vm1423 = vmor %vm1421, %vm1422
  %v1424 = vsel %vm1423, %v1415, %v1420
  %v1425 = vrsqrt.pop %v1373
  %v1426 = vmul.f32 %v1425, %v1373
  %v1427 = vmul.f32 %v1426, %v1425
  %v1428 = vmul.f32 0.5, %v1427
  %v1429 = vsub.f32 1.5, %v1428
  %v1430 = vmul.f32 %v1425, %v1429
  %vm1431 = vweird.f32 %v1373
  %vm1432 = vweird.f32 %v1425
  %vm1433 = vmor %vm1431, %vm1432
  %v1434 = vsel %vm1433, %v1425, %v1430
  %v1435 = vrsqrt.pop %v1374
  %v1436 = vmul.f32 %v1435, %v1374
  %v1437 = vmul.f32 %v1436, %v1435
  %v1438 = vmul.f32 0.5, %v1437
  %v1439 = vsub.f32 1.5, %v1438
  %v1440 = vmul.f32 %v1435, %v1439
  %vm1441 = vweird.f32 %v1374
  %vm1442 = vweird.f32 %v1435
  %vm1443 = vmor %vm1441, %vm1442
  %v1444 = vsel %vm1443, %v1435, %v1440
  %v1445 = vrsqrt.pop %v1375
  %v1446 = vmul.f32 %v1445, %v1375
  %v1447 = vmul.f32 %v1446, %v1445
  %v1448 = vmul.f32 0.5, %v1447
  %v1449 = vsub.f32 1.5, %v1448
  %v1450 = vmul.f32 %v1445, %v1449
  %vm1451 = vweird.f32 %v1375
  %vm1452 = vweird.f32 %v1445
  %vm1453 = vmor %vm1451, %vm1452
  %v1454 = vsel %vm1453, %v1445, %v1450
  %v1455 = vrsqrt.pop %v1376
  %v1456 = vmul.f32 %v1455, %v1376
  %v1457 = vmul.f32 %v1456, %v1455
  %v1458 = vmul.f32 0.5, %v1457
  %v1459 = vsub.f32 1.5, %v1458
  %v1460 = vmul.f32 %v1455, %v1459
  %vm1461 = vweird.f32 %v1376
  %vm1462 = vweird.f32 %v1455
  %vm1463 = vmor %vm1461, %vm1462
  %v1464 = vsel %vm1463, %v1455, %v1460
  %v1465 = vrsqrt.pop %v1377
  %v1466 = vmul.f32 %v1465, %v1377
  %v1467 = vmul.f32 %v1466, %v1465
  %v1468 = vmul.f32 0.5, %v1467
  %v1469 = vsub.f32 1.5, %v1468
  %v1470 = vmul.f32 %v1465, %v1469
  %vm1471 = vweird.f32 %v1377
  %vm1472 = vweird.f32 %v1465
  %vm1473 = vmor %vm1471, %vm1472
  %v1474 = vsel %vm1473, %v1465, %v1470
  %v1475 = vrsqrt.pop %v1378
  %v1476 = vmul.f32 %v1475, %v1378
  %v1477 = vmul.f32 %v1476, %v1475
  %v1478 = vmul.f32 0.5, %v1477
  %v1479 = vsub.f32 1.5, %v1478
  %v1480 = vmul.f32 %v1475, %v1479
  %vm1481 = vweird.f32 %v1378
  %vm1482 = vweird.f32 %v1475
  %vm1483 = vmor %vm1481, %vm1482
  %v1484 = vsel %vm1483, %v1475, %v1480
  %v1485 = vrsqrt.pop %v1379
  %v1486 = vmul.f32 %v1485, %v1379
  %v1487 = vmul.f32 %v1486, %v1485
  %v1488 = vmul.f32 0.5, %v1487
  %v1489 = vsub.f32 1.5, %v1488
  %v1490 = vmul.f32 %v1485, %v1489
  %vm1491 = vweird.f32 %v1379
  %vm1492 = vweird.f32 %v1485
  %vm1493 = vmor %vm1491, %vm1492
  %v1494 = vsel %vm1493, %v1485, %v1490
  %v1495 = vrsqrt.pop %v1380
  %v1496 = vmul.f32 %v1495, %v1380
  %v1497 = vmul.f32 %v1496, %v1495
  %v1498 = vmul.f32 0.5, %v1497
  %v1499 = vsub.f32 1.5, %v1498
  %v1500 = vmul.f32 %v1495, %v1499
  %vm1501 = vweird.f32 %v1380
  %vm1502 = vweird.f32 %v1495
  %vm1503 = vmor %vm1501, %vm1502
  %v1504 = vsel %vm1503, %v1495, %v1500
  %v1505 = vrsqrt.pop %v1381
  %v1506 = vmul.f32 %v1505, %v1381
  %v1507 = vmul.f32 %v1506, %v1505
  %v1508 = vmul.f32 0.5, %v1507
  %v1509 = vsub.f32 1.5, %v1508
  %v1510 = vmul.f32 %v1505, %v1509
  %vm1511 = vweird.f32 %v1381
  %vm1512 = vweird.f32 %v1505
  %vm1513 = vmor %vm1511, %vm1512
  %v1514 = vsel %vm1513, %v1505, %v1510
  %v1515 = vrsqrt.pop %v1382
  %v1516 = vmul.f32 %v1515, %v1382
  %v1517 = vmul.f32 %v1516, %v1515
  %v1518 = vmul.f32 0.5, %v1517
  %v1519 = vsub.f32 1.5, %v1518
  %v1520 = vmul.f32 %v1515, %v1519
  %vm1521 = vweird.f32 %v1382
  %vm1522 = vweird.f32 %v1515
  %vm1523 = vmor %vm1521, %vm1522
  %v1524 = vsel %vm1523, %v1515, %v1520
  %v1525 = vrsqrt.pop %v1383
  %v1526 = vmul.f32 %v1525, %v1383
  %v1527 = vmul.f32 %v1526, %v1525
  %v1528 = vmul.f32 0.5, %v1527
  %v1529 = vsub.f32 1.5, %v1528
  %v1530 = vmul.f32 %v1525, %v1529
  %vm1531 = vweird.f32 %v1383
  %vm1532 = vweird.f32 %v1525
  %vm1533 = vmor %vm1531, %vm1532
  %v1534 = vsel %vm1533, %v1525, %v1530
  %v1535 = vrsqrt.pop %v1384
  %v1536 = vmul.f32 %v1535, %v1384
  %v1537 = vmul.f32 %v1536, %v1535
  %v1538 = vmul.f32 0.5, %v1537
  %v1539 = vsub.f32 1.5, %v1538
  %v1540 = vmul.f32 %v1535, %v1539
  %vm1541 = vweird.f32 %v1384
  %vm1542 = vweird.f32 %v1535
  %vm1543 = vmor %vm1541, %vm1542
  %v1544 = vsel %vm1543, %v1535, %v1540
  %v1545 = vmul.f32 %v1145, %v1394
  %v1546 = vmul.f32 %v1146, %v1394
  %v1547 = vmul.f32 %v1147, %v1394
  %v1548 = vmul.f32 %v1148, %v1394
  %v1549 = vmul.f32 %v1149, %v1404
  %v1550 = vmul.f32 %v1150, %v1404
  %v1551 = vmul.f32 %v1151, %v1404
  %v1552 = vmul.f32 %v1152, %v1404
  %v1553 = vmul.f32 %v1153, %v1414
  %v1554 = vmul.f32 %v1154, %v1414
  %v1555 = vmul.f32 %v1155, %v1414
  %v1556 = vmul.f32 %v1156, %v1414
  %v1557 = vmul.f32 %v1157, %v1424
  %v1558 = vmul.f32 %v1158, %v1424
  %v1559 = vmul.f32 %v1159, %v1424
  %v1560 = vmul.f32 %v1160, %v1424
  %v1561 = vmul.f32 %v1161, %v1434
  %v1562 = vmul.f32 %v1162, %v1434
  %v1563 = vmul.f32 %v1163, %v1434
  %v1564 = vmul.f32 %v1164, %v1434
  %v1565 = vmul.f32 %v1165, %v1444
  %v1566 = vmul.f32 %v1166, %v1444
  %v1567 = vmul.f32 %v1167, %v1444
  %v1568 = vmul.f32 %v1168, %v1444
  %v1569 = vmul.f32 %v1169, %v1454
  %v1570 = vmul.f32 %v1170, %v1454
  %v1571 = vmul.f32 %v1171, %v1454
  %v1572 = vmul.f32 %v1172, %v1454
  %v1573 = vmul.f32 %v1173, %v1464
  %v1574 = vmul.f32 %v1174, %v1464
  %v1575 = vmul.f32 %v1175, %v1464
  %v1576 = vmul.f32 %v1176, %v1464
  %v1577 = vmul.f32 %v1177, %v1474
  %v1578 = vmul.f32 %v1178, %v1474
  %v1579 = vmul.f32 %v1179, %v1474
  %v1580 = vmul.f32 %v1180, %v1474
  %v1581 = vmul.f32 %v1181, %v1484
  %v1582 = vmul.f32 %v1182, %v1484
  %v1583 = vmul.f32 %v1183, %v1484
  %v1584 = vmul.f32 %v1184, %v1484
  %v1585 = vmul.f32 %v1185, %v1494
  %v1586 = vmul.f32 %v1186, %v1494
  %v1587 = vmul.f32 %v1187, %v1494
  %v1588 = vmul.f32 %v1188, %v1494
  %v1589 = vmul.f32 %v1189, %v1504
  %v1590 = vmul.f32 %v1190, %v1504
  %v1591 = vmul.f32 %v1191, %v1504
  %v1592 = vmul.f32 %v1192, %v1504
  %v1593 = vmul.f32 %v1193, %v1514
  %v1594 = vmul.f32 %v1194, %v1514
  %v1595 = vmul.f32 %v1195, %v1514
  %v1596 = vmul.f32 %v1196, %v1514
  %v1597 = vmul.f32 %v1197, %v1524
  %v1598 = vmul.f32 %v1198, %v1524
  %v1599 = vmul.f32 %v1199, %v1524
  %v1600 = vmul.f32 %v1200, %v1524
  %v1601 = vmul.f32 %v1201, %v1534
  %v1602 = vmul.f32 %v1202, %v1534
  %v1603 = vmul.f32 %v1203, %v1534
  %v1604 = vmul.f32 %v1204, %v1534
  %v1605 = vmul.f32 %v1205, %v1544
  %v1606 = vmul.f32 %v1206, %v1544
  %v1607 = vmul.f32 %v1207, %v1544
  %v1608 = vmul.f32 %v1208, %v1544
  %v1609 = vld [vmem:[%s2] sm:$0xff]
  %v1610 = vld [vmem:[%s2 + $0x8] sm:$0xff]
  %v1611 = vld [vmem:[%s2 + $0x10] sm:$0xff]
  %v1612 = vld [vmem:[%s2 + $0x18] sm:$0xff]
  %v1613 = vld [vmem:[%s2 + $0x20] sm:$0xff]
  %v1614 = vld [vmem:[%s2 + $0x28] sm:$0xff]
  %v1615 = vld [vmem:[%s2 + $0x30] sm:$0xff]
  %v1616 = vld [vmem:[%s2 + $0x38] sm:$0xff]
  %v1617 = vld [vmem:[%s2 + $0x40] sm:$0xff]
  %v1618 = vld [vmem:[%s2 + $0x48] sm:$0xff]
  %v1619 = vld [vmem:[%s2 + $0x50] sm:$0xff]
  %v1620 = vld [vmem:[%s2 + $0x58] sm:$0xff]
  %v1621 = vld [vmem:[%s2 + $0x60] sm:$0xff]
  %v1622 = vld [vmem:[%s2 + $0x68] sm:$0xff]
  %v1623 = vld [vmem:[%s2 + $0x70] sm:$0xff]
  %v1624 = vld [vmem:[%s2 + $0x78] sm:$0xff]
  %1626 = vset.pattern.permute.xlu0 0
  %1627 = vperm.xlu0 %1626, %v1609
  %v1628 = vpop.permute.xlu0 %1627
  %1631 = vset.pattern.permute.xlu0 0
  %1632 = vperm.xlu0 %1631, %v1610
  %v1633 = vpop.permute.xlu0 %1632
  %1636 = vset.pattern.permute.xlu0 0
  %1637 = vperm.xlu0 %1636, %v1611
  %v1638 = vpop.permute.xlu0 %1637
  %1641 = vset.pattern.permute.xlu0 0
  %1642 = vperm.xlu0 %1641, %v1612
  %v1643 = vpop.permute.xlu0 %1642
  %1646 = vset.pattern.permute.xlu0 0
  %1647 = vperm.xlu0 %1646, %v1613
  %v1648 = vpop.permute.xlu0 %1647
  %1651 = vset.pattern.permute.xlu0 0
  %1652 = vperm.xlu0 %1651, %v1614
  %v1653 = vpop.permute.xlu0 %1652
  %1656 = vset.pattern.permute.xlu0 0
  %1657 = vperm.xlu0 %1656, %v1615
  %v1658 = vpop.permute.xlu0 %1657
  %1661 = vset.pattern.permute.xlu0 0
  %1662 = vperm.xlu0 %1661, %v1616
  %v1663 = vpop.permute.xlu0 %1662
  %1666 = vset.pattern.permute.xlu0 0
  %1667 = vperm.xlu0 %1666, %v1617
  %v1668 = vpop.permute.xlu0 %1667
  %1671 = vset.pattern.permute.xlu0 0
  %1672 = vperm.xlu0 %1671, %v1618
  %v1673 = vpop.permute.xlu0 %1672
  %1676 = vset.pattern.permute.xlu0 0
  %1677 = vperm.xlu0 %1676, %v1619
  %v1678 = vpop.permute.xlu0 %1677
  %1681 = vset.pattern.permute.xlu0 0
  %1682 = vperm.xlu0 %1681, %v1620
  %v1683 = vpop.permute.xlu0 %1682
  %1686 = vset.pattern.permute.xlu0 0
  %1687 = vperm.xlu0 %1686, %v1621
  %v1688 = vpop.permute.xlu0 %1687
  %1691 = vset.pattern.permute.xlu0 0
  %1692 = vperm.xlu0 %1691, %v1622
  %v1693 = vpop.permute.xlu0 %1692
  %1696 = vset.pattern.permute.xlu0 0
  %1697 = vperm.xlu0 %1696, %v1623
  %v1698 = vpop.permute.xlu0 %1697
  %1701 = vset.pattern.permute.xlu0 0
  %1702 = vperm.xlu0 %1701, %v1624
  %v1703 = vpop.permute.xlu0 %1702
  %v1705 = vmul.f32 %v1545, %v1628
  %v1706 = vmul.f32 %v1546, %v1628
  %v1707 = vmul.f32 %v1547, %v1628
  %v1708 = vmul.f32 %v1548, %v1628
  %v1709 = vmul.f32 %v1549, %v1633
  %v1710 = vmul.f32 %v1550, %v1633
  %v1711 = vmul.f32 %v1551, %v1633
  %v1712 = vmul.f32 %v1552, %v1633
  %v1713 = vmul.f32 %v1553, %v1638
  %v1714 = vmul.f32 %v1554, %v1638
  %v1715 = vmul.f32 %v1555, %v1638
  %v1716 = vmul.f32 %v1556, %v1638
  %v1717 = vmul.f32 %v1557, %v1643
  %v1718 = vmul.f32 %v1558, %v1643
  %v1719 = vmul.f32 %v1559, %v1643
  %v1720 = vmul.f32 %v1560, %v1643
  %v1721 = vmul.f32 %v1561, %v1648
  %v1722 = vmul.f32 %v1562, %v1648
  %v1723 = vmul.f32 %v1563, %v1648
  %v1724 = vmul.f32 %v1564, %v1648
  %v1725 = vmul.f32 %v1565, %v1653
  %v1726 = vmul.f32 %v1566, %v1653
  %v1727 = vmul.f32 %v1567, %v1653
  %v1728 = vmul.f32 %v1568, %v1653
  %v1729 = vmul.f32 %v1569, %v1658
  %v1730 = vmul.f32 %v1570, %v1658
  %v1731 = vmul.f32 %v1571, %v1658
  %v1732 = vmul.f32 %v1572, %v1658
  %v1733 = vmul.f32 %v1573, %v1663
  %v1734 = vmul.f32 %v1574, %v1663
  %v1735 = vmul.f32 %v1575, %v1663
  %v1736 = vmul.f32 %v1576, %v1663
  %v1737 = vmul.f32 %v1577, %v1668
  %v1738 = vmul.f32 %v1578, %v1668
  %v1739 = vmul.f32 %v1579, %v1668
  %v1740 = vmul.f32 %v1580, %v1668
  %v1741 = vmul.f32 %v1581, %v1673
  %v1742 = vmul.f32 %v1582, %v1673
  %v1743 = vmul.f32 %v1583, %v1673
  %v1744 = vmul.f32 %v1584, %v1673
  %v1745 = vmul.f32 %v1585, %v1678
  %v1746 = vmul.f32 %v1586, %v1678
  %v1747 = vmul.f32 %v1587, %v1678
  %v1748 = vmul.f32 %v1588, %v1678
  %v1749 = vmul.f32 %v1589, %v1683
  %v1750 = vmul.f32 %v1590, %v1683
  %v1751 = vmul.f32 %v1591, %v1683
  %v1752 = vmul.f32 %v1592, %v1683
  %v1753 = vmul.f32 %v1593, %v1688
  %v1754 = vmul.f32 %v1594, %v1688
  %v1755 = vmul.f32 %v1595, %v1688
  %v1756 = vmul.f32 %v1596, %v1688
  %v1757 = vmul.f32 %v1597, %v1693
  %v1758 = vmul.f32 %v1598, %v1693
  %v1759 = vmul.f32 %v1599, %v1693
  %v1760 = vmul.f32 %v1600, %v1693
  %v1761 = vmul.f32 %v1601, %v1698
  %v1762 = vmul.f32 %v1602, %v1698
  %v1763 = vmul.f32 %v1603, %v1698
  %v1764 = vmul.f32 %v1604, %v1698
  %v1765 = vmul.f32 %v1605, %v1703
  %v1766 = vmul.f32 %v1606, %v1703
  %v1767 = vmul.f32 %v1607, %v1703
  %v1768 = vmul.f32 %v1608, %v1703
  %v1769 = vld [vmem:[%s3] sm:$0xff]
  %v1770 = vld [vmem:[%s3 + $0x8] sm:$0xff]
  %v1771 = vld [vmem:[%s3 + $0x10] sm:$0xff]
  %v1772 = vld [vmem:[%s3 + $0x18] sm:$0xff]
  %v1773 = vld [vmem:[%s3 + $0x20] sm:$0xff]
  %v1774 = vld [vmem:[%s3 + $0x28] sm:$0xff]
  %v1775 = vld [vmem:[%s3 + $0x30] sm:$0xff]
  %v1776 = vld [vmem:[%s3 + $0x38] sm:$0xff]
  %v1777 = vld [vmem:[%s3 + $0x40] sm:$0xff]
  %v1778 = vld [vmem:[%s3 + $0x48] sm:$0xff]
  %v1779 = vld [vmem:[%s3 + $0x50] sm:$0xff]
  %v1780 = vld [vmem:[%s3 + $0x58] sm:$0xff]
  %v1781 = vld [vmem:[%s3 + $0x60] sm:$0xff]
  %v1782 = vld [vmem:[%s3 + $0x68] sm:$0xff]
  %v1783 = vld [vmem:[%s3 + $0x70] sm:$0xff]
  %v1784 = vld [vmem:[%s3 + $0x78] sm:$0xff]
  %1786 = vset.pattern.permute.xlu0 0
  %1787 = vperm.xlu0 %1786, %v1769
  %v1788 = vpop.permute.xlu0 %1787
  %1791 = vset.pattern.permute.xlu0 0
  %1792 = vperm.xlu0 %1791, %v1770
  %v1793 = vpop.permute.xlu0 %1792
  %1796 = vset.pattern.permute.xlu0 0
  %1797 = vperm.xlu0 %1796, %v1771
  %v1798 = vpop.permute.xlu0 %1797
  %1801 = vset.pattern.permute.xlu0 0
  %1802 = vperm.xlu0 %1801, %v1772
  %v1803 = vpop.permute.xlu0 %1802
  %1806 = vset.pattern.permute.xlu0 0
  %1807 = vperm.xlu0 %1806, %v1773
  %v1808 = vpop.permute.xlu0 %1807
  %1811 = vset.pattern.permute.xlu0 0
  %1812 = vperm.xlu0 %1811, %v1774
  %v1813 = vpop.permute.xlu0 %1812
  %1816 = vset.pattern.permute.xlu0 0
  %1817 = vperm.xlu0 %1816, %v1775
  %v1818 = vpop.permute.xlu0 %1817
  %1821 = vset.pattern.permute.xlu0 0
  %1822 = vperm.xlu0 %1821, %v1776
  %v1823 = vpop.permute.xlu0 %1822
  %1826 = vset.pattern.permute.xlu0 0
  %1827 = vperm.xlu0 %1826, %v1777
  %v1828 = vpop.permute.xlu0 %1827
  %1831 = vset.pattern.permute.xlu0 0
  %1832 = vperm.xlu0 %1831, %v1778
  %v1833 = vpop.permute.xlu0 %1832
  %1836 = vset.pattern.permute.xlu0 0
  %1837 = vperm.xlu0 %1836, %v1779
  %v1838 = vpop.permute.xlu0 %1837
  %1841 = vset.pattern.permute.xlu0 0
  %1842 = vperm.xlu0 %1841, %v1780
  %v1843 = vpop.permute.xlu0 %1842
  %1846 = vset.pattern.permute.xlu0 0
  %1847 = vperm.xlu0 %1846, %v1781
  %v1848 = vpop.permute.xlu0 %1847
  %1851 = vset.pattern.permute.xlu0 0
  %1852 = vperm.xlu0 %1851, %v1782
  %v1853 = vpop.permute.xlu0 %1852
  %1856 = vset.pattern.permute.xlu0 0
  %1857 = vperm.xlu0 %1856, %v1783
  %v1858 = vpop.permute.xlu0 %1857
  %1861 = vset.pattern.permute.xlu0 0
  %1862 = vperm.xlu0 %1861, %v1784
  %v1863 = vpop.permute.xlu0 %1862
  %v1865 = vadd.f32 %v1705, %v1788
  %v1866 = vadd.f32 %v1706, %v1788
  %v1867 = vadd.f32 %v1707, %v1788
  %v1868 = vadd.f32 %v1708, %v1788
  %v1869 = vadd.f32 %v1709, %v1793
  %v1870 = vadd.f32 %v1710, %v1793
  %v1871 = vadd.f32 %v1711, %v1793
  %v1872 = vadd.f32 %v1712, %v1793
  %v1873 = vadd.f32 %v1713, %v1798
  %v1874 = vadd.f32 %v1714, %v1798
  %v1875 = vadd.f32 %v1715, %v1798
  %v1876 = vadd.f32 %v1716, %v1798
  %v1877 = vadd.f32 %v1717, %v1803
  %v1878 = vadd.f32 %v1718, %v1803
  %v1879 = vadd.f32 %v1719, %v1803
  %v1880 = vadd.f32 %v1720, %v1803
  %v1881 = vadd.f32 %v1721, %v1808
  %v1882 = vadd.f32 %v1722, %v1808
  %v1883 = vadd.f32 %v1723, %v1808
  %v1884 = vadd.f32 %v1724, %v1808
  %v1885 = vadd.f32 %v1725, %v1813
  %v1886 = vadd.f32 %v1726, %v1813
  %v1887 = vadd.f32 %v1727, %v1813
  %v1888 = vadd.f32 %v1728, %v1813
  %v1889 = vadd.f32 %v1729, %v1818
  %v1890 = vadd.f32 %v1730, %v1818
  %v1891 = vadd.f32 %v1731, %v1818
  %v1892 = vadd.f32 %v1732, %v1818
  %v1893 = vadd.f32 %v1733, %v1823
  %v1894 = vadd.f32 %v1734, %v1823
  %v1895 = vadd.f32 %v1735, %v1823
  %v1896 = vadd.f32 %v1736, %v1823
  %v1897 = vadd.f32 %v1737, %v1828
  %v1898 = vadd.f32 %v1738, %v1828
  %v1899 = vadd.f32 %v1739, %v1828
  %v1900 = vadd.f32 %v1740, %v1828
  %v1901 = vadd.f32 %v1741, %v1833
  %v1902 = vadd.f32 %v1742, %v1833
  %v1903 = vadd.f32 %v1743, %v1833
  %v1904 = vadd.f32 %v1744, %v1833
  %v1905 = vadd.f32 %v1745, %v1838
  %v1906 = vadd.f32 %v1746, %v1838
  %v1907 = vadd.f32 %v1747, %v1838
  %v1908 = vadd.f32 %v1748, %v1838
  %v1909 = vadd.f32 %v1749, %v1843
  %v1910 = vadd.f32 %v1750, %v1843
  %v1911 = vadd.f32 %v1751, %v1843
  %v1912 = vadd.f32 %v1752, %v1843
  %v1913 = vadd.f32 %v1753, %v1848
  %v1914 = vadd.f32 %v1754, %v1848
  %v1915 = vadd.f32 %v1755, %v1848
  %v1916 = vadd.f32 %v1756, %v1848
  %v1917 = vadd.f32 %v1757, %v1853
  %v1918 = vadd.f32 %v1758, %v1853
  %v1919 = vadd.f32 %v1759, %v1853
  %v1920 = vadd.f32 %v1760, %v1853
  %v1921 = vadd.f32 %v1761, %v1858
  %v1922 = vadd.f32 %v1762, %v1858
  %v1923 = vadd.f32 %v1763, %v1858
  %v1924 = vadd.f32 %v1764, %v1858
  %v1925 = vadd.f32 %v1765, %v1863
  %v1926 = vadd.f32 %v1766, %v1863
  %v1927 = vadd.f32 %v1767, %v1863
  %v1928 = vadd.f32 %v1768, %v1863
  %v1929 = vxor.u32 %v1865, 2147483648
  %v1930 = vxor.u32 %v1866, 2147483648
  %v1931 = vxor.u32 %v1867, 2147483648
  %v1932 = vxor.u32 %v1868, 2147483648
  %v1933 = vxor.u32 %v1869, 2147483648
  %v1934 = vxor.u32 %v1870, 2147483648
  %v1935 = vxor.u32 %v1871, 2147483648
  %v1936 = vxor.u32 %v1872, 2147483648
  %v1937 = vxor.u32 %v1873, 2147483648
  %v1938 = vxor.u32 %v1874, 2147483648
  %v1939 = vxor.u32 %v1875, 2147483648
  %v1940 = vxor.u32 %v1876, 2147483648
  %v1941 = vxor.u32 %v1877, 2147483648
  %v1942 = vxor.u32 %v1878, 2147483648
  %v1943 = vxor.u32 %v1879, 2147483648
  %v1944 = vxor.u32 %v1880, 2147483648
  %v1945 = vmul.f32 %v1929, 1.442695
  %v1946 = vpow.pop %v1945
  %v1947 = vmul.f32 %v1930, 1.442695
  %v1948 = vpow.pop %v1947
  %v1949 = vmul.f32 %v1931, 1.442695
  %v1950 = vpow.pop %v1949
  %v1951 = vmul.f32 %v1932, 1.442695
  %v1952 = vpow.pop %v1951
  %v1953 = vmul.f32 %v1933, 1.442695
  %v1954 = vpow.pop %v1953
  %v1955 = vmul.f32 %v1934, 1.442695
  %v1956 = vpow.pop %v1955
  %v1957 = vmul.f32 %v1935, 1.442695
  %v1958 = vpow.pop %v1957
  %v1959 = vmul.f32 %v1936, 1.442695
  %v1960 = vpow.pop %v1959
  %v1961 = vmul.f32 %v1937, 1.442695
  %v1962 = vpow.pop %v1961
  %v1963 = vmul.f32 %v1938, 1.442695
  %v1964 = vpow.pop %v1963
  %v1965 = vmul.f32 %v1939, 1.442695
  %v1966 = vpow.pop %v1965
  %v1967 = vmul.f32 %v1940, 1.442695
  %v1968 = vpow.pop %v1967
  %v1969 = vmul.f32 %v1941, 1.442695
  %v1970 = vpow.pop %v1969
  %v1971 = vmul.f32 %v1942, 1.442695
  %v1972 = vpow.pop %v1971
  %v1973 = vmul.f32 %v1943, 1.442695
  %v1974 = vpow.pop %v1973
  %v1975 = vmul.f32 %v1944, 1.442695
  %v1976 = vpow.pop %v1975
  %v1977 = vadd.f32 %v1946, 1.0
  %v1978 = vadd.f32 %v1948, 1.0
  %v1979 = vadd.f32 %v1950, 1.0
  %v1980 = vadd.f32 %v1952, 1.0
  %v1981 = vadd.f32 %v1954, 1.0
  %v1982 = vadd.f32 %v1956, 1.0
  %v1983 = vadd.f32 %v1958, 1.0
  %v1984 = vadd.f32 %v1960, 1.0
  %v1985 = vadd.f32 %v1962, 1.0
  %v1986 = vadd.f32 %v1964, 1.0
  %v1987 = vadd.f32 %v1966, 1.0
  %v1988 = vadd.f32 %v1968, 1.0
  %v1989 = vadd.f32 %v1970, 1.0
  %v1990 = vadd.f32 %v1972, 1.0
  %v1991 = vadd.f32 %v1974, 1.0
  %v1992 = vadd.f32 %v1976, 1.0
  %v1993 = vrcp.pop %v1977
  %v1994 = vmul.f32 %v1977, %v1993
  %v1995 = vsub.f32 1.0, %v1994
  %v1996 = vmul.f32 %v1993, %v1995
  %v1997 = vadd.f32 %v1993, %v1996
  %vm1998 = vweird.f32 %v1977
  %vm1999 = vweird.f32 %v1993
  %vm2000 = vmor %vm1998, %vm1999
  %v2001 = vsel %vm2000, %v1993, %v1997
  %v2002 = vand.u32 2147483647, %v1977
  %vm2003 = vcmp.eq.f32.partialorder %v2002, 8.507059e+37
  %v2004 = vand.u32 %v1977, 2147483648
  %v2005 = vor.u32 1.1754944e-38, %v2004
  %v2006 = vsel %vm2003, %v2005, %v2001
  %v2007 = vmul.f32 1.0, %v2006
  %v2008 = vrcp.pop %v1978
  %v2009 = vmul.f32 %v1978, %v2008
  %v2010 = vsub.f32 1.0, %v2009
  %v2011 = vmul.f32 %v2008, %v2010
  %v2012 = vadd.f32 %v2008, %v2011
  %vm2013 = vweird.f32 %v1978
  %vm2014 = vweird.f32 %v2008
  %vm2015 = vmor %vm2013, %vm2014
  %v2016 = vsel %vm2015, %v2008, %v2012
  %v2017 = vand.u32 2147483647, %v1978
  %vm2018 = vcmp.eq.f32.partialorder %v2017, 8.507059e+37
  %v2019 = vand.u32 %v1978, 2147483648
  %v2020 = vor.u32 1.1754944e-38, %v2019
  %v2021 = vsel %vm2018, %v2020, %v2016
  %v2022 = vmul.f32 1.0, %v2021
  %v2023 = vrcp.pop %v1979
  %v2024 = vmul.f32 %v1979, %v2023
  %v2025 = vsub.f32 1.0, %v2024
  %v2026 = vmul.f32 %v2023, %v2025
  %v2027 = vadd.f32 %v2023, %v2026
  %vm2028 = vweird.f32 %v1979
  %vm2029 = vweird.f32 %v2023
  %vm2030 = vmor %vm2028, %vm2029
  %v2031 = vsel %vm2030, %v2023, %v2027
  %v2032 = vand.u32 2147483647, %v1979
  %vm2033 = vcmp.eq.f32.partialorder %v2032, 8.507059e+37
  %v2034 = vand.u32 %v1979, 2147483648
  %v2035 = vor.u32 1.1754944e-38, %v2034
  %v2036 = vsel %vm2033, %v2035, %v2031
  %v2037 = vmul.f32 1.0, %v2036
  %v2038 = vrcp.pop %v1980
  %v2039 = vmul.f32 %v1980, %v2038
  %v2040 = vsub.f32 1.0, %v2039
  %v2041 = vmul.f32 %v2038, %v2040
  %v2042 = vadd.f32 %v2038, %v2041
  %vm2043 = vweird.f32 %v1980
  %vm2044 = vweird.f32 %v2038
  %vm2045 = vmor %vm2043, %vm2044
  %v2046 = vsel %vm2045, %v2038, %v2042
  %v2047 = vand.u32 2147483647, %v1980
  %vm2048 = vcmp.eq.f32.partialorder %v2047, 8.507059e+37
  %v2049 = vand.u32 %v1980, 2147483648
  %v2050 = vor.u32 1.1754944e-38, %v2049
  %v2051 = vsel %vm2048, %v2050, %v2046
  %v2052 = vmul.f32 1.0, %v2051
  %v2053 = vrcp.pop %v1981
  %v2054 = vmul.f32 %v1981, %v2053
  %v2055 = vsub.f32 1.0, %v2054
  %v2056 = vmul.f32 %v2053, %v2055
  %v2057 = vadd.f32 %v2053, %v2056
  %vm2058 = vweird.f32 %v1981
  %vm2059 = vweird.f32 %v2053
  %vm2060 = vmor %vm2058, %vm2059
  %v2061 = vsel %vm2060, %v2053, %v2057
  %v2062 = vand.u32 2147483647, %v1981
  %vm2063 = vcmp.eq.f32.partialorder %v2062, 8.507059e+37
  %v2064 = vand.u32 %v1981, 2147483648
  %v2065 = vor.u32 1.1754944e-38, %v2064
  %v2066 = vsel %vm2063, %v2065, %v2061
  %v2067 = vmul.f32 1.0, %v2066
  %v2068 = vrcp.pop %v1982
  %v2069 = vmul.f32 %v1982, %v2068
  %v2070 = vsub.f32 1.0, %v2069
  %v2071 = vmul.f32 %v2068, %v2070
  %v2072 = vadd.f32 %v2068, %v2071
  %vm2073 = vweird.f32 %v1982
  %vm2074 = vweird.f32 %v2068
  %vm2075 = vmor %vm2073, %vm2074
  %v2076 = vsel %vm2075, %v2068, %v2072
  %v2077 = vand.u32 2147483647, %v1982
  %vm2078 = vcmp.eq.f32.partialorder %v2077, 8.507059e+37
  %v2079 = vand.u32 %v1982, 2147483648
  %v2080 = vor.u32 1.1754944e-38, %v2079
  %v2081 = vsel %vm2078, %v2080, %v2076
  %v2082 = vmul.f32 1.0, %v2081
  %v2083 = vrcp.pop %v1983
  %v2084 = vmul.f32 %v1983, %v2083
  %v2085 = vsub.f32 1.0, %v2084
  %v2086 = vmul.f32 %v2083, %v2085
  %v2087 = vadd.f32 %v2083, %v2086
  %vm2088 = vweird.f32 %v1983
  %vm2089 = vweird.f32 %v2083
  %vm2090 = vmor %vm2088, %vm2089
  %v2091 = vsel %vm2090, %v2083, %v2087
  %v2092 = vand.u32 2147483647, %v1983
  %vm2093 = vcmp.eq.f32.partialorder %v2092, 8.507059e+37
  %v2094 = vand.u32 %v1983, 2147483648
  %v2095 = vor.u32 1.1754944e-38, %v2094
  %v2096 = vsel %vm2093, %v2095, %v2091
  %v2097 = vmul.f32 1.0, %v2096
  %v2098 = vrcp.pop %v1984
  %v2099 = vmul.f32 %v1984, %v2098
  %v2100 = vsub.f32 1.0, %v2099
  %v2101 = vmul.f32 %v2098, %v2100
  %v2102 = vadd.f32 %v2098, %v2101
  %vm2103 = vweird.f32 %v1984
  %vm2104 = vweird.f32 %v2098
  %vm2105 = vmor %vm2103, %vm2104
  %v2106 = vsel %vm2105, %v2098, %v2102
  %v2107 = vand.u32 2147483647, %v1984
  %vm2108 = vcmp.eq.f32.partialorder %v2107, 8.507059e+37
  %v2109 = vand.u32 %v1984, 2147483648
  %v2110 = vor.u32 1.1754944e-38, %v2109
  %v2111 = vsel %vm2108, %v2110, %v2106
  %v2112 = vmul.f32 1.0, %v2111
  %v2113 = vrcp.pop %v1985
  %v2114 = vmul.f32 %v1985, %v2113
  %v2115 = vsub.f32 1.0, %v2114
  %v2116 = vmul.f32 %v2113, %v2115
  %v2117 = vadd.f32 %v2113, %v2116
  %vm2118 = vweird.f32 %v1985
  %vm2119 = vweird.f32 %v2113
  %vm2120 = vmor %vm2118, %vm2119
  %v2121 = vsel %vm2120, %v2113, %v2117
  %v2122 = vand.u32 2147483647, %v1985
  %vm2123 = vcmp.eq.f32.partialorder %v2122, 8.507059e+37
  %v2124 = vand.u32 %v1985, 2147483648
  %v2125 = vor.u32 1.1754944e-38, %v2124
  %v2126 = vsel %vm2123, %v2125, %v2121
  %v2127 = vmul.f32 1.0, %v2126
  %v2128 = vrcp.pop %v1986
  %v2129 = vmul.f32 %v1986, %v2128
  %v2130 = vsub.f32 1.0, %v2129
  %v2131 = vmul.f32 %v2128, %v2130
  %v2132 = vadd.f32 %v2128, %v2131
  %vm2133 = vweird.f32 %v1986
  %vm2134 = vweird.f32 %v2128
  %vm2135 = vmor %vm2133, %vm2134
  %v2136 = vsel %vm2135, %v2128, %v2132
  %v2137 = vand.u32 2147483647, %v1986
  %vm2138 = vcmp.eq.f32.partialorder %v2137, 8.507059e+37
  %v2139 = vand.u32 %v1986, 2147483648
  %v2140 = vor.u32 1.1754944e-38, %v2139
  %v2141 = vsel %vm2138, %v2140, %v2136
  %v2142 = vmul.f32 1.0, %v2141
  %v2143 = vrcp.pop %v1987
  %v2144 = vmul.f32 %v1987, %v2143
  %v2145 = vsub.f32 1.0, %v2144
  %v2146 = vmul.f32 %v2143, %v2145
  %v2147 = vadd.f32 %v2143, %v2146
  %vm2148 = vweird.f32 %v1987
  %vm2149 = vweird.f32 %v2143
  %vm2150 = vmor %vm2148, %vm2149
  %v2151 = vsel %vm2150, %v2143, %v2147
  %v2152 = vand.u32 2147483647, %v1987
  %vm2153 = vcmp.eq.f32.partialorder %v2152, 8.507059e+37
  %v2154 = vand.u32 %v1987, 2147483648
  %v2155 = vor.u32 1.1754944e-38, %v2154
  %v2156 = vsel %vm2153, %v2155, %v2151
  %v2157 = vmul.f32 1.0, %v2156
  %v2158 = vrcp.pop %v1988
  %v2159 = vmul.f32 %v1988, %v2158
  %v2160 = vsub.f32 1.0, %v2159
  %v2161 = vmul.f32 %v2158, %v2160
  %v2162 = vadd.f32 %v2158, %v2161
  %vm2163 = vweird.f32 %v1988
  %vm2164 = vweird.f32 %v2158
  %vm2165 = vmor %vm2163, %vm2164
  %v2166 = vsel %vm2165, %v2158, %v2162
  %v2167 = vand.u32 2147483647, %v1988
  %vm2168 = vcmp.eq.f32.partialorder %v2167, 8.507059e+37
  %v2169 = vand.u32 %v1988, 2147483648
  %v2170 = vor.u32 1.1754944e-38, %v2169
  %v2171 = vsel %vm2168, %v2170, %v2166
  %v2172 = vmul.f32 1.0, %v2171
  %v2173 = vrcp.pop %v1989
  %v2174 = vmul.f32 %v1989, %v2173
  %v2175 = vsub.f32 1.0, %v2174
  %v2176 = vmul.f32 %v2173, %v2175
  %v2177 = vadd.f32 %v2173, %v2176
  %vm2178 = vweird.f32 %v1989
  %vm2179 = vweird.f32 %v2173
  %vm2180 = vmor %vm2178, %vm2179
  %v2181 = vsel %vm2180, %v2173, %v2177
  %v2182 = vand.u32 2147483647, %v1989
  %vm2183 = vcmp.eq.f32.partialorder %v2182, 8.507059e+37
  %v2184 = vand.u32 %v1989, 2147483648
  %v2185 = vor.u32 1.1754944e-38, %v2184
  %v2186 = vsel %vm2183, %v2185, %v2181
  %v2187 = vmul.f32 1.0, %v2186
  %v2188 = vrcp.pop %v1990
  %v2189 = vmul.f32 %v1990, %v2188
  %v2190 = vsub.f32 1.0, %v2189
  %v2191 = vmul.f32 %v2188, %v2190
  %v2192 = vadd.f32 %v2188, %v2191
  %vm2193 = vweird.f32 %v1990
  %vm2194 = vweird.f32 %v2188
  %vm2195 = vmor %vm2193, %vm2194
  %v2196 = vsel %vm2195, %v2188, %v2192
  %v2197 = vand.u32 2147483647, %v1990
  %vm2198 = vcmp.eq.f32.partialorder %v2197, 8.507059e+37
  %v2199 = vand.u32 %v1990, 2147483648
  %v2200 = vor.u32 1.1754944e-38, %v2199
  %v2201 = vsel %vm2198, %v2200, %v2196
  %v2202 = vmul.f32 1.0, %v2201
  %v2203 = vrcp.pop %v1991
  %v2204 = vmul.f32 %v1991, %v2203
  %v2205 = vsub.f32 1.0, %v2204
  %v2206 = vmul.f32 %v2203, %v2205
  %v2207 = vadd.f32 %v2203, %v2206
  %vm2208 = vweird.f32 %v1991
  %vm2209 = vweird.f32 %v2203
  %vm2210 = vmor %vm2208, %vm2209
  %v2211 = vsel %vm2210, %v2203, %v2207
  %v2212 = vand.u32 2147483647, %v1991
  %vm2213 = vcmp.eq.f32.partialorder %v2212, 8.507059e+37
  %v2214 = vand.u32 %v1991, 2147483648
  %v2215 = vor.u32 1.1754944e-38, %v2214
  %v2216 = vsel %vm2213, %v2215, %v2211
  %v2217 = vmul.f32 1.0, %v2216
  %v2218 = vrcp.pop %v1992
  %v2219 = vmul.f32 %v1992, %v2218
  %v2220 = vsub.f32 1.0, %v2219
  %v2221 = vmul.f32 %v2218, %v2220
  %v2222 = vadd.f32 %v2218, %v2221
  %vm2223 = vweird.f32 %v1992
  %vm2224 = vweird.f32 %v2218
  %vm2225 = vmor %vm2223, %vm2224
  %v2226 = vsel %vm2225, %v2218, %v2222
  %v2227 = vand.u32 2147483647, %v1992
  %vm2228 = vcmp.eq.f32.partialorder %v2227, 8.507059e+37
  %v2229 = vand.u32 %v1992, 2147483648
  %v2230 = vor.u32 1.1754944e-38, %v2229
  %v2231 = vsel %vm2228, %v2230, %v2226
  %v2232 = vmul.f32 1.0, %v2231
  %v2233 = vxor.u32 %v1881, 2147483648
  %v2234 = vxor.u32 %v1882, 2147483648
  %v2235 = vxor.u32 %v1883, 2147483648
  %v2236 = vxor.u32 %v1884, 2147483648
  %v2237 = vxor.u32 %v1885, 2147483648
  %v2238 = vxor.u32 %v1886, 2147483648
  %v2239 = vxor.u32 %v1887, 2147483648
  %v2240 = vxor.u32 %v1888, 2147483648
  %v2241 = vxor.u32 %v1889, 2147483648
  %v2242 = vxor.u32 %v1890, 2147483648
  %v2243 = vxor.u32 %v1891, 2147483648
  %v2244 = vxor.u32 %v1892, 2147483648
  %v2245 = vxor.u32 %v1893, 2147483648
  %v2246 = vxor.u32 %v1894, 2147483648
  %v2247 = vxor.u32 %v1895, 2147483648
  %v2248 = vxor.u32 %v1896, 2147483648
  %v2249 = vmul.f32 %v2233, 1.442695
  %v2250 = vpow.pop %v2249
  %v2251 = vmul.f32 %v2234, 1.442695
  %v2252 = vpow.pop %v2251
  %v2253 = vmul.f32 %v2235, 1.442695
  %v2254 = vpow.pop %v2253
  %v2255 = vmul.f32 %v2236, 1.442695
  %v2256 = vpow.pop %v2255
  %v2257 = vmul.f32 %v2237, 1.442695
  %v2258 = vpow.pop %v2257
  %v2259 = vmul.f32 %v2238, 1.442695
  %v2260 = vpow.pop %v2259
  %v2261 = vmul.f32 %v2239, 1.442695
  %v2262 = vpow.pop %v2261
  %v2263 = vmul.f32 %v2240, 1.442695
  %v2264 = vpow.pop %v2263
  %v2265 = vmul.f32 %v2241, 1.442695
  %v2266 = vpow.pop %v2265
  %v2267 = vmul.f32 %v2242, 1.442695
  %v2268 = vpow.pop %v2267
  %v2269 = vmul.f32 %v2243, 1.442695
  %v2270 = vpow.pop %v2269
  %v2271 = vmul.f32 %v2244, 1.442695
  %v2272 = vpow.pop %v2271
  %v2273 = vmul.f32 %v2245, 1.442695
  %v2274 = vpow.pop %v2273
  %v2275 = vmul.f32 %v2246, 1.442695
  %v2276 = vpow.pop %v2275
  %v2277 = vmul.f32 %v2247, 1.442695
  %v2278 = vpow.pop %v2277
  %v2279 = vmul.f32 %v2248, 1.442695
  %v2280 = vpow.pop %v2279
  %v2281 = vadd.f32 %v2250, 1.0
  %v2282 = vadd.f32 %v2252, 1.0
  %v2283 = vadd.f32 %v2254, 1.0
  %v2284 = vadd.f32 %v2256, 1.0
  %v2285 = vadd.f32 %v2258, 1.0
  %v2286 = vadd.f32 %v2260, 1.0
  %v2287 = vadd.f32 %v2262, 1.0
  %v2288 = vadd.f32 %v2264, 1.0
  %v2289 = vadd.f32 %v2266, 1.0
  %v2290 = vadd.f32 %v2268, 1.0
  %v2291 = vadd.f32 %v2270, 1.0
  %v2292 = vadd.f32 %v2272, 1.0
  %v2293 = vadd.f32 %v2274, 1.0
  %v2294 = vadd.f32 %v2276, 1.0
  %v2295 = vadd.f32 %v2278, 1.0
  %v2296 = vadd.f32 %v2280, 1.0
  %v2297 = vrcp.pop %v2281
  %v2298 = vmul.f32 %v2281, %v2297
  %v2299 = vsub.f32 1.0, %v2298
  %v2300 = vmul.f32 %v2297, %v2299
  %v2301 = vadd.f32 %v2297, %v2300
  %vm2302 = vweird.f32 %v2281
  %vm2303 = vweird.f32 %v2297
  %vm2304 = vmor %vm2302, %vm2303
  %v2305 = vsel %vm2304, %v2297, %v2301
  %v2306 = vand.u32 2147483647, %v2281
  %vm2307 = vcmp.eq.f32.partialorder %v2306, 8.507059e+37
  %v2308 = vand.u32 %v2281, 2147483648
  %v2309 = vor.u32 1.1754944e-38, %v2308
  %v2310 = vsel %vm2307, %v2309, %v2305
  %v2311 = vmul.f32 1.0, %v2310
  %v2312 = vrcp.pop %v2282
  %v2313 = vmul.f32 %v2282, %v2312
  %v2314 = vsub.f32 1.0, %v2313
  %v2315 = vmul.f32 %v2312, %v2314
  %v2316 = vadd.f32 %v2312, %v2315
  %vm2317 = vweird.f32 %v2282
  %vm2318 = vweird.f32 %v2312
  %vm2319 = vmor %vm2317, %vm2318
  %v2320 = vsel %vm2319, %v2312, %v2316
  %v2321 = vand.u32 2147483647, %v2282
  %vm2322 = vcmp.eq.f32.partialorder %v2321, 8.507059e+37
  %v2323 = vand.u32 %v2282, 2147483648
  %v2324 = vor.u32 1.1754944e-38, %v2323
  %v2325 = vsel %vm2322, %v2324, %v2320
  %v2326 = vmul.f32 1.0, %v2325
  %v2327 = vrcp.pop %v2283
  %v2328 = vmul.f32 %v2283, %v2327
  %v2329 = vsub.f32 1.0, %v2328
  %v2330 = vmul.f32 %v2327, %v2329
  %v2331 = vadd.f32 %v2327, %v2330
  %vm2332 = vweird.f32 %v2283
  %vm2333 = vweird.f32 %v2327
  %vm2334 = vmor %vm2332, %vm2333
  %v2335 = vsel %vm2334, %v2327, %v2331
  %v2336 = vand.u32 2147483647, %v2283
  %vm2337 = vcmp.eq.f32.partialorder %v2336, 8.507059e+37
  %v2338 = vand.u32 %v2283, 2147483648
  %v2339 = vor.u32 1.1754944e-38, %v2338
  %v2340 = vsel %vm2337, %v2339, %v2335
  %v2341 = vmul.f32 1.0, %v2340
  %v2342 = vrcp.pop %v2284
  %v2343 = vmul.f32 %v2284, %v2342
  %v2344 = vsub.f32 1.0, %v2343
  %v2345 = vmul.f32 %v2342, %v2344
  %v2346 = vadd.f32 %v2342, %v2345
  %vm2347 = vweird.f32 %v2284
  %vm2348 = vweird.f32 %v2342
  %vm2349 = vmor %vm2347, %vm2348
  %v2350 = vsel %vm2349, %v2342, %v2346
  %v2351 = vand.u32 2147483647, %v2284
  %vm2352 = vcmp.eq.f32.partialorder %v2351, 8.507059e+37
  %v2353 = vand.u32 %v2284, 2147483648
  %v2354 = vor.u32 1.1754944e-38, %v2353
  %v2355 = vsel %vm2352, %v2354, %v2350
  %v2356 = vmul.f32 1.0, %v2355
  %v2357 = vrcp.pop %v2285
  %v2358 = vmul.f32 %v2285, %v2357
  %v2359 = vsub.f32 1.0, %v2358
  %v2360 = vmul.f32 %v2357, %v2359
  %v2361 = vadd.f32 %v2357, %v2360
  %vm2362 = vweird.f32 %v2285
  %vm2363 = vweird.f32 %v2357
  %vm2364 = vmor %vm2362, %vm2363
  %v2365 = vsel %vm2364, %v2357, %v2361
  %v2366 = vand.u32 2147483647, %v2285
  %vm2367 = vcmp.eq.f32.partialorder %v2366, 8.507059e+37
  %v2368 = vand.u32 %v2285, 2147483648
  %v2369 = vor.u32 1.1754944e-38, %v2368
  %v2370 = vsel %vm2367, %v2369, %v2365
  %v2371 = vmul.f32 1.0, %v2370
  %v2372 = vrcp.pop %v2286
  %v2373 = vmul.f32 %v2286, %v2372
  %v2374 = vsub.f32 1.0, %v2373
  %v2375 = vmul.f32 %v2372, %v2374
  %v2376 = vadd.f32 %v2372, %v2375
  %vm2377 = vweird.f32 %v2286
  %vm2378 = vweird.f32 %v2372
  %vm2379 = vmor %vm2377, %vm2378
  %v2380 = vsel %vm2379, %v2372, %v2376
  %v2381 = vand.u32 2147483647, %v2286
  %vm2382 = vcmp.eq.f32.partialorder %v2381, 8.507059e+37
  %v2383 = vand.u32 %v2286, 2147483648
  %v2384 = vor.u32 1.1754944e-38, %v2383
  %v2385 = vsel %vm2382, %v2384, %v2380
  %v2386 = vmul.f32 1.0, %v2385
  %v2387 = vrcp.pop %v2287
  %v2388 = vmul.f32 %v2287, %v2387
  %v2389 = vsub.f32 1.0, %v2388
  %v2390 = vmul.f32 %v2387, %v2389
  %v2391 = vadd.f32 %v2387, %v2390
  %vm2392 = vweird.f32 %v2287
  %vm2393 = vweird.f32 %v2387
  %vm2394 = vmor %vm2392, %vm2393
  %v2395 = vsel %vm2394, %v2387, %v2391
  %v2396 = vand.u32 2147483647, %v2287
  %vm2397 = vcmp.eq.f32.partialorder %v2396, 8.507059e+37
  %v2398 = vand.u32 %v2287, 2147483648
  %v2399 = vor.u32 1.1754944e-38, %v2398
  %v2400 = vsel %vm2397, %v2399, %v2395
  %v2401 = vmul.f32 1.0, %v2400
  %v2402 = vrcp.pop %v2288
  %v2403 = vmul.f32 %v2288, %v2402
  %v2404 = vsub.f32 1.0, %v2403
  %v2405 = vmul.f32 %v2402, %v2404
  %v2406 = vadd.f32 %v2402, %v2405
  %vm2407 = vweird.f32 %v2288
  %vm2408 = vweird.f32 %v2402
  %vm2409 = vmor %vm2407, %vm2408
  %v2410 = vsel %vm2409, %v2402, %v2406
  %v2411 = vand.u32 2147483647, %v2288
  %vm2412 = vcmp.eq.f32.partialorder %v2411, 8.507059e+37
  %v2413 = vand.u32 %v2288, 2147483648
  %v2414 = vor.u32 1.1754944e-38, %v2413
  %v2415 = vsel %vm2412, %v2414, %v2410
  %v2416 = vmul.f32 1.0, %v2415
  %v2417 = vrcp.pop %v2289
  %v2418 = vmul.f32 %v2289, %v2417
  %v2419 = vsub.f32 1.0, %v2418
  %v2420 = vmul.f32 %v2417, %v2419
  %v2421 = vadd.f32 %v2417, %v2420
  %vm2422 = vweird.f32 %v2289
  %vm2423 = vweird.f32 %v2417
  %vm2424 = vmor %vm2422, %vm2423
  %v2425 = vsel %vm2424, %v2417, %v2421
  %v2426 = vand.u32 2147483647, %v2289
  %vm2427 = vcmp.eq.f32.partialorder %v2426, 8.507059e+37
  %v2428 = vand.u32 %v2289, 2147483648
  %v2429 = vor.u32 1.1754944e-38, %v2428
  %v2430 = vsel %vm2427, %v2429, %v2425
  %v2431 = vmul.f32 1.0, %v2430
  %v2432 = vrcp.pop %v2290
  %v2433 = vmul.f32 %v2290, %v2432
  %v2434 = vsub.f32 1.0, %v2433
  %v2435 = vmul.f32 %v2432, %v2434
  %v2436 = vadd.f32 %v2432, %v2435
  %vm2437 = vweird.f32 %v2290
  %vm2438 = vweird.f32 %v2432
  %vm2439 = vmor %vm2437, %vm2438
  %v2440 = vsel %vm2439, %v2432, %v2436
  %v2441 = vand.u32 2147483647, %v2290
  %vm2442 = vcmp.eq.f32.partialorder %v2441, 8.507059e+37
  %v2443 = vand.u32 %v2290, 2147483648
  %v2444 = vor.u32 1.1754944e-38, %v2443
  %v2445 = vsel %vm2442, %v2444, %v2440
  %v2446 = vmul.f32 1.0, %v2445
  %v2447 = vrcp.pop %v2291
  %v2448 = vmul.f32 %v2291, %v2447
  %v2449 = vsub.f32 1.0, %v2448
  %v2450 = vmul.f32 %v2447, %v2449
  %v2451 = vadd.f32 %v2447, %v2450
  %vm2452 = vweird.f32 %v2291
  %vm2453 = vweird.f32 %v2447
  %vm2454 = vmor %vm2452, %vm2453
  %v2455 = vsel %vm2454, %v2447, %v2451
  %v2456 = vand.u32 2147483647, %v2291
  %vm2457 = vcmp.eq.f32.partialorder %v2456, 8.507059e+37
  %v2458 = vand.u32 %v2291, 2147483648
  %v2459 = vor.u32 1.1754944e-38, %v2458
  %v2460 = vsel %vm2457, %v2459, %v2455
  %v2461 = vmul.f32 1.0, %v2460
  %v2462 = vrcp.pop %v2292
  %v2463 = vmul.f32 %v2292, %v2462
  %v2464 = vsub.f32 1.0, %v2463
  %v2465 = vmul.f32 %v2462, %v2464
  %v2466 = vadd.f32 %v2462, %v2465
  %vm2467 = vweird.f32 %v2292
  %vm2468 = vweird.f32 %v2462
  %vm2469 = vmor %vm2467, %vm2468
  %v2470 = vsel %vm2469, %v2462, %v2466
  %v2471 = vand.u32 2147483647, %v2292
  %vm2472 = vcmp.eq.f32.partialorder %v2471, 8.507059e+37
  %v2473 = vand.u32 %v2292, 2147483648
  %v2474 = vor.u32 1.1754944e-38, %v2473
  %v2475 = vsel %vm2472, %v2474, %v2470
  %v2476 = vmul.f32 1.0, %v2475
  %v2477 = vrcp.pop %v2293
  %v2478 = vmul.f32 %v2293, %v2477
  %v2479 = vsub.f32 1.0, %v2478
  %v2480 = vmul.f32 %v2477, %v2479
  %v2481 = vadd.f32 %v2477, %v2480
  %vm2482 = vweird.f32 %v2293
  %vm2483 = vweird.f32 %v2477
  %vm2484 = vmor %vm2482, %vm2483
  %v2485 = vsel %vm2484, %v2477, %v2481
  %v2486 = vand.u32 2147483647, %v2293
  %vm2487 = vcmp.eq.f32.partialorder %v2486, 8.507059e+37
  %v2488 = vand.u32 %v2293, 2147483648
  %v2489 = vor.u32 1.1754944e-38, %v2488
  %v2490 = vsel %vm2487, %v2489, %v2485
  %v2491 = vmul.f32 1.0, %v2490
  %v2492 = vrcp.pop %v2294
  %v2493 = vmul.f32 %v2294, %v2492
  %v2494 = vsub.f32 1.0, %v2493
  %v2495 = vmul.f32 %v2492, %v2494
  %v2496 = vadd.f32 %v2492, %v2495
  %vm2497 = vweird.f32 %v2294
  %vm2498 = vweird.f32 %v2492
  %vm2499 = vmor %vm2497, %vm2498
  %v2500 = vsel %vm2499, %v2492, %v2496
  %v2501 = vand.u32 2147483647, %v2294
  %vm2502 = vcmp.eq.f32.partialorder %v2501, 8.507059e+37
  %v2503 = vand.u32 %v2294, 2147483648
  %v2504 = vor.u32 1.1754944e-38, %v2503
  %v2505 = vsel %vm2502, %v2504, %v2500
  %v2506 = vmul.f32 1.0, %v2505
  %v2507 = vrcp.pop %v2295
  %v2508 = vmul.f32 %v2295, %v2507
  %v2509 = vsub.f32 1.0, %v2508
  %v2510 = vmul.f32 %v2507, %v2509
  %v2511 = vadd.f32 %v2507, %v2510
  %vm2512 = vweird.f32 %v2295
  %vm2513 = vweird.f32 %v2507
  %vm2514 = vmor %vm2512, %vm2513
  %v2515 = vsel %vm2514, %v2507, %v2511
  %v2516 = vand.u32 2147483647, %v2295
  %vm2517 = vcmp.eq.f32.partialorder %v2516, 8.507059e+37
  %v2518 = vand.u32 %v2295, 2147483648
  %v2519 = vor.u32 1.1754944e-38, %v2518
  %v2520 = vsel %vm2517, %v2519, %v2515
  %v2521 = vmul.f32 1.0, %v2520
  %v2522 = vrcp.pop %v2296
  %v2523 = vmul.f32 %v2296, %v2522
  %v2524 = vsub.f32 1.0, %v2523
  %v2525 = vmul.f32 %v2522, %v2524
  %v2526 = vadd.f32 %v2522, %v2525
  %vm2527 = vweird.f32 %v2296
  %vm2528 = vweird.f32 %v2522
  %vm2529 = vmor %vm2527, %vm2528
  %v2530 = vsel %vm2529, %v2522, %v2526
  %v2531 = vand.u32 2147483647, %v2296
  %vm2532 = vcmp.eq.f32.partialorder %v2531, 8.507059e+37
  %v2533 = vand.u32 %v2296, 2147483648
  %v2534 = vor.u32 1.1754944e-38, %v2533
  %v2535 = vsel %vm2532, %v2534, %v2530
  %v2536 = vmul.f32 1.0, %v2535
  %v2537 = vxor.u32 %v1897, 2147483648
  %v2538 = vxor.u32 %v1898, 2147483648
  %v2539 = vxor.u32 %v1899, 2147483648
  %v2540 = vxor.u32 %v1900, 2147483648
  %v2541 = vxor.u32 %v1901, 2147483648
  %v2542 = vxor.u32 %v1902, 2147483648
  %v2543 = vxor.u32 %v1903, 2147483648
  %v2544 = vxor.u32 %v1904, 2147483648
  %v2545 = vxor.u32 %v1905, 2147483648
  %v2546 = vxor.u32 %v1906, 2147483648
  %v2547 = vxor.u32 %v1907, 2147483648
  %v2548 = vxor.u32 %v1908, 2147483648
  %v2549 = vxor.u32 %v1909, 2147483648
  %v2550 = vxor.u32 %v1910, 2147483648
  %v2551 = vxor.u32 %v1911, 2147483648
  %v2552 = vxor.u32 %v1912, 2147483648
  %v2553 = vmul.f32 %v2537, 1.442695
  %v2554 = vpow.pop %v2553
  %v2555 = vmul.f32 %v2538, 1.442695
  %v2556 = vpow.pop %v2555
  %v2557 = vmul.f32 %v2539, 1.442695
  %v2558 = vpow.pop %v2557
  %v2559 = vmul.f32 %v2540, 1.442695
  %v2560 = vpow.pop %v2559
  %v2561 = vmul.f32 %v2541, 1.442695
  %v2562 = vpow.pop %v2561
  %v2563 = vmul.f32 %v2542, 1.442695
  %v2564 = vpow.pop %v2563
  %v2565 = vmul.f32 %v2543, 1.442695
  %v2566 = vpow.pop %v2565
  %v2567 = vmul.f32 %v2544, 1.442695
  %v2568 = vpow.pop %v2567
  %v2569 = vmul.f32 %v2545, 1.442695
  %v2570 = vpow.pop %v2569
  %v2571 = vmul.f32 %v2546, 1.442695
  %v2572 = vpow.pop %v2571
  %v2573 = vmul.f32 %v2547, 1.442695
  %v2574 = vpow.pop %v2573
  %v2575 = vmul.f32 %v2548, 1.442695
  %v2576 = vpow.pop %v2575
  %v2577 = vmul.f32 %v2549, 1.442695
  %v2578 = vpow.pop %v2577
  %v2579 = vmul.f32 %v2550, 1.442695
  %v2580 = vpow.pop %v2579
  %v2581 = vmul.f32 %v2551, 1.442695
  %v2582 = vpow.pop %v2581
  %v2583 = vmul.f32 %v2552, 1.442695
  %v2584 = vpow.pop %v2583
  %v2585 = vadd.f32 %v2554, 1.0
  %v2586 = vadd.f32 %v2556, 1.0
  %v2587 = vadd.f32 %v2558, 1.0
  %v2588 = vadd.f32 %v2560, 1.0
  %v2589 = vadd.f32 %v2562, 1.0
  %v2590 = vadd.f32 %v2564, 1.0
  %v2591 = vadd.f32 %v2566, 1.0
  %v2592 = vadd.f32 %v2568, 1.0
  %v2593 = vadd.f32 %v2570, 1.0
  %v2594 = vadd.f32 %v2572, 1.0
  %v2595 = vadd.f32 %v2574, 1.0
  %v2596 = vadd.f32 %v2576, 1.0
  %v2597 = vadd.f32 %v2578, 1.0
  %v2598 = vadd.f32 %v2580, 1.0
  %v2599 = vadd.f32 %v2582, 1.0
  %v2600 = vadd.f32 %v2584, 1.0
  %v2601 = vrcp.pop %v2585
  %v2602 = vmul.f32 %v2585, %v2601
  %v2603 = vsub.f32 1.0, %v2602
  %v2604 = vmul.f32 %v2601, %v2603
  %v2605 = vadd.f32 %v2601, %v2604
  %vm2606 = vweird.f32 %v2585
  %vm2607 = vweird.f32 %v2601
  %vm2608 = vmor %vm2606, %vm2607
  %v2609 = vsel %vm2608, %v2601, %v2605
  %v2610 = vand.u32 2147483647, %v2585
  %vm2611 = vcmp.eq.f32.partialorder %v2610, 8.507059e+37
  %v2612 = vand.u32 %v2585, 2147483648
  %v2613 = vor.u32 1.1754944e-38, %v2612
  %v2614 = vsel %vm2611, %v2613, %v2609
  %v2615 = vmul.f32 1.0, %v2614
  %v2616 = vrcp.pop %v2586
  %v2617 = vmul.f32 %v2586, %v2616
  %v2618 = vsub.f32 1.0, %v2617
  %v2619 = vmul.f32 %v2616, %v2618
  %v2620 = vadd.f32 %v2616, %v2619
  %vm2621 = vweird.f32 %v2586
  %vm2622 = vweird.f32 %v2616
  %vm2623 = vmor %vm2621, %vm2622
  %v2624 = vsel %vm2623, %v2616, %v2620
  %v2625 = vand.u32 2147483647, %v2586
  %vm2626 = vcmp.eq.f32.partialorder %v2625, 8.507059e+37
  %v2627 = vand.u32 %v2586, 2147483648
  %v2628 = vor.u32 1.1754944e-38, %v2627
  %v2629 = vsel %vm2626, %v2628, %v2624
  %v2630 = vmul.f32 1.0, %v2629
  %v2631 = vrcp.pop %v2587
  %v2632 = vmul.f32 %v2587, %v2631
  %v2633 = vsub.f32 1.0, %v2632
  %v2634 = vmul.f32 %v2631, %v2633
  %v2635 = vadd.f32 %v2631, %v2634
  %vm2636 = vweird.f32 %v2587
  %vm2637 = vweird.f32 %v2631
  %vm2638 = vmor %vm2636, %vm2637
  %v2639 = vsel %vm2638, %v2631, %v2635
  %v2640 = vand.u32 2147483647, %v2587
  %vm2641 = vcmp.eq.f32.partialorder %v2640, 8.507059e+37
  %v2642 = vand.u32 %v2587, 2147483648
  %v2643 = vor.u32 1.1754944e-38, %v2642
  %v2644 = vsel %vm2641, %v2643, %v2639
  %v2645 = vmul.f32 1.0, %v2644
  %v2646 = vrcp.pop %v2588
  %v2647 = vmul.f32 %v2588, %v2646
  %v2648 = vsub.f32 1.0, %v2647
  %v2649 = vmul.f32 %v2646, %v2648
  %v2650 = vadd.f32 %v2646, %v2649
  %vm2651 = vweird.f32 %v2588
  %vm2652 = vweird.f32 %v2646
  %vm2653 = vmor %vm2651, %vm2652
  %v2654 = vsel %vm2653, %v2646, %v2650
  %v2655 = vand.u32 2147483647, %v2588
  %vm2656 = vcmp.eq.f32.partialorder %v2655, 8.507059e+37
  %v2657 = vand.u32 %v2588, 2147483648
  %v2658 = vor.u32 1.1754944e-38, %v2657
  %v2659 = vsel %vm2656, %v2658, %v2654
  %v2660 = vmul.f32 1.0, %v2659
  %v2661 = vrcp.pop %v2589
  %v2662 = vmul.f32 %v2589, %v2661
  %v2663 = vsub.f32 1.0, %v2662
  %v2664 = vmul.f32 %v2661, %v2663
  %v2665 = vadd.f32 %v2661, %v2664
  %vm2666 = vweird.f32 %v2589
  %vm2667 = vweird.f32 %v2661
  %vm2668 = vmor %vm2666, %vm2667
  %v2669 = vsel %vm2668, %v2661, %v2665
  %v2670 = vand.u32 2147483647, %v2589
  %vm2671 = vcmp.eq.f32.partialorder %v2670, 8.507059e+37
  %v2672 = vand.u32 %v2589, 2147483648
  %v2673 = vor.u32 1.1754944e-38, %v2672
  %v2674 = vsel %vm2671, %v2673, %v2669
  %v2675 = vmul.f32 1.0, %v2674
  %v2676 = vrcp.pop %v2590
  %v2677 = vmul.f32 %v2590, %v2676
  %v2678 = vsub.f32 1.0, %v2677
  %v2679 = vmul.f32 %v2676, %v2678
  %v2680 = vadd.f32 %v2676, %v2679
  %vm2681 = vweird.f32 %v2590
  %vm2682 = vweird.f32 %v2676
  %vm2683 = vmor %vm2681, %vm2682
  %v2684 = vsel %vm2683, %v2676, %v2680
  %v2685 = vand.u32 2147483647, %v2590
  %vm2686 = vcmp.eq.f32.partialorder %v2685, 8.507059e+37
  %v2687 = vand.u32 %v2590, 2147483648
  %v2688 = vor.u32 1.1754944e-38, %v2687
  %v2689 = vsel %vm2686, %v2688, %v2684
  %v2690 = vmul.f32 1.0, %v2689
  %v2691 = vrcp.pop %v2591
  %v2692 = vmul.f32 %v2591, %v2691
  %v2693 = vsub.f32 1.0, %v2692
  %v2694 = vmul.f32 %v2691, %v2693
  %v2695 = vadd.f32 %v2691, %v2694
  %vm2696 = vweird.f32 %v2591
  %vm2697 = vweird.f32 %v2691
  %vm2698 = vmor %vm2696, %vm2697
  %v2699 = vsel %vm2698, %v2691, %v2695
  %v2700 = vand.u32 2147483647, %v2591
  %vm2701 = vcmp.eq.f32.partialorder %v2700, 8.507059e+37
  %v2702 = vand.u32 %v2591, 2147483648
  %v2703 = vor.u32 1.1754944e-38, %v2702
  %v2704 = vsel %vm2701, %v2703, %v2699
  %v2705 = vmul.f32 1.0, %v2704
  %v2706 = vrcp.pop %v2592
  %v2707 = vmul.f32 %v2592, %v2706
  %v2708 = vsub.f32 1.0, %v2707
  %v2709 = vmul.f32 %v2706, %v2708
  %v2710 = vadd.f32 %v2706, %v2709
  %vm2711 = vweird.f32 %v2592
  %vm2712 = vweird.f32 %v2706
  %vm2713 = vmor %vm2711, %vm2712
  %v2714 = vsel %vm2713, %v2706, %v2710
  %v2715 = vand.u32 2147483647, %v2592
  %vm2716 = vcmp.eq.f32.partialorder %v2715, 8.507059e+37
  %v2717 = vand.u32 %v2592, 2147483648
  %v2718 = vor.u32 1.1754944e-38, %v2717
  %v2719 = vsel %vm2716, %v2718, %v2714
  %v2720 = vmul.f32 1.0, %v2719
  %v2721 = vrcp.pop %v2593
  %v2722 = vmul.f32 %v2593, %v2721
  %v2723 = vsub.f32 1.0, %v2722
  %v2724 = vmul.f32 %v2721, %v2723
  %v2725 = vadd.f32 %v2721, %v2724
  %vm2726 = vweird.f32 %v2593
  %vm2727 = vweird.f32 %v2721
  %vm2728 = vmor %vm2726, %vm2727
  %v2729 = vsel %vm2728, %v2721, %v2725
  %v2730 = vand.u32 2147483647, %v2593
  %vm2731 = vcmp.eq.f32.partialorder %v2730, 8.507059e+37
  %v2732 = vand.u32 %v2593, 2147483648
  %v2733 = vor.u32 1.1754944e-38, %v2732
  %v2734 = vsel %vm2731, %v2733, %v2729
  %v2735 = vmul.f32 1.0, %v2734
  %v2736 = vrcp.pop %v2594
  %v2737 = vmul.f32 %v2594, %v2736
  %v2738 = vsub.f32 1.0, %v2737
  %v2739 = vmul.f32 %v2736, %v2738
  %v2740 = vadd.f32 %v2736, %v2739
  %vm2741 = vweird.f32 %v2594
  %vm2742 = vweird.f32 %v2736
  %vm2743 = vmor %vm2741, %vm2742
  %v2744 = vsel %vm2743, %v2736, %v2740
  %v2745 = vand.u32 2147483647, %v2594
  %vm2746 = vcmp.eq.f32.partialorder %v2745, 8.507059e+37
  %v2747 = vand.u32 %v2594, 2147483648
  %v2748 = vor.u32 1.1754944e-38, %v2747
  %v2749 = vsel %vm2746, %v2748, %v2744
  %v2750 = vmul.f32 1.0, %v2749
  %v2751 = vrcp.pop %v2595
  %v2752 = vmul.f32 %v2595, %v2751
  %v2753 = vsub.f32 1.0, %v2752
  %v2754 = vmul.f32 %v2751, %v2753
  %v2755 = vadd.f32 %v2751, %v2754
  %vm2756 = vweird.f32 %v2595
  %vm2757 = vweird.f32 %v2751
  %vm2758 = vmor %vm2756, %vm2757
  %v2759 = vsel %vm2758, %v2751, %v2755
  %v2760 = vand.u32 2147483647, %v2595
  %vm2761 = vcmp.eq.f32.partialorder %v2760, 8.507059e+37
  %v2762 = vand.u32 %v2595, 2147483648
  %v2763 = vor.u32 1.1754944e-38, %v2762
  %v2764 = vsel %vm2761, %v2763, %v2759
  %v2765 = vmul.f32 1.0, %v2764
  %v2766 = vrcp.pop %v2596
  %v2767 = vmul.f32 %v2596, %v2766
  %v2768 = vsub.f32 1.0, %v2767
  %v2769 = vmul.f32 %v2766, %v2768
  %v2770 = vadd.f32 %v2766, %v2769
  %vm2771 = vweird.f32 %v2596
  %vm2772 = vweird.f32 %v2766
  %vm2773 = vmor %vm2771, %vm2772
  %v2774 = vsel %vm2773, %v2766, %v2770
  %v2775 = vand.u32 2147483647, %v2596
  %vm2776 = vcmp.eq.f32.partialorder %v2775, 8.507059e+37
  %v2777 = vand.u32 %v2596, 2147483648
  %v2778 = vor.u32 1.1754944e-38, %v2777
  %v2779 = vsel %vm2776, %v2778, %v2774
  %v2780 = vmul.f32 1.0, %v2779
  %v2781 = vrcp.pop %v2597
  %v2782 = vmul.f32 %v2597, %v2781
  %v2783 = vsub.f32 1.0, %v2782
  %v2784 = vmul.f32 %v2781, %v2783
  %v2785 = vadd.f32 %v2781, %v2784
  %vm2786 = vweird.f32 %v2597
  %vm2787 = vweird.f32 %v2781
  %vm2788 = vmor %vm2786, %vm2787
  %v2789 = vsel %vm2788, %v2781, %v2785
  %v2790 = vand.u32 2147483647, %v2597
  %vm2791 = vcmp.eq.f32.partialorder %v2790, 8.507059e+37
  %v2792 = vand.u32 %v2597, 2147483648
  %v2793 = vor.u32 1.1754944e-38, %v2792
  %v2794 = vsel %vm2791, %v2793, %v2789
  %v2795 = vmul.f32 1.0, %v2794
  %v2796 = vrcp.pop %v2598
  %v2797 = vmul.f32 %v2598, %v2796
  %v2798 = vsub.f32 1.0, %v2797
  %v2799 = vmul.f32 %v2796, %v2798
  %v2800 = vadd.f32 %v2796, %v2799
  %vm2801 = vweird.f32 %v2598
  %vm2802 = vweird.f32 %v2796
  %vm2803 = vmor %vm2801, %vm2802
  %v2804 = vsel %vm2803, %v2796, %v2800
  %v2805 = vand.u32 2147483647, %v2598
  %vm2806 = vcmp.eq.f32.partialorder %v2805, 8.507059e+37
  %v2807 = vand.u32 %v2598, 2147483648
  %v2808 = vor.u32 1.1754944e-38, %v2807
  %v2809 = vsel %vm2806, %v2808, %v2804
  %v2810 = vmul.f32 1.0, %v2809
  %v2811 = vrcp.pop %v2599
  %v2812 = vmul.f32 %v2599, %v2811
  %v2813 = vsub.f32 1.0, %v2812
  %v2814 = vmul.f32 %v2811, %v2813
  %v2815 = vadd.f32 %v2811, %v2814
  %vm2816 = vweird.f32 %v2599
  %vm2817 = vweird.f32 %v2811
  %vm2818 = vmor %vm2816, %vm2817
  %v2819 = vsel %vm2818, %v2811, %v2815
  %v2820 = vand.u32 2147483647, %v2599
  %vm2821 = vcmp.eq.f32.partialorder %v2820, 8.507059e+37
  %v2822 = vand.u32 %v2599, 2147483648
  %v2823 = vor.u32 1.1754944e-38, %v2822
  %v2824 = vsel %vm2821, %v2823, %v2819
  %v2825 = vmul.f32 1.0, %v2824
  %v2826 = vrcp.pop %v2600
  %v2827 = vmul.f32 %v2600, %v2826
  %v2828 = vsub.f32 1.0, %v2827
  %v2829 = vmul.f32 %v2826, %v2828
  %v2830 = vadd.f32 %v2826, %v2829
  %vm2831 = vweird.f32 %v2600
  %vm2832 = vweird.f32 %v2826
  %vm2833 = vmor %vm2831, %vm2832
  %v2834 = vsel %vm2833, %v2826, %v2830
  %v2835 = vand.u32 2147483647, %v2600
  %vm2836 = vcmp.eq.f32.partialorder %v2835, 8.507059e+37
  %v2837 = vand.u32 %v2600, 2147483648
  %v2838 = vor.u32 1.1754944e-38, %v2837
  %v2839 = vsel %vm2836, %v2838, %v2834
  %v2840 = vmul.f32 1.0, %v2839
  %v2841 = vtanh.pop %v1913
  %v2842 = vtanh.pop %v1914
  %v2843 = vtanh.pop %v1915
  %v2844 = vtanh.pop %v1916
  %v2845 = vtanh.pop %v1917
  %v2846 = vtanh.pop %v1918
  %v2847 = vtanh.pop %v1919
  %v2848 = vtanh.pop %v1920
  %v2849 = vtanh.pop %v1921
  %v2850 = vtanh.pop %v1922
  %v2851 = vtanh.pop %v1923
  %v2852 = vtanh.pop %v1924
  %v2853 = vtanh.pop %v1925
  %v2854 = vtanh.pop %v1926
  %v2855 = vtanh.pop %v1927
  %v2856 = vtanh.pop %v1928
  %v2857 = vld [vmem:[%s4] sm:$0xff]
  %v2858 = vld [vmem:[%s4 + $0x8] sm:$0xff]
  %v2859 = vld [vmem:[%s4 + $0x10] sm:$0xff]
  %v2860 = vld [vmem:[%s4 + $0x18] sm:$0xff]
  %v2861 = vld [vmem:[%s4 + $0x20] sm:$0xff]
  %v2862 = vld [vmem:[%s4 + $0x28] sm:$0xff]
  %v2863 = vld [vmem:[%s4 + $0x30] sm:$0xff]
  %v2864 = vld [vmem:[%s4 + $0x38] sm:$0xff]
  %v2865 = vld [vmem:[%s4 + $0x40] sm:$0xff]
  %v2866 = vld [vmem:[%s4 + $0x48] sm:$0xff]
  %v2867 = vld [vmem:[%s4 + $0x50] sm:$0xff]
  %v2868 = vld [vmem:[%s4 + $0x58] sm:$0xff]
  %v2869 = vld [vmem:[%s4 + $0x60] sm:$0xff]
  %v2870 = vld [vmem:[%s4 + $0x68] sm:$0xff]
  %v2871 = vld [vmem:[%s4 + $0x70] sm:$0xff]
  %v2872 = vld [vmem:[%s4 + $0x78] sm:$0xff]
  %v2873 = vmul.f32 %v2311, %v2857
  %v2874 = vmul.f32 %v2326, %v2858
  %v2875 = vmul.f32 %v2341, %v2859
  %v2876 = vmul.f32 %v2356, %v2860
  %v2877 = vmul.f32 %v2371, %v2861
  %v2878 = vmul.f32 %v2386, %v2862
  %v2879 = vmul.f32 %v2401, %v2863
  %v2880 = vmul.f32 %v2416, %v2864
  %v2881 = vmul.f32 %v2431, %v2865
  %v2882 = vmul.f32 %v2446, %v2866
  %v2883 = vmul.f32 %v2461, %v2867
  %v2884 = vmul.f32 %v2476, %v2868
  %v2885 = vmul.f32 %v2491, %v2869
  %v2886 = vmul.f32 %v2506, %v2870
  %v2887 = vmul.f32 %v2521, %v2871
  %v2888 = vmul.f32 %v2536, %v2872
  %v2889 = vmul.f32 %v2007, %v2841
  %v2890 = vmul.f32 %v2022, %v2842
  %v2891 = vmul.f32 %v2037, %v2843
  %v2892 = vmul.f32 %v2052, %v2844
  %v2893 = vmul.f32 %v2067, %v2845
  %v2894 = vmul.f32 %v2082, %v2846
  %v2895 = vmul.f32 %v2097, %v2847
  %v2896 = vmul.f32 %v2112, %v2848
  %v2897 = vmul.f32 %v2127, %v2849
  %v2898 = vmul.f32 %v2142, %v2850
  %v2899 = vmul.f32 %v2157, %v2851
  %v2900 = vmul.f32 %v2172, %v2852
  %v2901 = vmul.f32 %v2187, %v2853
  %v2902 = vmul.f32 %v2202, %v2854
  %v2903 = vmul.f32 %v2217, %v2855
  %v2904 = vmul.f32 %v2232, %v2856
  %v2905 = vadd.f32 %v2873, %v2889
  %v2906 = vadd.f32 %v2874, %v2890
  %v2907 = vadd.f32 %v2875, %v2891
  %v2908 = vadd.f32 %v2876, %v2892
  %v2909 = vadd.f32 %v2877, %v2893
  %v2910 = vadd.f32 %v2878, %v2894
  %v2911 = vadd.f32 %v2879, %v2895
  %v2912 = vadd.f32 %v2880, %v2896
  %v2913 = vadd.f32 %v2881, %v2897
  %v2914 = vadd.f32 %v2882, %v2898
  %v2915 = vadd.f32 %v2883, %v2899
  %v2916 = vadd.f32 %v2884, %v2900
  %v2917 = vadd.f32 %v2885, %v2901
  %v2918 = vadd.f32 %v2886, %v2902
  %v2919 = vadd.f32 %v2887, %v2903
  %v2920 = vadd.f32 %v2888, %v2904
  %v2921 = vtanh.pop %v2905
  %v2922 = vtanh.pop %v2906
  %v2923 = vtanh.pop %v2907
  %v2924 = vtanh.pop %v2908
  %v2925 = vtanh.pop %v2909
  %v2926 = vtanh.pop %v2910
  %v2927 = vtanh.pop %v2911
  %v2928 = vtanh.pop %v2912
  %v2929 = vtanh.pop %v2913
  %v2930 = vtanh.pop %v2914
  %v2931 = vtanh.pop %v2915
  %v2932 = vtanh.pop %v2916
  %v2933 = vtanh.pop %v2917
  %v2934 = vtanh.pop %v2918
  %v2935 = vtanh.pop %v2919
  %v2936 = vtanh.pop %v2920
  %v2937 = vmul.f32 %v2615, %v2921
  %v2938 = vmul.f32 %v2630, %v2922
  %v2939 = vmul.f32 %v2645, %v2923
  %v2940 = vmul.f32 %v2660, %v2924
  %v2941 = vmul.f32 %v2675, %v2925
  %v2942 = vmul.f32 %v2690, %v2926
  %v2943 = vmul.f32 %v2705, %v2927
  %v2944 = vmul.f32 %v2720, %v2928
  %v2945 = vmul.f32 %v2735, %v2929
  %v2946 = vmul.f32 %v2750, %v2930
  %v2947 = vmul.f32 %v2765, %v2931
  %v2948 = vmul.f32 %v2780, %v2932
  %v2949 = vmul.f32 %v2795, %v2933
  %v2950 = vmul.f32 %v2810, %v2934
  %v2951 = vmul.f32 %v2825, %v2935
  %v2952 = vmul.f32 %v2840, %v2936
  %2953 = vst [vmem:[%s5] sm:$0xff] %v2937
  %2954 = vst [vmem:[%s5 + $0x8] sm:$0xff] %v2938
  %2955 = vst [vmem:[%s5 + $0x10] sm:$0xff] %v2939
  %2956 = vst [vmem:[%s5 + $0x18] sm:$0xff] %v2940
  %2957 = vst [vmem:[%s5 + $0x20] sm:$0xff] %v2941
  %2958 = vst [vmem:[%s5 + $0x28] sm:$0xff] %v2942
  %2959 = vst [vmem:[%s5 + $0x30] sm:$0xff] %v2943
  %2960 = vst [vmem:[%s5 + $0x38] sm:$0xff] %v2944
  %2961 = vst [vmem:[%s5 + $0x40] sm:$0xff] %v2945
  %2962 = vst [vmem:[%s5 + $0x48] sm:$0xff] %v2946
  %2963 = vst [vmem:[%s5 + $0x50] sm:$0xff] %v2947
  %2964 = vst [vmem:[%s5 + $0x58] sm:$0xff] %v2948
  %2965 = vst [vmem:[%s5 + $0x60] sm:$0xff] %v2949
  %2966 = vst [vmem:[%s5 + $0x68] sm:$0xff] %v2950
  %2967 = vst [vmem:[%s5 + $0x70] sm:$0xff] %v2951
  %2968 = vst [vmem:[%s5 + $0x78] sm:$0xff] %v2952
  %2969 = vst [vmem:[%s6] sm:$0xff] %v2905
  %2970 = vst [vmem:[%s6 + $0x8] sm:$0xff] %v2906
  %2971 = vst [vmem:[%s6 + $0x10] sm:$0xff] %v2907
  %2972 = vst [vmem:[%s6 + $0x18] sm:$0xff] %v2908
  %2973 = vst [vmem:[%s6 + $0x20] sm:$0xff] %v2909
  %2974 = vst [vmem:[%s6 + $0x28] sm:$0xff] %v2910
  %2975 = vst [vmem:[%s6 + $0x30] sm:$0xff] %v2911
  %2976 = vst [vmem:[%s6 + $0x38] sm:$0xff] %v2912
  %2977 = vst [vmem:[%s6 + $0x40] sm:$0xff] %v2913
  %2978 = vst [vmem:[%s6 + $0x48] sm:$0xff] %v2914
  %2979 = vst [vmem:[%s6 + $0x50] sm:$0xff] %v2915
  %2980 = vst [vmem:[%s6 + $0x58] sm:$0xff] %v2916
  %2981 = vst [vmem:[%s6 + $0x60] sm:$0xff] %v2917
  %2982 = vst [vmem:[%s6 + $0x68] sm:$0xff] %v2918
  %2983 = vst [vmem:[%s6 + $0x70] sm:$0xff] %v2919
  %2984 = vst [vmem:[%s6 + $0x78] sm:$0xff] %v2920
  // Predicated region
  $region22: #{clstm_cell_forward.1} parent=0 // pred_check
    _
  $region23: #{clstm_cell_forward.1} parent=0 // pred_check_branch
    %2986 = sbr.rel (0) target = $region25
  $region24: #{clstm_cell_forward.1} parent=0 // pred_region
    _
  $region25: #{clstm_cell_forward.1} parent=0 // pred_fallthru
    _
  // Predicated region
  $region26: #{clstm_cell_forward.1} parent=0 // pred_check
    _
  $region27: #{clstm_cell_forward.1} parent=0 // pred_check_branch
    %2988 = sbr.rel (0) target = $region29
  $region28: #{clstm_cell_forward.1} parent=0 // pred_region
    _
  $region29: #{clstm_cell_forward.1} parent=0 // pred_fallthru
    _
  // Predicated region
  $region30: #{clstm_cell_forward.1} parent=0 // pred_check
    _
  $region31: #{clstm_cell_forward.1} parent=0 // pred_check_branch
    %2990 = sbr.rel (0) target = $region33
  $region32: #{clstm_cell_forward.1} parent=0 // pred_region
    _
  $region33: #{clstm_cell_forward.1} parent=0 // pred_fallthru
    _
  // Predicated region
  $region34: #{clstm_cell_forward.1} parent=0 // pred_check
    _
  $region35: #{clstm_cell_forward.1} parent=0 // pred_check_branch
    %2992 = sbr.rel (0) target = $region37
  $region36: #{clstm_cell_forward.1} parent=0 // pred_region
    _
  $region37: #{clstm_cell_forward.1} parent=0 // pred_fallthru
    _

</llo_original>
